<compile_context>
chip_gen: v7x
topology: tpu7x:2x2x1
jax: 0.10.0
libtpu: 0.0.40
codegen_flags: <defaults>
</compile_context>

<pallas_src>
import functools
import numpy as np
import jax
import jax.numpy as jnp
from jax.experimental import pallas as pl
from jax.experimental.pallas import tpu as pltpu

_HIGH = jax.lax.Precision.HIGHEST
_LAYER_KEYS = ('wqkv', 'bqkv', 'wo', 'bo', 'w1', 'b1', 'w2', 'b2',
               'g1', 'be1', 'g2', 'be2')


# ----------------------------------------------------------------------------
# in-kernel math helpers
# ----------------------------------------------------------------------------
def _erf(x):
    # Abramowitz & Stegun 7.1.26 (|err| ~1.5e-7); only mul/add/exp (VPU/EUP).
    # TODO(synk): exact lax.erf lowering is not guaranteed in Mosaic, so GELU's
    # erf is approximated to ~1e-7 absolute accuracy here.
    a1, a2, a3, a4, a5 = (0.254829592, -0.284496736, 1.421413741,
                          -1.453152027, 1.061405429)
    p = 0.3275911
    ax = jnp.abs(x)
    t = 1.0 / (1.0 + p * ax)
    poly = ((((a5 * t + a4) * t + a3) * t + a2) * t + a1) * t
    y = 1.0 - poly * jnp.exp(-ax * ax)
    return jnp.where(x < 0.0, -y, y)


def _gelu_exact(x):
    # PyTorch F.gelu (exact, erf-based)
    return 0.5 * x * (1.0 + _erf(x * (1.0 / np.sqrt(2.0))))


def _layernorm(x, gamma, beta, eps=1e-5):
    mu = jnp.mean(x, axis=-1, keepdims=True)
    var = jnp.mean(jnp.square(x - mu), axis=-1, keepdims=True)
    return (x - mu) * jax.lax.rsqrt(var + eps) * gamma + beta


def _nbytes(*arrs):
    return sum(int(np.prod(a.shape)) * a.dtype.itemsize for a in arrs)


def _compiler_params(nbytes):
    # explicit scoped-VMEM budget (v5e default is only 16 MiB; v7x has 64 MiB
    # physical) — 4x the resident bytes, clamped to a safe range on all gens.
    limit = int(min(48 << 20, max(16 << 20, 4 * int(nbytes))))
    return pltpu.CompilerParams(dimension_semantics=("parallel",),
                                vmem_limit_bytes=limit)


# ----------------------------------------------------------------------------
# fused encoder-layer body (post-norm nn.TransformerEncoderLayer, eval mode)
# ----------------------------------------------------------------------------
def _layer_body(x, wqkv, bqkv, wo, bo, w1, b1, w2, b2, g1, be1, g2, be2,
                num_heads, only_first_row):
    bb, S, D = x.shape
    H = num_heads
    Dh = D // H
    scale = 1.0 / np.sqrt(Dh)

    x2 = x.reshape(bb * S, D)

    # fused QKV projection: single lane-dense matmul on the MXU (bf16 in, f32 acc)
    qkv = jnp.dot(x2.astype(jnp.bfloat16), wqkv,
                  preferred_element_type=jnp.float32) + bqkv            # (bb*S, 3D)

    # head-batched attention; q/k/v split at lane-aligned offsets (multiples of D)
    q = qkv[:, 0 * D:1 * D].reshape(bb, S, H, Dh)
    k = qkv[:, 1 * D:2 * D].reshape(bb, S, H, Dh)
    v = qkv[:, 2 * D:3 * D].reshape(bb, S, H, Dh)
    q = q.transpose(0, 2, 1, 3).reshape(bb * H, S, Dh) * scale          # (bb*H,S,Dh)
    k = k.transpose(0, 2, 1, 3).reshape(bb * H, S, Dh)
    v = v.transpose(0, 2, 1, 3).reshape(bb * H, S, Dh)

    if only_first_row:                      # last layer only needs the query token
        q = q[:, :1, :]
    Sq = q.shape[1]

    s = jnp.einsum('bqd,bkd->bqk', q.astype(jnp.bfloat16), k.astype(jnp.bfloat16),
                   preferred_element_type=jnp.float32)                  # (bb*H,Sq,S)
    s = s - jnp.max(s, axis=-1, keepdims=True)
    e = jnp.exp(s)
    l = jnp.sum(e, axis=-1, keepdims=True)
    o = jnp.einsum('bqk,bkd->bqd', e.astype(jnp.bfloat16), v.astype(jnp.bfloat16),
                   preferred_element_type=jnp.float32)                  # (bb*H,Sq,Dh)
    o = o * pl.reciprocal(l, approx=True)   # fold 1/sum into the (narrower) output
    o = o.reshape(bb, H, Sq, Dh).transpose(0, 2, 1, 3).reshape(bb * Sq, D)

    # single full-width output projection
    attn = jnp.dot(o.astype(jnp.bfloat16), wo,
                   preferred_element_type=jnp.float32) + bo             # (bb*Sq, D)

    xr = x[:, :1, :].reshape(bb, D) if only_first_row else x2
    h1 = _layernorm(xr + attn, g1, be1)

    # feed-forward: linear1 -> gelu -> linear2 (bf16 MXU inputs, f32 elementwise)
    f = jnp.dot(h1.astype(jnp.bfloat16), w1, preferred_element_type=jnp.float32) + b1
    f = _gelu_exact(f)
    f = jnp.dot(f.astype(jnp.bfloat16), w2, preferred_element_type=jnp.float32) + b2

    return _layernorm(h1 + f, g2, be2)       # (bb*Sq, D) f32


# ----------------------------------------------------------------------------
# Pallas kernels
# ----------------------------------------------------------------------------
def _embed_kernel(x_ref, w_ref, b_ref, q_ref, pe_ref, o_ref):
    # skelEmbedding + prepend learned query token + sinusoidal PE, fused.
    bb, T, F = x_ref.shape
    D = w_ref.shape[1]
    x = x_ref[...].reshape(bb * T, F).astype(jnp.bfloat16)
    feat = (jnp.dot(x, w_ref[...], preferred_element_type=jnp.float32)
            + b_ref[...]).reshape(bb, T, D)
    row0 = q_ref[...] + pe_ref[0:1, :]                                   # (1, D)
    o_ref[:, 0:1, :] = jnp.broadcast_to(row0[None], (bb, 1, D)).astype(o_ref.dtype)
    o_ref[:, 1:, :] = (feat + pe_ref[1:, :][None]).astype(o_ref.dtype)


def _encoder_layer_kernel(x_ref, wqkv_ref, bqkv_ref, wo_ref, bo_ref,
                          w1_ref, b1_ref, w2_ref, b2_ref,
                          g1_ref, be1_ref, g2_ref, be2_ref, o_ref, *, num_heads):
    x = x_ref[...].astype(jnp.float32)                                   # (bb,S,D)
    bb, S, D = x.shape
    h2 = _layer_body(x, wqkv_ref[...], bqkv_ref[...], wo_ref[...], bo_ref[...],
                     w1_ref[...], b1_ref[...], w2_ref[...], b2_ref[...],
                     g1_ref[...], be1_ref[...], g2_ref[...], be2_ref[...],
                     num_heads, only_first_row=False)
    o_ref[...] = h2.reshape(bb, S, D).astype(o_ref.dtype)


def _encoder_final_kernel(x_ref, wqkv_ref, bqkv_ref, wo_ref, bo_ref,
                          w1_ref, b1_ref, w2_ref, b2_ref,
                          g1_ref, be1_ref, g2_ref, be2_ref,
                          fw_ref, fb_ref, o_ref, *, num_heads):
    # last encoder layer restricted to token 0 + fused final Linear
    x = x_ref[...].astype(jnp.float32)                                   # (bb,S,D)
    h2 = _layer_body(x, wqkv_ref[...], bqkv_ref[...], wo_ref[...], bo_ref[...],
                     w1_ref[...], b1_ref[...], w2_ref[...], b2_ref[...],
                     g1_ref[...], be1_ref[...], g2_ref[...], be2_ref[...],
                     num_heads, only_first_row=True)                     # (bb, D)
    y = jnp.dot(h2.astype(jnp.bfloat16), fw_ref[...],
                preferred_element_type=jnp.float32) + fb_ref[...]        # (bb, out)
    o_ref[...] = y[:, None, :].astype(o_ref.dtype)


# ----------------------------------------------------------------------------
# pallas_call wrappers (batch-tiled grid, weights pinned in VMEM)
# ----------------------------------------------------------------------------
def pallas_embed(x3, w, b, query, pe, block_b=1):
    B, T, F = x3.shape
    D = w.shape[1]
    S = T + 1
    assert B % block_b == 0
    return pl.pallas_call(
        _embed_kernel,
        out_shape=jax.ShapeDtypeStruct((B, S, D), jnp.float32),
        grid=(B // block_b,),
        in_specs=[
            pl.BlockSpec((block_b, T, F), lambda i: (i, 0, 0)),
            pl.BlockSpec(w.shape, lambda i: (0, 0)),
            pl.BlockSpec(b.shape, lambda i: (0, 0)),
            pl.BlockSpec(query.shape, lambda i: (0, 0)),
            pl.BlockSpec(pe.shape, lambda i: (0, 0)),
        ],
        out_specs=pl.BlockSpec((block_b, S, D), lambda i: (i, 0, 0)),
        compiler_params=_compiler_params(_nbytes(x3, w, b, query, pe) + B * S * D * 4),
    )(x3, w, b, query, pe)


def pallas_encoder_layer(x, p, num_heads, block_b=1):
    B, S, D = x.shape
    assert B % block_b == 0
    kernel = functools.partial(_encoder_layer_kernel, num_heads=num_heads)
    act_spec = pl.BlockSpec((block_b, S, D), lambda i: (i, 0, 0))
    in_specs = [act_spec] + [pl.BlockSpec(p[k].shape, lambda i: (0, 0))
                             for k in _LAYER_KEYS]
    nbytes = 2 * _nbytes(x) + _nbytes(*[p[k] for k in _LAYER_KEYS])
    return pl.pallas_call(
        kernel,
        out_shape=jax.ShapeDtypeStruct((B, S, D), jnp.float32),
        grid=(B // block_b,),
        in_specs=in_specs,
        out_specs=act_spec,
        compiler_params=_compiler_params(nbytes),
    )(x, *[p[k] for k in _LAYER_KEYS])


def pallas_encoder_final_layer(x, p, final_w, final_b, num_heads, block_b=1):
    B, S, D = x.shape
    out_dim = final_w.shape[1]
    assert B % block_b == 0
    kernel = functools.partial(_encoder_final_kernel, num_heads=num_heads)
    in_specs = ([pl.BlockSpec((block_b, S, D), lambda i: (i, 0, 0))]
                + [pl.BlockSpec(p[k].shape, lambda i: (0, 0)) for k in _LAYER_KEYS]
                + [pl.BlockSpec(final_w.shape, lambda i: (0, 0)),
                   pl.BlockSpec(final_b.shape, lambda i: (0, 0))])
    nbytes = (2 * _nbytes(x) + _nbytes(*[p[k] for k in _LAYER_KEYS])
              + _nbytes(final_w, final_b))
    return pl.pallas_call(
        kernel,
        out_shape=jax.ShapeDtypeStruct((B, 1, out_dim), jnp.float32),
        grid=(B // block_b,),
        in_specs=in_specs,
        out_specs=pl.BlockSpec((block_b, 1, out_dim), lambda i: (i, 0, 0)),
        compiler_params=_compiler_params(nbytes),
    )(x, *[p[k] for k in _LAYER_KEYS], final_w, final_b)


# ----------------------------------------------------------------------------
# model glue (param setup, PE) and forward
# ----------------------------------------------------------------------------
def sinusoidal_pe(n, d_model):
    position = np.arange(n, dtype=np.float32)[:, None]
    div_term = np.exp(np.arange(0, d_model, 2, dtype=np.float32)
                      * (-np.log(10000.0) / d_model))
    pe = np.zeros((n, d_model), dtype=np.float32)
    pe[:, 0::2] = np.sin(position * div_term)
    pe[:, 1::2] = np.cos(position * div_term)
    return jnp.asarray(pe)


def init_params(key, in_feats, d_model, ff, out_dim, n_layers, seq_len):
    ks = jax.random.split(key, 4 + n_layers)

    def nrm(k, shape, scale=0.05, dtype=jnp.float32):
        return (scale * jax.random.normal(k, shape, jnp.float32)).astype(dtype)

    params = {
        'emb_w': nrm(ks[0], (in_feats, d_model), dtype=jnp.bfloat16),  # pre-transposed
        'emb_b': nrm(ks[1], (1, d_model), 0.01),
        'query': jax.random.normal(ks[2], (1, d_model), jnp.float32),
        'final_w': nrm(ks[3], (d_model, out_dim), dtype=jnp.bfloat16),
        'final_b': jnp.zeros((1, out_dim), jnp.float32),
        'pe': sinusoidal_pe(seq_len + 1, d_model),
        'layers': [],
    }
    for i in range(n_layers):
        lk = jax.random.split(ks[4 + i], 8)
        params['layers'].append({
            'wqkv': nrm(lk[0], (d_model, 3 * d_model), dtype=jnp.bfloat16),
            'bqkv': nrm(lk[1], (1, 3 * d_model), 0.01),
            'wo':   nrm(lk[2], (d_model, d_model), dtype=jnp.bfloat16),
            'bo':   nrm(lk[3], (1, d_model), 0.01),
            'w1':   nrm(lk[4], (d_model, ff), dtype=jnp.bfloat16),
            'b1':   nrm(lk[5], (1, ff), 0.01),
            'w2':   nrm(lk[6], (ff, d_model), dtype=jnp.bfloat16),
            'b2':   nrm(lk[7], (1, d_model), 0.01),
            'g1':   jnp.ones((1, d_model), jnp.float32),
            'be1':  jnp.zeros((1, d_model), jnp.float32),
            'g2':   jnp.ones((1, d_model), jnp.float32),
            'be2':  jnp.zeros((1, d_model), jnp.float32),
        })
    return params


def pallas_forward(x_in, params, num_heads):
    """MotionXTransformerEncoder.forward, hot path entirely in Pallas kernels."""
    B, T = x_in.shape[:2]
    assert len(params['layers']) >= 1
    x3 = x_in.reshape(B, T, -1)                   # wrapper-side reshape (HBM, free)
    pe = params['pe'][:T + 1]

    # skelEmbedding + query prepend + positional encoding (one fused kernel)
    feat = pallas_embed(x3, params['emb_w'], params['emb_b'], params['query'], pe)

    # transformer encoder stack; last layer fuses token-0 selection + final Linear
    for lp in params['layers'][:-1]:
        feat = pallas_encoder_layer(feat, lp, num_heads)
    out = pallas_encoder_final_layer(feat, params['layers'][-1],
                                     params['final_w'], params['final_b'], num_heads)
    return out[:, 0, :]


# ----------------------------------------------------------------------------
# pure-JAX f32 reference (correctness check only)
# ----------------------------------------------------------------------------
def _ref_layer(x, p, H):
    B, S, D = x.shape
    Dh = D // H
    scale = 1.0 / np.sqrt(Dh)
    x2 = x.reshape(B * S, D)
    qkv = jnp.dot(x2, p['wqkv'].astype(jnp.float32), precision=_HIGH) + p['bqkv']
    q = qkv[:, :D].reshape(B, S, H, Dh).transpose(0, 2, 1, 3) * scale
    k = qkv[:, D:2 * D].reshape(B, S, H, Dh).transpose(0, 2, 1, 3)
    v = qkv[:, 2 * D:].reshape(B, S, H, Dh).transpose(0, 2, 1, 3)
    s = jnp.einsum('bhqd,bhkd->bhqk', q, k, precision=_HIGH)
    pr = jax.nn.softmax(s, axis=-1)
    o = jnp.einsum('bhqk,bhkd->bhqd', pr, v, precision=_HIGH)
    o = o.transpose(0, 2, 1, 3).reshape(B * S, D)
    attn = jnp.dot(o, p['wo'].astype(jnp.float32), precision=_HIGH) + p['bo']
    h1 = _layernorm(x2 + attn, p['g1'], p['be1'])
    f = jax.nn.gelu(jnp.dot(h1, p['w1'].astype(jnp.float32), precision=_HIGH) + p['b1'],
                    approximate=False)
    f = jnp.dot(f, p['w2'].astype(jnp.float32), precision=_HIGH) + p['b2']
    h2 = _layernorm(h1 + f, p['g2'], p['be2'])
    return h2.reshape(B, S, D)


def reference_forward(x_in, params, num_heads):
    B, T = x_in.shape[:2]
    D = params['emb_w'].shape[1]
    feat = (jnp.dot(x_in.reshape(B * T, -1), params['emb_w'].astype(jnp.float32),
                    precision=_HIGH) + params['emb_b']).reshape(B, T, D)
    query = jnp.broadcast_to(params['query'][None], (B, 1, D))
    feat = jnp.concatenate([query, feat], axis=1)
    feat = feat + params['pe'][:T + 1][None, :, :]
    for lp in params['layers']:
        feat = _ref_layer(feat, lp, num_heads)
    y = feat[:, 0, :]
    return jnp.dot(y, params['final_w'].astype(jnp.float32),
                   precision=_HIGH) + params['final_b']


# ----------------------------------------------------------------------------
if __name__ == "__main__":
    # small config consistent with the module (input_feats = 55*6 is fixed by it)
    B, T = 2, 8
    D_MODEL, HEADS, FF, LAYERS, OUT_DIM = 32, 4, 64, 2, 32
    IN_FEATS = 55 * 6

    key = jax.random.PRNGKey(0)
    kp, kx = jax.random.split(key)
    params = init_params(kp, IN_FEATS, D_MODEL, FF, OUT_DIM, LAYERS, T)
    x = jax.random.normal(kx, (B, T, 55, 6), jnp.float32)   # motion input (B,T,55,6)

    fwd = jax.jit(functools.partial(pallas_forward, num_heads=HEADS))
    out = jax.block_until_ready(fwd(x, params))
    assert out.shape == (B, OUT_DIM), out.shape

    ref = jax.block_until_ready(reference_forward(x, params, HEADS))
    diff = float(np.max(np.abs(np.asarray(out) - np.asarray(ref))))
    # tolerance accounts for bf16 MXU inputs in the kernel vs f32 reference
    if not np.allclose(np.asarray(out), np.asarray(ref), atol=2e-2, rtol=2e-2):
        raise SystemExit("mismatch vs pure-JAX reference, max abs diff %.3e" % diff)

    print("KERNEL_OK")
</pallas_src>

<mosaic_0001>
module attributes {stable_mosaic.version = 11 : i64} {
  func.func @_embed_kernel(%arg0: i32, %arg1: memref<1x8x330xf32, #tpu.memory_space<vmem>>, %arg2: memref<330x32xbf16, #tpu.memory_space<vmem>>, %arg3: memref<1x32xf32, #tpu.memory_space<vmem>>, %arg4: memref<1x32xf32, #tpu.memory_space<vmem>>, %arg5: memref<9x32xf32, #tpu.memory_space<vmem>>, %arg6: memref<1x9x32xf32, #tpu.memory_space<vmem>>) attributes {dimension_semantics = [#tpu.dimension_semantics<parallel>], iteration_bounds = array<i64: 2>, scalar_prefetch = 0 : i64, scratch_operands = 0 : i64, tpu.core_type = #tpu.core_type<tc>, window_params = [{transform_indices = @transform_0, window_bounds = array<i64: 1, 8, 330>}, {pipeline_mode = #tpu.pipeline_mode<synchronous>, transform_indices = @transform_1, window_bounds = array<i64: 330, 32>}, {pipeline_mode = #tpu.pipeline_mode<synchronous>, transform_indices = @transform_2, window_bounds = array<i64: 1, 32>}, {pipeline_mode = #tpu.pipeline_mode<synchronous>, transform_indices = @transform_3, window_bounds = array<i64: 1, 32>}, {pipeline_mode = #tpu.pipeline_mode<synchronous>, transform_indices = @transform_4, window_bounds = array<i64: 9, 32>}, {transform_indices = @transform_5, window_bounds = array<i64: 1, 9, 32>}]} {
    %c0 = arith.constant 0 : index
    %c0_0 = arith.constant 0 : index
    %c0_1 = arith.constant 0 : index
    %0 = vector.load %arg1[%c0, %c0_0, %c0_1] : memref<1x8x330xf32, #tpu.memory_space<vmem>>, vector<1x8x330xf32>
    %1 = vector.shape_cast %0 : vector<1x8x330xf32> to vector<8x330xf32>
    %2 = arith.truncf %1 : vector<8x330xf32> to vector<8x330xbf16>
    %c0_2 = arith.constant 0 : index
    %c0_3 = arith.constant 0 : index
    %3 = vector.load %arg2[%c0_2, %c0_3] : memref<330x32xbf16, #tpu.memory_space<vmem>>, vector<330x32xbf16>
    %cst = arith.constant dense<0.000000e+00> : vector<8x32xf32>
    %4 = tpu.matmul %2, %3, %cst {dimension_numbers = #tpu.dot_dimension_numbers<[1], [0], [0], [1], [0, 0, 1, 1], [], []>} : vector<8x330xbf16>, vector<330x32xbf16>, vector<8x32xf32> -> vector<8x32xf32>
    %c0_4 = arith.constant 0 : index
    %c0_5 = arith.constant 0 : index
    %5 = vector.load %arg3[%c0_4, %c0_5] : memref<1x32xf32, #tpu.memory_space<vmem>>, vector<1x32xf32>
    %6 = vector.broadcast %5 : vector<1x32xf32> to vector<8x32xf32>
    %7 = arith.addf %4, %6 : vector<8x32xf32>
    %8 = vector.shape_cast %7 : vector<8x32xf32> to vector<1x8x32xf32>
    %c0_6 = arith.constant 0 : index
    %c0_7 = arith.constant 0 : index
    %9 = vector.load %arg4[%c0_6, %c0_7] : memref<1x32xf32, #tpu.memory_space<vmem>>, vector<1x32xf32>
    %c0_8 = arith.constant 0 : index
    %c0_9 = arith.constant 0 : index
    %10 = vector.load %arg5[%c0_8, %c0_9] : memref<9x32xf32, #tpu.memory_space<vmem>>, vector<1x32xf32>
    %11 = arith.addf %9, %10 : vector<1x32xf32>
    %12 = vector.shape_cast %11 : vector<1x32xf32> to vector<1x1x32xf32>
    %c0_10 = arith.constant 0 : index
    %c0_11 = arith.constant 0 : index
    %c0_12 = arith.constant 0 : index
    %13 = vector.load %arg6[%c0_10, %c0_11, %c0_12] : memref<1x9x32xf32, #tpu.memory_space<vmem>>, vector<1x1x32xf32>
    tpu.vector_store %arg6[%c0_10, %c0_11, %c0_12], %12 {strides = array<i32>} : memref<1x9x32xf32, #tpu.memory_space<vmem>>, vector<1x1x32xf32>,
    %c1 = arith.constant 1 : index
    %c0_13 = arith.constant 0 : index
    %14 = vector.load %arg5[%c1, %c0_13] : memref<9x32xf32, #tpu.memory_space<vmem>>, vector<8x32xf32>
    %15 = vector.shape_cast %14 : vector<8x32xf32> to vector<1x8x32xf32>
    %16 = arith.addf %8, %15 : vector<1x8x32xf32>
    %c0_14 = arith.constant 0 : index
    %c1_15 = arith.constant 1 : index
    %c0_16 = arith.constant 0 : index
    %17 = vector.load %arg6[%c0_14, %c1_15, %c0_16] : memref<1x9x32xf32, #tpu.memory_space<vmem>>, vector<1x8x32xf32>
    tpu.vector_store %arg6[%c0_14, %c1_15, %c0_16], %16 {strides = array<i32>} : memref<1x9x32xf32, #tpu.memory_space<vmem>>, vector<1x8x32xf32>,
    return
  }
  func.func @transform_0(%arg0: i32) -> (i32, i32, i32) {
    %c0_i32 = arith.constant 0 : i32
    %c0_i32_0 = arith.constant 0 : i32
    %c0_i32_1 = arith.constant 0 : i32
    return %arg0, %c0_i32, %c0_i32_0 : i32, i32, i32
  }
  func.func @transform_1(%arg0: i32) -> (i32, i32) {
    %c0_i32 = arith.constant 0 : i32
    %c0_i32_0 = arith.constant 0 : i32
    %c0_i32_1 = arith.constant 0 : i32
    return %c0_i32, %c0_i32_0 : i32, i32
  }
  func.func @transform_2(%arg0: i32) -> (i32, i32) {
    %c0_i32 = arith.constant 0 : i32
    %c0_i32_0 = arith.constant 0 : i32
    %c0_i32_1 = arith.constant 0 : i32
    return %c0_i32, %c0_i32_0 : i32, i32
  }
  func.func @transform_3(%arg0: i32) -> (i32, i32) {
    %c0_i32 = arith.constant 0 : i32
    %c0_i32_0 = arith.constant 0 : i32
    %c0_i32_1 = arith.constant 0 : i32
    return %c0_i32, %c0_i32_0 : i32, i32
  }
  func.func @transform_4(%arg0: i32) -> (i32, i32) {
    %c0_i32 = arith.constant 0 : i32
    %c0_i32_0 = arith.constant 0 : i32
    %c0_i32_1 = arith.constant 0 : i32
    return %c0_i32, %c0_i32_0 : i32, i32
  }
  func.func @transform_5(%arg0: i32) -> (i32, i32, i32) {
    %c0_i32 = arith.constant 0 : i32
    %c0_i32_0 = arith.constant 0 : i32
    %c0_i32_1 = arith.constant 0 : i32
    return %arg0, %c0_i32, %c0_i32_0 : i32, i32, i32
  }
}

module attributes {stable_mosaic.version = 11 : i64} {
  func.func @_encoder_final_kernel(%arg0: i32, %arg1: memref<1x9x32xf32, #tpu.memory_space<vmem>>, %arg2: memref<32x96xbf16, #tpu.memory_space<vmem>>, %arg3: memref<1x96xf32, #tpu.memory_space<vmem>>, %arg4: memref<32x32xbf16, #tpu.memory_space<vmem>>, %arg5: memref<1x32xf32, #tpu.memory_space<vmem>>, %arg6: memref<32x64xbf16, #tpu.memory_space<vmem>>, %arg7: memref<1x64xf32, #tpu.memory_space<vmem>>, %arg8: memref<64x32xbf16, #tpu.memory_space<vmem>>, %arg9: memref<1x32xf32, #tpu.memory_space<vmem>>, %arg10: memref<1x32xf32, #tpu.memory_space<vmem>>, %arg11: memref<1x32xf32, #tpu.memory_space<vmem>>, %arg12: memref<1x32xf32, #tpu.memory_space<vmem>>, %arg13: memref<1x32xf32, #tpu.memory_space<vmem>>, %arg14: memref<32x32xbf16, #tpu.memory_space<vmem>>, %arg15: memref<1x32xf32, #tpu.memory_space<vmem>>, %arg16: memref<1x1x32xf32, #tpu.memory_space<vmem>>) attributes {dimension_semantics = [#tpu.dimension_semantics<parallel>], iteration_bounds = array<i64: 2>, scalar_prefetch = 0 : i64, scratch_operands = 0 : i64, tpu.core_type = #tpu.core_type<tc>, window_params = [{transform_indices = @transform_0, window_bounds = array<i64: 1, 9, 32>}, {pipeline_mode = #tpu.pipeline_mode<synchronous>, transform_indices = @transform_1, window_bounds = array<i64: 32, 96>}, {pipeline_mode = #tpu.pipeline_mode<synchronous>, transform_indices = @transform_2, window_bounds = array<i64: 1, 96>}, {pipeline_mode = #tpu.pipeline_mode<synchronous>, transform_indices = @transform_3, window_bounds = array<i64: 32, 32>}, {pipeline_mode = #tpu.pipeline_mode<synchronous>, transform_indices = @transform_4, window_bounds = array<i64: 1, 32>}, {pipeline_mode = #tpu.pipeline_mode<synchronous>, transform_indices = @transform_5, window_bounds = array<i64: 32, 64>}, {pipeline_mode = #tpu.pipeline_mode<synchronous>, transform_indices = @transform_6, window_bounds = array<i64: 1, 64>}, {pipeline_mode = #tpu.pipeline_mode<synchronous>, transform_indices = @transform_7, window_bounds = array<i64: 64, 32>}, {pipeline_mode = #tpu.pipeline_mode<synchronous>, transform_indices = @transform_8, window_bounds = array<i64: 1, 32>}, {pipeline_mode = #tpu.pipeline_mode<synchronous>, transform_indices = @transform_9, window_bounds = array<i64: 1, 32>}, {pipeline_mode = #tpu.pipeline_mode<synchronous>, transform_indices = @transform_10, window_bounds = array<i64: 1, 32>}, {pipeline_mode = #tpu.pipeline_mode<synchronous>, transform_indices = @transform_11, window_bounds = array<i64: 1, 32>}, {pipeline_mode = #tpu.pipeline_mode<synchronous>, transform_indices = @transform_12, window_bounds = array<i64: 1, 32>}, {pipeline_mode = #tpu.pipeline_mode<synchronous>, transform_indices = @transform_13, window_bounds = array<i64: 32, 32>}, {pipeline_mode = #tpu.pipeline_mode<synchronous>, transform_indices = @transform_14, window_bounds = array<i64: 1, 32>}, {transform_indices = @transform_15, window_bounds = array<i64: 1, 1, 32>}]} {
    %c0 = arith.constant 0 : index
    %c0_0 = arith.constant 0 : index
    %c0_1 = arith.constant 0 : index
    %0 = vector.load %arg1[%c0, %c0_0, %c0_1] : memref<1x9x32xf32, #tpu.memory_space<vmem>>, vector<1x9x32xf32>
    %c0_2 = arith.constant 0 : index
    %c0_3 = arith.constant 0 : index
    %1 = vector.load %arg2[%c0_2, %c0_3] : memref<32x96xbf16, #tpu.memory_space<vmem>>, vector<32x96xbf16>
    %c0_4 = arith.constant 0 : index
    %c0_5 = arith.constant 0 : index
    %2 = vector.load %arg3[%c0_4, %c0_5] : memref<1x96xf32, #tpu.memory_space<vmem>>, vector<1x96xf32>
    %c0_6 = arith.constant 0 : index
    %c0_7 = arith.constant 0 : index
    %3 = vector.load %arg4[%c0_6, %c0_7] : memref<32x32xbf16, #tpu.memory_space<vmem>>, vector<32x32xbf16>
    %c0_8 = arith.constant 0 : index
    %c0_9 = arith.constant 0 : index
    %4 = vector.load %arg5[%c0_8, %c0_9] : memref<1x32xf32, #tpu.memory_space<vmem>>, vector<1x32xf32>
    %c0_10 = arith.constant 0 : index
    %c0_11 = arith.constant 0 : index
    %5 = vector.load %arg6[%c0_10, %c0_11] : memref<32x64xbf16, #tpu.memory_space<vmem>>, vector<32x64xbf16>
    %c0_12 = arith.constant 0 : index
    %c0_13 = arith.constant 0 : index
    %6 = vector.load %arg7[%c0_12, %c0_13] : memref<1x64xf32, #tpu.memory_space<vmem>>, vector<1x64xf32>
    %c0_14 = arith.constant 0 : index
    %c0_15 = arith.constant 0 : index
    %7 = vector.load %arg8[%c0_14, %c0_15] : memref<64x32xbf16, #tpu.memory_space<vmem>>, vector<64x32xbf16>
    %c0_16 = arith.constant 0 : index
    %c0_17 = arith.constant 0 : index
    %8 = vector.load %arg9[%c0_16, %c0_17] : memref<1x32xf32, #tpu.memory_space<vmem>>, vector<1x32xf32>
    %c0_18 = arith.constant 0 : index
    %c0_19 = arith.constant 0 : index
    %9 = vector.load %arg10[%c0_18, %c0_19] : memref<1x32xf32, #tpu.memory_space<vmem>>, vector<1x32xf32>
    %c0_20 = arith.constant 0 : index
    %c0_21 = arith.constant 0 : index
    %10 = vector.load %arg11[%c0_20, %c0_21] : memref<1x32xf32, #tpu.memory_space<vmem>>, vector<1x32xf32>
    %c0_22 = arith.constant 0 : index
    %c0_23 = arith.constant 0 : index
    %11 = vector.load %arg12[%c0_22, %c0_23] : memref<1x32xf32, #tpu.memory_space<vmem>>, vector<1x32xf32>
    %c0_24 = arith.constant 0 : index
    %c0_25 = arith.constant 0 : index
    %12 = vector.load %arg13[%c0_24, %c0_25] : memref<1x32xf32, #tpu.memory_space<vmem>>, vector<1x32xf32>
    %13 = vector.shape_cast %0 : vector<1x9x32xf32> to vector<9x32xf32>
    %14 = arith.truncf %13 : vector<9x32xf32> to vector<9x32xbf16>
    %cst = arith.constant dense<0.000000e+00> : vector<9x96xf32>
    %15 = tpu.matmul %14, %1, %cst {dimension_numbers = #tpu.dot_dimension_numbers<[1], [0], [0], [1], [0, 0, 1, 1], [], []>} : vector<9x32xbf16>, vector<32x96xbf16>, vector<9x96xf32> -> vector<9x96xf32>
    %16 = vector.broadcast %2 : vector<1x96xf32> to vector<9x96xf32>
    %17 = arith.addf %15, %16 : vector<9x96xf32>
    %18 = vector.extract_strided_slice %17 {offsets = [0, 0], sizes = [9, 32], strides = [1, 1]} : vector<9x96xf32> to vector<9x32xf32>
    %19 = vector.shape_cast %18 : vector<9x32xf32> to vector<1x9x4x8xf32>
    %20 = vector.extract_strided_slice %17 {offsets = [0, 32], sizes = [9, 32], strides = [1, 1]} : vector<9x96xf32> to vector<9x32xf32>
    %21 = vector.shape_cast %20 : vector<9x32xf32> to vector<1x9x4x8xf32>
    %22 = vector.extract_strided_slice %17 {offsets = [0, 64], sizes = [9, 32], strides = [1, 1]} : vector<9x96xf32> to vector<9x32xf32>
    %23 = vector.shape_cast %22 : vector<9x32xf32> to vector<1x9x4x8xf32>
    %24 = tpu.transpose %19, [0, 2, 1, 3] : vector<1x9x4x8xf32> -> vector<1x4x9x8xf32>
    %25 = vector.shape_cast %24 : vector<1x4x9x8xf32> to vector<4x9x8xf32>
    %cst_26 = arith.constant 0.353553385 : f32
    %26 = vector.broadcast %cst_26 : f32 to vector<4x9x8xf32>
    %27 = arith.mulf %25, %26 : vector<4x9x8xf32>
    %28 = tpu.transpose %21, [0, 2, 1, 3] : vector<1x9x4x8xf32> -> vector<1x4x9x8xf32>
    %29 = vector.shape_cast %28 : vector<1x4x9x8xf32> to vector<4x9x8xf32>
    %30 = tpu.transpose %23, [0, 2, 1, 3] : vector<1x9x4x8xf32> -> vector<1x4x9x8xf32>
    %31 = vector.shape_cast %30 : vector<1x4x9x8xf32> to vector<4x9x8xf32>
    %32 = vector.extract_strided_slice %27 {offsets = [0, 0, 0], sizes = [4, 1, 8], strides = [1, 1, 1]} : vector<4x9x8xf32> to vector<4x1x8xf32>
    %33 = arith.truncf %32 : vector<4x1x8xf32> to vector<4x1x8xbf16>
    %34 = arith.truncf %29 : vector<4x9x8xf32> to vector<4x9x8xbf16>
    "tpu.trace_start"() <{level = 10 : i32, message = "bqd,bkd->bqk"}> : () -> ()
    %cst_27 = arith.constant dense<0.000000e+00> : vector<4x1x9xf32>
    %35 = tpu.matmul %33, %34, %cst_27 {dimension_numbers = #tpu.dot_dimension_numbers<[2], [2], [1], [1], [0, 0, 0, 1, 1, 1], [0], [0]>} : vector<4x1x8xbf16>, vector<4x9x8xbf16>, vector<4x1x9xf32> -> vector<4x1x9xf32>
    "tpu.trace_stop"() : () -> ()
    %cst_28 = arith.constant dense<0xFF800000> : vector<4x1xf32>
    %36 = vector.multi_reduction <maximumf>, %35, %cst_28 [2] : vector<4x1x9xf32> to vector<4x1xf32>
    %37 = vector.shape_cast %36 : vector<4x1xf32> to vector<4x1x1xf32>
    %38 = vector.broadcast %37 : vector<4x1x1xf32> to vector<4x1x9xf32>
    %39 = arith.subf %35, %38 : vector<4x1x9xf32>
    %40 = math.exp %39 : vector<4x1x9xf32>
    %cst_29 = arith.constant dense<0.000000e+00> : vector<4x1xf32>
    %41 = vector.multi_reduction <add>, %40, %cst_29 [2] : vector<4x1x9xf32> to vector<4x1xf32>
    %42 = vector.shape_cast %41 : vector<4x1xf32> to vector<4x1x1xf32>
    %43 = arith.truncf %40 : vector<4x1x9xf32> to vector<4x1x9xbf16>
    %44 = arith.truncf %31 : vector<4x9x8xf32> to vector<4x9x8xbf16>
    "tpu.trace_start"() <{level = 10 : i32, message = "bqk,bkd->bqd"}> : () -> ()
    %cst_30 = arith.constant dense<0.000000e+00> : vector<4x1x8xf32>
    %45 = tpu.matmul %43, %44, %cst_30 {dimension_numbers = #tpu.dot_dimension_numbers<[2], [1], [1], [2], [0, 0, 0, 1, 1, 2], [0], [0]>} : vector<4x1x9xbf16>, vector<4x9x8xbf16>, vector<4x1x8xf32> -> vector<4x1x8xf32>
    "tpu.trace_stop"() : () -> ()
    %46 = tpu.reciprocal %42 {approx = true} : vector<4x1x1xf32> -> vector<4x1x1xf32>
    %47 = vector.broadcast %46 : vector<4x1x1xf32> to vector<4x1x8xf32>
    %48 = arith.mulf %45, %47 : vector<4x1x8xf32>
    %49 = vector.shape_cast %48 : vector<4x1x8xf32> to vector<1x4x1x8xf32>
    %50 = tpu.transpose %49, [0, 2, 1, 3] : vector<1x4x1x8xf32> -> vector<1x1x4x8xf32>
    %51 = vector.shape_cast %50 : vector<1x1x4x8xf32> to vector<1x32xf32>
    %52 = arith.truncf %51 : vector<1x32xf32> to vector<1x32xbf16>
    %cst_31 = arith.constant dense<0.000000e+00> : vector<1x32xf32>
    %53 = tpu.matmul %52, %3, %cst_31 {dimension_numbers = #tpu.dot_dimension_numbers<[1], [0], [0], [1], [0, 0, 1, 1], [], []>} : vector<1x32xbf16>, vector<32x32xbf16>, vector<1x32xf32> -> vector<1x32xf32>
    %54 = arith.addf %53, %4 : vector<1x32xf32>
    %55 = vector.extract_strided_slice %0 {offsets = [0, 0, 0], sizes = [1, 1, 32], strides = [1, 1, 1]} : vector<1x9x32xf32> to vector<1x1x32xf32>
    %56 = vector.shape_cast %55 : vector<1x1x32xf32> to vector<1x32xf32>
    %57 = arith.addf %56, %54 : vector<1x32xf32>
    %cst_32 = arith.constant dense<0.000000e+00> : vector<1xf32>
    %58 = vector.multi_reduction <add>, %57, %cst_32 [1] : vector<1x32xf32> to vector<1xf32>
    %59 = vector.shape_cast %58 : vector<1xf32> to vector<1x1xf32>
    %cst_33 = arith.constant 3.200000e+01 : f32
    %60 = vector.broadcast %cst_33 : f32 to vector<1x1xf32>
    %61 = arith.divf %59, %60 : vector<1x1xf32>
    %62 = vector.broadcast %61 : vector<1x1xf32> to vector<1x32xf32>
    %63 = arith.subf %57, %62 : vector<1x32xf32>
    %64 = arith.mulf %63, %63 : vector<1x32xf32>
    %cst_34 = arith.constant dense<0.000000e+00> : vector<1xf32>
    %65 = vector.multi_reduction <add>, %64, %cst_34 [1] : vector<1x32xf32> to vector<1xf32>
    %66 = vector.shape_cast %65 : vector<1xf32> to vector<1x1xf32>
    %cst_35 = arith.constant 3.200000e+01 : f32
    %67 = vector.broadcast %cst_35 : f32 to vector<1x1xf32>
    %68 = arith.divf %66, %67 : vector<1x1xf32>
    %69 = vector.broadcast %61 : vector<1x1xf32> to vector<1x32xf32>
    %70 = arith.subf %57, %69 : vector<1x32xf32>
    %cst_36 = arith.constant 9.99999974E-6 : f32
    %71 = vector.broadcast %cst_36 : f32 to vector<1x1xf32>
    %72 = arith.addf %68, %71 : vector<1x1xf32>
    %73 = math.rsqrt %72 : vector<1x1xf32>
    %74 = vector.broadcast %73 : vector<1x1xf32> to vector<1x32xf32>
    %75 = arith.mulf %70, %74 : vector<1x32xf32>
    %76 = arith.mulf %75, %9 : vector<1x32xf32>
    %77 = arith.addf %76, %10 : vector<1x32xf32>
    %78 = arith.truncf %77 : vector<1x32xf32> to vector<1x32xbf16>
    %cst_37 = arith.constant dense<0.000000e+00> : vector<1x64xf32>
    %79 = tpu.matmul %78, %5, %cst_37 {dimension_numbers = #tpu.dot_dimension_numbers<[1], [0], [0], [1], [0, 0, 1, 1], [], []>} : vector<1x32xbf16>, vector<32x64xbf16>, vector<1x64xf32> -> vector<1x64xf32>
    %80 = arith.addf %79, %6 : vector<1x64xf32>
    %cst_38 = arith.constant 5.000000e-01 : f32
    %81 = vector.broadcast %cst_38 : f32 to vector<1x64xf32>
    %82 = arith.mulf %81, %80 : vector<1x64xf32>
    %cst_39 = arith.constant 0.707106769 : f32
    %83 = vector.broadcast %cst_39 : f32 to vector<1x64xf32>
    %84 = arith.mulf %80, %83 : vector<1x64xf32>
    %85 = math.absf %84 : vector<1x64xf32>
    %cst_40 = arith.constant 0.327591091 : f32
    %86 = vector.broadcast %cst_40 : f32 to vector<1x64xf32>
    %87 = arith.mulf %86, %85 : vector<1x64xf32>
    %cst_41 = arith.constant 1.000000e+00 : f32
    %88 = vector.broadcast %cst_41 : f32 to vector<1x64xf32>
    %89 = arith.addf %88, %87 : vector<1x64xf32>
    %cst_42 = arith.constant 1.000000e+00 : f32
    %90 = vector.broadcast %cst_42 : f32 to vector<1x64xf32>
    %91 = arith.divf %90, %89 : vector<1x64xf32>
    %cst_43 = arith.constant 1.06140542 : f32
    %92 = vector.broadcast %cst_43 : f32 to vector<1x64xf32>
    %93 = arith.mulf %92, %91 : vector<1x64xf32>
    %cst_44 = arith.constant -1.45315206 : f32
    %94 = vector.broadcast %cst_44 : f32 to vector<1x64xf32>
    %95 = arith.addf %93, %94 : vector<1x64xf32>
    %96 = arith.mulf %95, %91 : vector<1x64xf32>
    %cst_45 = arith.constant 1.42141378 : f32
    %97 = vector.broadcast %cst_45 : f32 to vector<1x64xf32>
    %98 = arith.addf %96, %97 : vector<1x64xf32>
    %99 = arith.mulf %98, %91 : vector<1x64xf32>
    %cst_46 = arith.constant -0.284496725 : f32
    %100 = vector.broadcast %cst_46 : f32 to vector<1x64xf32>
    %101 = arith.addf %99, %100 : vector<1x64xf32>
    %102 = arith.mulf %101, %91 : vector<1x64xf32>
    %cst_47 = arith.constant 0.254829586 : f32
    %103 = vector.broadcast %cst_47 : f32 to vector<1x64xf32>
    %104 = arith.addf %102, %103 : vector<1x64xf32>
    %105 = arith.mulf %104, %91 : vector<1x64xf32>
    %cst_48 = arith.constant 0.000000e+00 : f32
    %106 = vector.broadcast %cst_48 : f32 to vector<1x64xf32>
    %107 = arith.subf %106, %85 : vector<1x64xf32>
    %108 = arith.mulf %107, %85 : vector<1x64xf32>
    %109 = math.exp %108 : vector<1x64xf32>
    %110 = arith.mulf %105, %109 : vector<1x64xf32>
    %cst_49 = arith.constant 1.000000e+00 : f32
    %111 = vector.broadcast %cst_49 : f32 to vector<1x64xf32>
    %112 = arith.subf %111, %110 : vector<1x64xf32>
    %cst_50 = arith.constant 0.000000e+00 : f32
    %113 = vector.broadcast %cst_50 : f32 to vector<1x64xf32>
    %114 = arith.cmpf olt, %84, %113 : vector<1x64xf32>
    %cst_51 = arith.constant 0.000000e+00 : f32
    %115 = vector.broadcast %cst_51 : f32 to vector<1x64xf32>
    %116 = arith.subf %115, %112 : vector<1x64xf32>
    %117 = arith.select %114, %116, %112 : vector<1x64xi1>, vector<1x64xf32>
    %cst_52 = arith.constant 1.000000e+00 : f32
    %118 = vector.broadcast %cst_52 : f32 to vector<1x64xf32>
    %119 = arith.addf %118, %117 : vector<1x64xf32>
    %120 = arith.mulf %82, %119 : vector<1x64xf32>
    %121 = arith.truncf %120 : vector<1x64xf32> to vector<1x64xbf16>
    %cst_53 = arith.constant dense<0.000000e+00> : vector<1x32xf32>
    %122 = tpu.matmul %121, %7, %cst_53 {dimension_numbers = #tpu.dot_dimension_numbers<[1], [0], [0], [1], [0, 0, 1, 1], [], []>} : vector<1x64xbf16>, vector<64x32xbf16>, vector<1x32xf32> -> vector<1x32xf32>
    %123 = arith.addf %122, %8 : vector<1x32xf32>
    %124 = arith.addf %77, %123 : vector<1x32xf32>
    %cst_54 = arith.constant dense<0.000000e+00> : vector<1xf32>
    %125 = vector.multi_reduction <add>, %124, %cst_54 [1] : vector<1x32xf32> to vector<1xf32>
    %126 = vector.shape_cast %125 : vector<1xf32> to vector<1x1xf32>
    %cst_55 = arith.constant 3.200000e+01 : f32
    %127 = vector.broadcast %cst_55 : f32 to vector<1x1xf32>
    %128 = arith.divf %126, %127 : vector<1x1xf32>
    %129 = vector.broadcast %128 : vector<1x1xf32> to vector<1x32xf32>
    %130 = arith.subf %124, %129 : vector<1x32xf32>
    %131 = arith.mulf %130, %130 : vector<1x32xf32>
    %cst_56 = arith.constant dense<0.000000e+00> : vector<1xf32>
    %132 = vector.multi_reduction <add>, %131, %cst_56 [1] : vector<1x32xf32> to vector<1xf32>
    %133 = vector.shape_cast %132 : vector<1xf32> to vector<1x1xf32>
    %cst_57 = arith.constant 3.200000e+01 : f32
    %134 = vector.broadcast %cst_57 : f32 to vector<1x1xf32>
    %135 = arith.divf %133, %134 : vector<1x1xf32>
    %136 = vector.broadcast %128 : vector<1x1xf32> to vector<1x32xf32>
    %137 = arith.subf %124, %136 : vector<1x32xf32>
    %cst_58 = arith.constant 9.99999974E-6 : f32
    %138 = vector.broadcast %cst_58 : f32 to vector<1x1xf32>
    %139 = arith.addf %135, %138 : vector<1x1xf32>
    %140 = math.rsqrt %139 : vector<1x1xf32>
    %141 = vector.broadcast %140 : vector<1x1xf32> to vector<1x32xf32>
    %142 = arith.mulf %137, %141 : vector<1x32xf32>
    %143 = arith.mulf %142, %11 : vector<1x32xf32>
    %144 = arith.addf %143, %12 : vector<1x32xf32>
    %145 = arith.truncf %144 : vector<1x32xf32> to vector<1x32xbf16>
    %c0_59 = arith.constant 0 : index
    %c0_60 = arith.constant 0 : index
    %146 = vector.load %arg14[%c0_59, %c0_60] : memref<32x32xbf16, #tpu.memory_space<vmem>>, vector<32x32xbf16>
    %cst_61 = arith.constant dense<0.000000e+00> : vector<1x32xf32>
    %147 = tpu.matmul %145, %146, %cst_61 {dimension_numbers = #tpu.dot_dimension_numbers<[1], [0], [0], [1], [0, 0, 1, 1], [], []>} : vector<1x32xbf16>, vector<32x32xbf16>, vector<1x32xf32> -> vector<1x32xf32>
    %c0_62 = arith.constant 0 : index
    %c0_63 = arith.constant 0 : index
    %148 = vector.load %arg15[%c0_62, %c0_63] : memref<1x32xf32, #tpu.memory_space<vmem>>, vector<1x32xf32>
    %149 = arith.addf %147, %148 : vector<1x32xf32>
    %150 = vector.shape_cast %149 : vector<1x32xf32> to vector<1x1x32xf32>
    %c0_64 = arith.constant 0 : index
    %c0_65 = arith.constant 0 : index
    %c0_66 = arith.constant 0 : index
    %151 = vector.load %arg16[%c0_64, %c0_65, %c0_66] : memref<1x1x32xf32, #tpu.memory_space<vmem>>, vector<1x1x32xf32>
    tpu.vector_store %arg16[%c0_64, %c0_65, %c0_66], %150 {strides = array<i32>} : memref<1x1x32xf32, #tpu.memory_space<vmem>>, vector<1x1x32xf32>,
    return
  }
  func.func @transform_0(%arg0: i32) -> (i32, i32, i32) {
    %c0_i32 = arith.constant 0 : i32
    %c0_i32_0 = arith.constant 0 : i32
    %c0_i32_1 = arith.constant 0 : i32
    return %arg0, %c0_i32, %c0_i32_0 : i32, i32, i32
  }
  func.func @transform_1(%arg0: i32) -> (i32, i32) {
    %c0_i32 = arith.constant 0 : i32
    %c0_i32_0 = arith.constant 0 : i32
    %c0_i32_1 = arith.constant 0 : i32
    return %c0_i32, %c0_i32_0 : i32, i32
  }
  func.func @transform_2(%arg0: i32) -> (i32, i32) {
    %c0_i32 = arith.constant 0 : i32
    %c0_i32_0 = arith.constant 0 : i32
    %c0_i32_1 = arith.constant 0 : i32
    return %c0_i32, %c0_i32_0 : i32, i32
  }
  func.func @transform_3(%arg0: i32) -> (i32, i32) {
    %c0_i32 = arith.constant 0 : i32
    %c0_i32_0 = arith.constant 0 : i32
    %c0_i32_1 = arith.constant 0 : i32
    return %c0_i32, %c0_i32_0 : i32, i32
  }
  func.func @transform_4(%arg0: i32) -> (i32, i32) {
    %c0_i32 = arith.constant 0 : i32
    %c0_i32_0 = arith.constant 0 : i32
    %c0_i32_1 = arith.constant 0 : i32
    return %c0_i32, %c0_i32_0 : i32, i32
  }
  func.func @transform_5(%arg0: i32) -> (i32, i32) {
    %c0_i32 = arith.constant 0 : i32
    %c0_i32_0 = arith.constant 0 : i32
    %c0_i32_1 = arith.constant 0 : i32
    return %c0_i32, %c0_i32_0 : i32, i32
  }
  func.func @transform_6(%arg0: i32) -> (i32, i32) {
    %c0_i32 = arith.constant 0 : i32
    %c0_i32_0 = arith.constant 0 : i32
    %c0_i32_1 = arith.constant 0 : i32
    return %c0_i32, %c0_i32_0 : i32, i32
  }
  func.func @transform_7(%arg0: i32) -> (i32, i32) {
    %c0_i32 = arith.constant 0 : i32
    %c0_i32_0 = arith.constant 0 : i32
    %c0_i32_1 = arith.constant 0 : i32
    return %c0_i32, %c0_i32_0 : i32, i32
  }
  func.func @transform_8(%arg0: i32) -> (i32, i32) {
    %c0_i32 = arith.constant 0 : i32
    %c0_i32_0 = arith.constant 0 : i32
    %c0_i32_1 = arith.constant 0 : i32
    return %c0_i32, %c0_i32_0 : i32, i32
  }
  func.func @transform_9(%arg0: i32) -> (i32, i32) {
    %c0_i32 = arith.constant 0 : i32
    %c0_i32_0 = arith.constant 0 : i32
    %c0_i32_1 = arith.constant 0 : i32
    return %c0_i32, %c0_i32_0 : i32, i32
  }
  func.func @transform_10(%arg0: i32) -> (i32, i32) {
    %c0_i32 = arith.constant 0 : i32
    %c0_i32_0 = arith.constant 0 : i32
    %c0_i32_1 = arith.constant 0 : i32
    return %c0_i32, %c0_i32_0 : i32, i32
  }
  func.func @transform_11(%arg0: i32) -> (i32, i32) {
    %c0_i32 = arith.constant 0 : i32
    %c0_i32_0 = arith.constant 0 : i32
    %c0_i32_1 = arith.constant 0 : i32
    return %c0_i32, %c0_i32_0 : i32, i32
  }
  func.func @transform_12(%arg0: i32) -> (i32, i32) {
    %c0_i32 = arith.constant 0 : i32
    %c0_i32_0 = arith.constant 0 : i32
    %c0_i32_1 = arith.constant 0 : i32
    return %c0_i32, %c0_i32_0 : i32, i32
  }
  func.func @transform_13(%arg0: i32) -> (i32, i32) {
    %c0_i32 = arith.constant 0 : i32
    %c0_i32_0 = arith.constant 0 : i32
    %c0_i32_1 = arith.constant 0 : i32
    return %c0_i32, %c0_i32_0 : i32, i32
  }
  func.func @transform_14(%arg0: i32) -> (i32, i32) {
    %c0_i32 = arith.constant 0 : i32
    %c0_i32_0 = arith.constant 0 : i32
    %c0_i32_1 = arith.constant 0 : i32
    return %c0_i32, %c0_i32_0 : i32, i32
  }
  func.func @transform_15(%arg0: i32) -> (i32, i32, i32) {
    %c0_i32 = arith.constant 0 : i32
    %c0_i32_0 = arith.constant 0 : i32
    %c0_i32_1 = arith.constant 0 : i32
    return %arg0, %c0_i32, %c0_i32_0 : i32, i32, i32
  }
}

module attributes {stable_mosaic.version = 11 : i64} {
  func.func @_encoder_layer_kernel(%arg0: i32, %arg1: memref<1x9x32xf32, #tpu.memory_space<vmem>>, %arg2: memref<32x96xbf16, #tpu.memory_space<vmem>>, %arg3: memref<1x96xf32, #tpu.memory_space<vmem>>, %arg4: memref<32x32xbf16, #tpu.memory_space<vmem>>, %arg5: memref<1x32xf32, #tpu.memory_space<vmem>>, %arg6: memref<32x64xbf16, #tpu.memory_space<vmem>>, %arg7: memref<1x64xf32, #tpu.memory_space<vmem>>, %arg8: memref<64x32xbf16, #tpu.memory_space<vmem>>, %arg9: memref<1x32xf32, #tpu.memory_space<vmem>>, %arg10: memref<1x32xf32, #tpu.memory_space<vmem>>, %arg11: memref<1x32xf32, #tpu.memory_space<vmem>>, %arg12: memref<1x32xf32, #tpu.memory_space<vmem>>, %arg13: memref<1x32xf32, #tpu.memory_space<vmem>>, %arg14: memref<1x9x32xf32, #tpu.memory_space<vmem>>) attributes {dimension_semantics = [#tpu.dimension_semantics<parallel>], iteration_bounds = array<i64: 2>, scalar_prefetch = 0 : i64, scratch_operands = 0 : i64, tpu.core_type = #tpu.core_type<tc>, window_params = [{transform_indices = @transform_0, window_bounds = array<i64: 1, 9, 32>}, {pipeline_mode = #tpu.pipeline_mode<synchronous>, transform_indices = @transform_1, window_bounds = array<i64: 32, 96>}, {pipeline_mode = #tpu.pipeline_mode<synchronous>, transform_indices = @transform_2, window_bounds = array<i64: 1, 96>}, {pipeline_mode = #tpu.pipeline_mode<synchronous>, transform_indices = @transform_3, window_bounds = array<i64: 32, 32>}, {pipeline_mode = #tpu.pipeline_mode<synchronous>, transform_indices = @transform_4, window_bounds = array<i64: 1, 32>}, {pipeline_mode = #tpu.pipeline_mode<synchronous>, transform_indices = @transform_5, window_bounds = array<i64: 32, 64>}, {pipeline_mode = #tpu.pipeline_mode<synchronous>, transform_indices = @transform_6, window_bounds = array<i64: 1, 64>}, {pipeline_mode = #tpu.pipeline_mode<synchronous>, transform_indices = @transform_7, window_bounds = array<i64: 64, 32>}, {pipeline_mode = #tpu.pipeline_mode<synchronous>, transform_indices = @transform_8, window_bounds = array<i64: 1, 32>}, {pipeline_mode = #tpu.pipeline_mode<synchronous>, transform_indices = @transform_9, window_bounds = array<i64: 1, 32>}, {pipeline_mode = #tpu.pipeline_mode<synchronous>, transform_indices = @transform_10, window_bounds = array<i64: 1, 32>}, {pipeline_mode = #tpu.pipeline_mode<synchronous>, transform_indices = @transform_11, window_bounds = array<i64: 1, 32>}, {pipeline_mode = #tpu.pipeline_mode<synchronous>, transform_indices = @transform_12, window_bounds = array<i64: 1, 32>}, {transform_indices = @transform_13, window_bounds = array<i64: 1, 9, 32>}]} {
    %c0 = arith.constant 0 : index
    %c0_0 = arith.constant 0 : index
    %c0_1 = arith.constant 0 : index
    %0 = vector.load %arg1[%c0, %c0_0, %c0_1] : memref<1x9x32xf32, #tpu.memory_space<vmem>>, vector<1x9x32xf32>
    %c0_2 = arith.constant 0 : index
    %c0_3 = arith.constant 0 : index
    %1 = vector.load %arg2[%c0_2, %c0_3] : memref<32x96xbf16, #tpu.memory_space<vmem>>, vector<32x96xbf16>
    %c0_4 = arith.constant 0 : index
    %c0_5 = arith.constant 0 : index
    %2 = vector.load %arg3[%c0_4, %c0_5] : memref<1x96xf32, #tpu.memory_space<vmem>>, vector<1x96xf32>
    %c0_6 = arith.constant 0 : index
    %c0_7 = arith.constant 0 : index
    %3 = vector.load %arg4[%c0_6, %c0_7] : memref<32x32xbf16, #tpu.memory_space<vmem>>, vector<32x32xbf16>
    %c0_8 = arith.constant 0 : index
    %c0_9 = arith.constant 0 : index
    %4 = vector.load %arg5[%c0_8, %c0_9] : memref<1x32xf32, #tpu.memory_space<vmem>>, vector<1x32xf32>
    %c0_10 = arith.constant 0 : index
    %c0_11 = arith.constant 0 : index
    %5 = vector.load %arg6[%c0_10, %c0_11] : memref<32x64xbf16, #tpu.memory_space<vmem>>, vector<32x64xbf16>
    %c0_12 = arith.constant 0 : index
    %c0_13 = arith.constant 0 : index
    %6 = vector.load %arg7[%c0_12, %c0_13] : memref<1x64xf32, #tpu.memory_space<vmem>>, vector<1x64xf32>
    %c0_14 = arith.constant 0 : index
    %c0_15 = arith.constant 0 : index
    %7 = vector.load %arg8[%c0_14, %c0_15] : memref<64x32xbf16, #tpu.memory_space<vmem>>, vector<64x32xbf16>
    %c0_16 = arith.constant 0 : index
    %c0_17 = arith.constant 0 : index
    %8 = vector.load %arg9[%c0_16, %c0_17] : memref<1x32xf32, #tpu.memory_space<vmem>>, vector<1x32xf32>
    %c0_18 = arith.constant 0 : index
    %c0_19 = arith.constant 0 : index
    %9 = vector.load %arg10[%c0_18, %c0_19] : memref<1x32xf32, #tpu.memory_space<vmem>>, vector<1x32xf32>
    %c0_20 = arith.constant 0 : index
    %c0_21 = arith.constant 0 : index
    %10 = vector.load %arg11[%c0_20, %c0_21] : memref<1x32xf32, #tpu.memory_space<vmem>>, vector<1x32xf32>
    %c0_22 = arith.constant 0 : index
    %c0_23 = arith.constant 0 : index
    %11 = vector.load %arg12[%c0_22, %c0_23] : memref<1x32xf32, #tpu.memory_space<vmem>>, vector<1x32xf32>
    %c0_24 = arith.constant 0 : index
    %c0_25 = arith.constant 0 : index
    %12 = vector.load %arg13[%c0_24, %c0_25] : memref<1x32xf32, #tpu.memory_space<vmem>>, vector<1x32xf32>
    %13 = vector.shape_cast %0 : vector<1x9x32xf32> to vector<9x32xf32>
    %14 = arith.truncf %13 : vector<9x32xf32> to vector<9x32xbf16>
    %cst = arith.constant dense<0.000000e+00> : vector<9x96xf32>
    %15 = tpu.matmul %14, %1, %cst {dimension_numbers = #tpu.dot_dimension_numbers<[1], [0], [0], [1], [0, 0, 1, 1], [], []>} : vector<9x32xbf16>, vector<32x96xbf16>, vector<9x96xf32> -> vector<9x96xf32>
    %16 = vector.broadcast %2 : vector<1x96xf32> to vector<9x96xf32>
    %17 = arith.addf %15, %16 : vector<9x96xf32>
    %18 = vector.extract_strided_slice %17 {offsets = [0, 0], sizes = [9, 32], strides = [1, 1]} : vector<9x96xf32> to vector<9x32xf32>
    %19 = vector.shape_cast %18 : vector<9x32xf32> to vector<1x9x4x8xf32>
    %20 = vector.extract_strided_slice %17 {offsets = [0, 32], sizes = [9, 32], strides = [1, 1]} : vector<9x96xf32> to vector<9x32xf32>
    %21 = vector.shape_cast %20 : vector<9x32xf32> to vector<1x9x4x8xf32>
    %22 = vector.extract_strided_slice %17 {offsets = [0, 64], sizes = [9, 32], strides = [1, 1]} : vector<9x96xf32> to vector<9x32xf32>
    %23 = vector.shape_cast %22 : vector<9x32xf32> to vector<1x9x4x8xf32>
    %24 = tpu.transpose %19, [0, 2, 1, 3] : vector<1x9x4x8xf32> -> vector<1x4x9x8xf32>
    %25 = vector.shape_cast %24 : vector<1x4x9x8xf32> to vector<4x9x8xf32>
    %cst_26 = arith.constant 0.353553385 : f32
    %26 = vector.broadcast %cst_26 : f32 to vector<4x9x8xf32>
    %27 = arith.mulf %25, %26 : vector<4x9x8xf32>
    %28 = tpu.transpose %21, [0, 2, 1, 3] : vector<1x9x4x8xf32> -> vector<1x4x9x8xf32>
    %29 = vector.shape_cast %28 : vector<1x4x9x8xf32> to vector<4x9x8xf32>
    %30 = tpu.transpose %23, [0, 2, 1, 3] : vector<1x9x4x8xf32> -> vector<1x4x9x8xf32>
    %31 = vector.shape_cast %30 : vector<1x4x9x8xf32> to vector<4x9x8xf32>
    %32 = arith.truncf %27 : vector<4x9x8xf32> to vector<4x9x8xbf16>
    %33 = arith.truncf %29 : vector<4x9x8xf32> to vector<4x9x8xbf16>
    "tpu.trace_start"() <{level = 10 : i32, message = "bqd,bkd->bqk"}> : () -> ()
    %cst_27 = arith.constant dense<0.000000e+00> : vector<4x9x9xf32>
    %34 = tpu.matmul %32, %33, %cst_27 {dimension_numbers = #tpu.dot_dimension_numbers<[2], [2], [1], [1], [0, 0, 0, 1, 1, 1], [0], [0]>} : vector<4x9x8xbf16>, vector<4x9x8xbf16>, vector<4x9x9xf32> -> vector<4x9x9xf32>
    "tpu.trace_stop"() : () -> ()
    %cst_28 = arith.constant dense<0xFF800000> : vector<4x9xf32>
    %35 = vector.multi_reduction <maximumf>, %34, %cst_28 [2] : vector<4x9x9xf32> to vector<4x9xf32>
    %36 = vector.shape_cast %35 : vector<4x9xf32> to vector<4x9x1xf32>
    %37 = vector.broadcast %36 : vector<4x9x1xf32> to vector<4x9x9xf32>
    %38 = arith.subf %34, %37 : vector<4x9x9xf32>
    %39 = math.exp %38 : vector<4x9x9xf32>
    %cst_29 = arith.constant dense<0.000000e+00> : vector<4x9xf32>
    %40 = vector.multi_reduction <add>, %39, %cst_29 [2] : vector<4x9x9xf32> to vector<4x9xf32>
    %41 = vector.shape_cast %40 : vector<4x9xf32> to vector<4x9x1xf32>
    %42 = arith.truncf %39 : vector<4x9x9xf32> to vector<4x9x9xbf16>
    %43 = arith.truncf %31 : vector<4x9x8xf32> to vector<4x9x8xbf16>
    "tpu.trace_start"() <{level = 10 : i32, message = "bqk,bkd->bqd"}> : () -> ()
    %cst_30 = arith.constant dense<0.000000e+00> : vector<4x9x8xf32>
    %44 = tpu.matmul %42, %43, %cst_30 {dimension_numbers = #tpu.dot_dimension_numbers<[2], [1], [1], [2], [0, 0, 0, 1, 1, 2], [0], [0]>} : vector<4x9x9xbf16>, vector<4x9x8xbf16>, vector<4x9x8xf32> -> vector<4x9x8xf32>
    "tpu.trace_stop"() : () -> ()
    %45 = tpu.reciprocal %41 {approx = true} : vector<4x9x1xf32> -> vector<4x9x1xf32>
    %46 = vector.broadcast %45 : vector<4x9x1xf32> to vector<4x9x8xf32>
    %47 = arith.mulf %44, %46 : vector<4x9x8xf32>
    %48 = vector.shape_cast %47 : vector<4x9x8xf32> to vector<1x4x9x8xf32>
    %49 = tpu.transpose %48, [0, 2, 1, 3] : vector<1x4x9x8xf32> -> vector<1x9x4x8xf32>
    %50 = vector.shape_cast %49 : vector<1x9x4x8xf32> to vector<9x32xf32>
    %51 = arith.truncf %50 : vector<9x32xf32> to vector<9x32xbf16>
    %cst_31 = arith.constant dense<0.000000e+00> : vector<9x32xf32>
    %52 = tpu.matmul %51, %3, %cst_31 {dimension_numbers = #tpu.dot_dimension_numbers<[1], [0], [0], [1], [0, 0, 1, 1], [], []>} : vector<9x32xbf16>, vector<32x32xbf16>, vector<9x32xf32> -> vector<9x32xf32>
    %53 = vector.broadcast %4 : vector<1x32xf32> to vector<9x32xf32>
    %54 = arith.addf %52, %53 : vector<9x32xf32>
    %55 = arith.addf %13, %54 : vector<9x32xf32>
    %cst_32 = arith.constant dense<0.000000e+00> : vector<9xf32>
    %56 = vector.multi_reduction <add>, %55, %cst_32 [1] : vector<9x32xf32> to vector<9xf32>
    %57 = vector.shape_cast %56 : vector<9xf32> to vector<9x1xf32>
    %cst_33 = arith.constant 3.200000e+01 : f32
    %58 = vector.broadcast %cst_33 : f32 to vector<9x1xf32>
    %59 = arith.divf %57, %58 : vector<9x1xf32>
    %60 = vector.broadcast %59 : vector<9x1xf32> to vector<9x32xf32>
    %61 = arith.subf %55, %60 : vector<9x32xf32>
    %62 = arith.mulf %61, %61 : vector<9x32xf32>
    %cst_34 = arith.constant dense<0.000000e+00> : vector<9xf32>
    %63 = vector.multi_reduction <add>, %62, %cst_34 [1] : vector<9x32xf32> to vector<9xf32>
    %64 = vector.shape_cast %63 : vector<9xf32> to vector<9x1xf32>
    %cst_35 = arith.constant 3.200000e+01 : f32
    %65 = vector.broadcast %cst_35 : f32 to vector<9x1xf32>
    %66 = arith.divf %64, %65 : vector<9x1xf32>
    %67 = vector.broadcast %59 : vector<9x1xf32> to vector<9x32xf32>
    %68 = arith.subf %55, %67 : vector<9x32xf32>
    %cst_36 = arith.constant 9.99999974E-6 : f32
    %69 = vector.broadcast %cst_36 : f32 to vector<9x1xf32>
    %70 = arith.addf %66, %69 : vector<9x1xf32>
    %71 = math.rsqrt %70 : vector<9x1xf32>
    %72 = vector.broadcast %71 : vector<9x1xf32> to vector<9x32xf32>
    %73 = arith.mulf %68, %72 : vector<9x32xf32>
    %74 = vector.broadcast %9 : vector<1x32xf32> to vector<9x32xf32>
    %75 = arith.mulf %73, %74 : vector<9x32xf32>
    %76 = vector.broadcast %10 : vector<1x32xf32> to vector<9x32xf32>
    %77 = arith.addf %75, %76 : vector<9x32xf32>
    %78 = arith.truncf %77 : vector<9x32xf32> to vector<9x32xbf16>
    %cst_37 = arith.constant dense<0.000000e+00> : vector<9x64xf32>
    %79 = tpu.matmul %78, %5, %cst_37 {dimension_numbers = #tpu.dot_dimension_numbers<[1], [0], [0], [1], [0, 0, 1, 1], [], []>} : vector<9x32xbf16>, vector<32x64xbf16>, vector<9x64xf32> -> vector<9x64xf32>
    %80 = vector.broadcast %6 : vector<1x64xf32> to vector<9x64xf32>
    %81 = arith.addf %79, %80 : vector<9x64xf32>
    %cst_38 = arith.constant 5.000000e-01 : f32
    %82 = vector.broadcast %cst_38 : f32 to vector<9x64xf32>
    %83 = arith.mulf %82, %81 : vector<9x64xf32>
    %cst_39 = arith.constant 0.707106769 : f32
    %84 = vector.broadcast %cst_39 : f32 to vector<9x64xf32>
    %85 = arith.mulf %81, %84 : vector<9x64xf32>
    %86 = math.absf %85 : vector<9x64xf32>
    %cst_40 = arith.constant 0.327591091 : f32
    %87 = vector.broadcast %cst_40 : f32 to vector<9x64xf32>
    %88 = arith.mulf %87, %86 : vector<9x64xf32>
    %cst_41 = arith.constant 1.000000e+00 : f32
    %89 = vector.broadcast %cst_41 : f32 to vector<9x64xf32>
    %90 = arith.addf %89, %88 : vector<9x64xf32>
    %cst_42 = arith.constant 1.000000e+00 : f32
    %91 = vector.broadcast %cst_42 : f32 to vector<9x64xf32>
    %92 = arith.divf %91, %90 : vector<9x64xf32>
    %cst_43 = arith.constant 1.06140542 : f32
    %93 = vector.broadcast %cst_43 : f32 to vector<9x64xf32>
    %94 = arith.mulf %93, %92 : vector<9x64xf32>
    %cst_44 = arith.constant -1.45315206 : f32
    %95 = vector.broadcast %cst_44 : f32 to vector<9x64xf32>
    %96 = arith.addf %94, %95 : vector<9x64xf32>
    %97 = arith.mulf %96, %92 : vector<9x64xf32>
    %cst_45 = arith.constant 1.42141378 : f32
    %98 = vector.broadcast %cst_45 : f32 to vector<9x64xf32>
    %99 = arith.addf %97, %98 : vector<9x64xf32>
    %100 = arith.mulf %99, %92 : vector<9x64xf32>
    %cst_46 = arith.constant -0.284496725 : f32
    %101 = vector.broadcast %cst_46 : f32 to vector<9x64xf32>
    %102 = arith.addf %100, %101 : vector<9x64xf32>
    %103 = arith.mulf %102, %92 : vector<9x64xf32>
    %cst_47 = arith.constant 0.254829586 : f32
    %104 = vector.broadcast %cst_47 : f32 to vector<9x64xf32>
    %105 = arith.addf %103, %104 : vector<9x64xf32>
    %106 = arith.mulf %105, %92 : vector<9x64xf32>
    %cst_48 = arith.constant 0.000000e+00 : f32
    %107 = vector.broadcast %cst_48 : f32 to vector<9x64xf32>
    %108 = arith.subf %107, %86 : vector<9x64xf32>
    %109 = arith.mulf %108, %86 : vector<9x64xf32>
    %110 = math.exp %109 : vector<9x64xf32>
    %111 = arith.mulf %106, %110 : vector<9x64xf32>
    %cst_49 = arith.constant 1.000000e+00 : f32
    %112 = vector.broadcast %cst_49 : f32 to vector<9x64xf32>
    %113 = arith.subf %112, %111 : vector<9x64xf32>
    %cst_50 = arith.constant 0.000000e+00 : f32
    %114 = vector.broadcast %cst_50 : f32 to vector<9x64xf32>
    %115 = arith.cmpf olt, %85, %114 : vector<9x64xf32>
    %cst_51 = arith.constant 0.000000e+00 : f32
    %116 = vector.broadcast %cst_51 : f32 to vector<9x64xf32>
    %117 = arith.subf %116, %113 : vector<9x64xf32>
    %118 = arith.select %115, %117, %113 : vector<9x64xi1>, vector<9x64xf32>
    %cst_52 = arith.constant 1.000000e+00 : f32
    %119 = vector.broadcast %cst_52 : f32 to vector<9x64xf32>
    %120 = arith.addf %119, %118 : vector<9x64xf32>
    %121 = arith.mulf %83, %120 : vector<9x64xf32>
    %122 = arith.truncf %121 : vector<9x64xf32> to vector<9x64xbf16>
    %cst_53 = arith.constant dense<0.000000e+00> : vector<9x32xf32>
    %123 = tpu.matmul %122, %7, %cst_53 {dimension_numbers = #tpu.dot_dimension_numbers<[1], [0], [0], [1], [0, 0, 1, 1], [], []>} : vector<9x64xbf16>, vector<64x32xbf16>, vector<9x32xf32> -> vector<9x32xf32>
    %124 = vector.broadcast %8 : vector<1x32xf32> to vector<9x32xf32>
    %125 = arith.addf %123, %124 : vector<9x32xf32>
    %126 = arith.addf %77, %125 : vector<9x32xf32>
    %cst_54 = arith.constant dense<0.000000e+00> : vector<9xf32>
    %127 = vector.multi_reduction <add>, %126, %cst_54 [1] : vector<9x32xf32> to vector<9xf32>
    %128 = vector.shape_cast %127 : vector<9xf32> to vector<9x1xf32>
    %cst_55 = arith.constant 3.200000e+01 : f32
    %129 = vector.broadcast %cst_55 : f32 to vector<9x1xf32>
    %130 = arith.divf %128, %129 : vector<9x1xf32>
    %131 = vector.broadcast %130 : vector<9x1xf32> to vector<9x32xf32>
    %132 = arith.subf %126, %131 : vector<9x32xf32>
    %133 = arith.mulf %132, %132 : vector<9x32xf32>
    %cst_56 = arith.constant dense<0.000000e+00> : vector<9xf32>
    %134 = vector.multi_reduction <add>, %133, %cst_56 [1] : vector<9x32xf32> to vector<9xf32>
    %135 = vector.shape_cast %134 : vector<9xf32> to vector<9x1xf32>
    %cst_57 = arith.constant 3.200000e+01 : f32
    %136 = vector.broadcast %cst_57 : f32 to vector<9x1xf32>
    %137 = arith.divf %135, %136 : vector<9x1xf32>
    %138 = vector.broadcast %130 : vector<9x1xf32> to vector<9x32xf32>
    %139 = arith.subf %126, %138 : vector<9x32xf32>
    %cst_58 = arith.constant 9.99999974E-6 : f32
    %140 = vector.broadcast %cst_58 : f32 to vector<9x1xf32>
    %141 = arith.addf %137, %140 : vector<9x1xf32>
    %142 = math.rsqrt %141 : vector<9x1xf32>
    %143 = vector.broadcast %142 : vector<9x1xf32> to vector<9x32xf32>
    %144 = arith.mulf %139, %143 : vector<9x32xf32>
    %145 = vector.broadcast %11 : vector<1x32xf32> to vector<9x32xf32>
    %146 = arith.mulf %144, %145 : vector<9x32xf32>
    %147 = vector.broadcast %12 : vector<1x32xf32> to vector<9x32xf32>
    %148 = arith.addf %146, %147 : vector<9x32xf32>
    %149 = vector.shape_cast %148 : vector<9x32xf32> to vector<1x9x32xf32>
    %c0_59 = arith.constant 0 : index
    %c0_60 = arith.constant 0 : index
    %c0_61 = arith.constant 0 : index
    %150 = vector.load %arg14[%c0_59, %c0_60, %c0_61] : memref<1x9x32xf32, #tpu.memory_space<vmem>>, vector<1x9x32xf32>
    tpu.vector_store %arg14[%c0_59, %c0_60, %c0_61], %149 {strides = array<i32>} : memref<1x9x32xf32, #tpu.memory_space<vmem>>, vector<1x9x32xf32>,
    return
  }
  func.func @transform_0(%arg0: i32) -> (i32, i32, i32) {
    %c0_i32 = arith.constant 0 : i32
    %c0_i32_0 = arith.constant 0 : i32
    %c0_i32_1 = arith.constant 0 : i32
    return %arg0, %c0_i32, %c0_i32_0 : i32, i32, i32
  }
  func.func @transform_1(%arg0: i32) -> (i32, i32) {
    %c0_i32 = arith.constant 0 : i32
    %c0_i32_0 = arith.constant 0 : i32
    %c0_i32_1 = arith.constant 0 : i32
    return %c0_i32, %c0_i32_0 : i32, i32
  }
  func.func @transform_2(%arg0: i32) -> (i32, i32) {
    %c0_i32 = arith.constant 0 : i32
    %c0_i32_0 = arith.constant 0 : i32
    %c0_i32_1 = arith.constant 0 : i32
    return %c0_i32, %c0_i32_0 : i32, i32
  }
  func.func @transform_3(%arg0: i32) -> (i32, i32) {
    %c0_i32 = arith.constant 0 : i32
    %c0_i32_0 = arith.constant 0 : i32
    %c0_i32_1 = arith.constant 0 : i32
    return %c0_i32, %c0_i32_0 : i32, i32
  }
  func.func @transform_4(%arg0: i32) -> (i32, i32) {
    %c0_i32 = arith.constant 0 : i32
    %c0_i32_0 = arith.constant 0 : i32
    %c0_i32_1 = arith.constant 0 : i32
    return %c0_i32, %c0_i32_0 : i32, i32
  }
  func.func @transform_5(%arg0: i32) -> (i32, i32) {
    %c0_i32 = arith.constant 0 : i32
    %c0_i32_0 = arith.constant 0 : i32
    %c0_i32_1 = arith.constant 0 : i32
    return %c0_i32, %c0_i32_0 : i32, i32
  }
  func.func @transform_6(%arg0: i32) -> (i32, i32) {
    %c0_i32 = arith.constant 0 : i32
    %c0_i32_0 = arith.constant 0 : i32
    %c0_i32_1 = arith.constant 0 : i32
    return %c0_i32, %c0_i32_0 : i32, i32
  }
  func.func @transform_7(%arg0: i32) -> (i32, i32) {
    %c0_i32 = arith.constant 0 : i32
    %c0_i32_0 = arith.constant 0 : i32
    %c0_i32_1 = arith.constant 0 : i32
    return %c0_i32, %c0_i32_0 : i32, i32
  }
  func.func @transform_8(%arg0: i32) -> (i32, i32) {
    %c0_i32 = arith.constant 0 : i32
    %c0_i32_0 = arith.constant 0 : i32
    %c0_i32_1 = arith.constant 0 : i32
    return %c0_i32, %c0_i32_0 : i32, i32
  }
  func.func @transform_9(%arg0: i32) -> (i32, i32) {
    %c0_i32 = arith.constant 0 : i32
    %c0_i32_0 = arith.constant 0 : i32
    %c0_i32_1 = arith.constant 0 : i32
    return %c0_i32, %c0_i32_0 : i32, i32
  }
  func.func @transform_10(%arg0: i32) -> (i32, i32) {
    %c0_i32 = arith.constant 0 : i32
    %c0_i32_0 = arith.constant 0 : i32
    %c0_i32_1 = arith.constant 0 : i32
    return %c0_i32, %c0_i32_0 : i32, i32
  }
  func.func @transform_11(%arg0: i32) -> (i32, i32) {
    %c0_i32 = arith.constant 0 : i32
    %c0_i32_0 = arith.constant 0 : i32
    %c0_i32_1 = arith.constant 0 : i32
    return %c0_i32, %c0_i32_0 : i32, i32
  }
  func.func @transform_12(%arg0: i32) -> (i32, i32) {
    %c0_i32 = arith.constant 0 : i32
    %c0_i32_0 = arith.constant 0 : i32
    %c0_i32_1 = arith.constant 0 : i32
    return %c0_i32, %c0_i32_0 : i32, i32
  }
  func.func @transform_13(%arg0: i32) -> (i32, i32, i32) {
    %c0_i32 = arith.constant 0 : i32
    %c0_i32_0 = arith.constant 0 : i32
    %c0_i32_1 = arith.constant 0 : i32
    return %arg0, %c0_i32, %c0_i32_0 : i32, i32, i32
  }
}

</mosaic_0001>

<llo_original>
// kernel: pallas_forward.3
$region0: #{pallas_forward.3}
  #allocation0 [shape = 'u32[]', space=smem, size = 0x4, offset = 0x4, fixed_abs, tag = 'smem constant byte address 0x4 - core index']
  #allocation1 [shape = 'u32[144,128]{1,0:T(1,128)}', space=vmem, size = 0x12000, scoped, tag = 'internal scratch']
  %s0 = inlined_call_operand.vmem [shape: f32[2,8,330], index: 0, kind: input, shape index: {}]
  %s1 = inlined_call_operand.vmem [shape: bf16[330,32], index: 1, kind: input, shape index: {}]
  %s2 = inlined_call_operand.vmem [shape: f32[1,32], index: 2, kind: input, shape index: {}]
  %s3 = inlined_call_operand.vmem [shape: f32[1,32], index: 3, kind: input, shape index: {}]
  %s4 = inlined_call_operand.vmem [shape: f32[9,32], index: 4, kind: input, shape index: {}]
  %s5 = inlined_call_operand.vmem [shape: f32[2,9,32], index: 5, kind: output, shape index: {}]
  %s6 = sld [smem:[#allocation0]]
  $region53: #{pallas_forward.3} parent=0
    _
  %s8 = ssub.s32 1, %s6
  %s9 = scalar_select 0, %s8, %s6
  loop: start=0, step=1, limit=4
  $region2: #{pallas_forward.3} parent=0 // loop_pre_header
    _
  $region3: #{pallas_forward.3} parent=0 // loop_header
    %s11 = sphi 0, %s15
    %p12 = scmp.ge.s32.totalorder %s11, 4
    %s21 = sphi 0, %s23
    %s24 = sphi 0, %s21
    %s25 = sphi 0, %s24
    %s41 = sphi 0, %s25
    %s45 = sphi 0, %s45
    %s47 = sphi 0, %s45
    %s48 = sphi 0, %s47
    %s62 = sphi 0, %s48
    %s66 = sphi 0, %s66
    %s68 = sphi 0, %s66
    %s69 = sphi 0, %s68
    %s83 = sphi 0, %s69
    %s87 = sphi 0, %s87
    %s89 = sphi 0, %s87
    %s90 = sphi 0, %s89
    %s104 = sphi 0, %s90
    %s108 = sphi 0, %s108
    %s110 = sphi 0, %s108
    %s111 = sphi 0, %s110
    %s125 = sphi 0, %s111
    %s131 = sphi 0, %s133
    %s134 = sphi 0, %s131
    %s135 = sphi 0, %s134
    %s151 = sphi 0, %s135
  $region4: #{pallas_forward.3} parent=0 // loop_header_branch
    %14 = sbr.rel (%p12) target = $region8
  $region5: #{pallas_forward.3} parent=0 // loop_body
    %s16 = ssub.s32 %s11, 1
    %s17 = ssub.s32 %s11, 2
    %s18 = sadd.s32 %s11, 1
    %s19 = ssub.s32 %s11, %s18
    %p20 = scmp.eq.s32.totalorder %s19, 0
    %s22 = sadd.s32 %s21, 1
    %s23 = scalar_select %p20, %s21, %s22
    %p26 = pneg %p20
    %p27 = scmp.eq.s32.totalorder %s11, 1
    %p28 = por %p26, %p27
    %p29 = scmp.ne.s32.totalorder %s21, %s24
    %p30 = scmp.eq.s32.totalorder %s11, 0
    %p31 = por %p29, %p30
    %p32 = scmp.ne.s32.totalorder %s21, %s24
    %p33 = scmp.eq.s32.totalorder %s16, 1
    %p34 = por %p32, %p33
    %p35 = scmp.ne.s32.totalorder %s24, %s25
    %p36 = scmp.eq.s32.totalorder %s16, 0
    %p37 = por %p35, %p36
    %p38 = scmp.ne.s32.totalorder %s24, %s25
    %p39 = scmp.eq.s32.totalorder %s17, 1
    %p40 = por %p38, %p39
    %p42 = scmp.ne.s32.totalorder %s25, %s41
    %p43 = scmp.eq.s32.totalorder %s17, 0
    %p44 = por %p42, %p43
    %s46 = sadd.s32 %s45, 1
    %p49 = scmp.eq.s32.totalorder %s11, 1
    %p50 = scmp.ne.s32.totalorder %s45, %s47
    %p51 = scmp.eq.s32.totalorder %s11, 0
    %p52 = por %p50, %p51
    %p53 = scmp.ne.s32.totalorder %s45, %s47
    %p54 = scmp.eq.s32.totalorder %s16, 1
    %p55 = por %p53, %p54
    %p56 = scmp.ne.s32.totalorder %s47, %s48
    %p57 = scmp.eq.s32.totalorder %s16, 0
    %p58 = por %p56, %p57
    %p59 = scmp.ne.s32.totalorder %s47, %s48
    %p60 = scmp.eq.s32.totalorder %s17, 1
    %p61 = por %p59, %p60
    %p63 = scmp.ne.s32.totalorder %s48, %s62
    %p64 = scmp.eq.s32.totalorder %s17, 0
    %p65 = por %p63, %p64
    %s67 = sadd.s32 %s66, 1
    %p70 = scmp.eq.s32.totalorder %s11, 1
    %p71 = scmp.ne.s32.totalorder %s66, %s68
    %p72 = scmp.eq.s32.totalorder %s11, 0
    %p73 = por %p71, %p72
    %p74 = scmp.ne.s32.totalorder %s66, %s68
    %p75 = scmp.eq.s32.totalorder %s16, 1
    %p76 = por %p74, %p75
    %p77 = scmp.ne.s32.totalorder %s68, %s69
    %p78 = scmp.eq.s32.totalorder %s16, 0
    %p79 = por %p77, %p78
    %p80 = scmp.ne.s32.totalorder %s68, %s69
    %p81 = scmp.eq.s32.totalorder %s17, 1
    %p82 = por %p80, %p81
    %p84 = scmp.ne.s32.totalorder %s69, %s83
    %p85 = scmp.eq.s32.totalorder %s17, 0
    %p86 = por %p84, %p85
    %s88 = sadd.s32 %s87, 1
    %p91 = scmp.eq.s32.totalorder %s11, 1
    %p92 = scmp.ne.s32.totalorder %s87, %s89
    %p93 = scmp.eq.s32.totalorder %s11, 0
    %p94 = por %p92, %p93
    %p95 = scmp.ne.s32.totalorder %s87, %s89
    %p96 = scmp.eq.s32.totalorder %s16, 1
    %p97 = por %p95, %p96
    %p98 = scmp.ne.s32.totalorder %s89, %s90
    %p99 = scmp.eq.s32.totalorder %s16, 0
    %p100 = por %p98, %p99
    %p101 = scmp.ne.s32.totalorder %s89, %s90
    %p102 = scmp.eq.s32.totalorder %s17, 1
    %p103 = por %p101, %p102
    %p105 = scmp.ne.s32.totalorder %s90, %s104
    %p106 = scmp.eq.s32.totalorder %s17, 0
    %p107 = por %p105, %p106
    %s109 = sadd.s32 %s108, 1
    %p112 = scmp.eq.s32.totalorder %s11, 1
    %p113 = scmp.ne.s32.totalorder %s108, %s110
    %p114 = scmp.eq.s32.totalorder %s11, 0
    %p115 = por %p113, %p114
    %p116 = scmp.ne.s32.totalorder %s108, %s110
    %p117 = scmp.eq.s32.totalorder %s16, 1
    %p118 = por %p116, %p117
    %p119 = scmp.ne.s32.totalorder %s110, %s111
    %p120 = scmp.eq.s32.totalorder %s16, 0
    %p121 = por %p119, %p120
    %p122 = scmp.ne.s32.totalorder %s110, %s111
    %p123 = scmp.eq.s32.totalorder %s17, 1
    %p124 = por %p122, %p123
    %p126 = scmp.ne.s32.totalorder %s111, %s125
    %p127 = scmp.eq.s32.totalorder %s17, 0
    %p128 = por %p126, %p127
    %s129 = ssub.s32 %s11, %s18
    %p130 = scmp.eq.s32.totalorder %s129, 0
    %s132 = sadd.s32 %s131, 1
    %s133 = scalar_select %p130, %s131, %s132
    %p136 = pneg %p130
    %p137 = scmp.eq.s32.totalorder %s11, 1
    %p138 = por %p136, %p137
    %p139 = scmp.ne.s32.totalorder %s131, %s134
    %p140 = scmp.eq.s32.totalorder %s11, 0
    %p141 = por %p139, %p140
    %p142 = scmp.ne.s32.totalorder %s131, %s134
    %p143 = scmp.eq.s32.totalorder %s16, 1
    %p144 = por %p142, %p143
    %p145 = scmp.ne.s32.totalorder %s134, %s135
    %p146 = scmp.eq.s32.totalorder %s16, 0
    %p147 = por %p145, %p146
    %p148 = scmp.ne.s32.totalorder %s134, %s135
    %p149 = scmp.eq.s32.totalorder %s17, 1
    %p150 = por %p148, %p149
    %p152 = scmp.ne.s32.totalorder %s135, %s151
    %p153 = scmp.eq.s32.totalorder %s17, 0
    %p154 = por %p152, %p153
    %p155 = scmp.le.s32.totalorder 1, %s11
    %p156 = scmp.lt.s32.totalorder %s11, 3
    %p157 = pnand %p155, %p156
    %p158 = pneg %p157
    // Predicated region
    $region9: #{pallas_forward.3} parent=5 // pred_check
      _
    $region10: #{pallas_forward.3} parent=5 // pred_check_branch
      %160 = sbr.rel (%p157) target = $region12
    $region11: #{pallas_forward.3} parent=5 // pred_region
      %s161 = ssub.s32 %s11, 1
      // Predicated region
      $region13: #{pallas_forward.3} parent=11 // pred_check
        %p162 = pneg %p58
      $region14: #{pallas_forward.3} parent=11 // pred_check_branch
        %164 = sbr.rel (%p162) target = $region16
      $region15: #{pallas_forward.3} parent=11 // pred_region
        _
      $region16: #{pallas_forward.3} parent=11 // pred_fallthru
        _
      // Predicated region
      $region17: #{pallas_forward.3} parent=11 // pred_check
        %p165 = pneg %p79
      $region18: #{pallas_forward.3} parent=11 // pred_check_branch
        %167 = sbr.rel (%p165) target = $region20
      $region19: #{pallas_forward.3} parent=11 // pred_region
        _
      $region20: #{pallas_forward.3} parent=11 // pred_fallthru
        _
      // Predicated region
      $region21: #{pallas_forward.3} parent=11 // pred_check
        %p168 = pneg %p100
      $region22: #{pallas_forward.3} parent=11 // pred_check_branch
        %170 = sbr.rel (%p168) target = $region24
      $region23: #{pallas_forward.3} parent=11 // pred_region
        _
      $region24: #{pallas_forward.3} parent=11 // pred_fallthru
        _
      // Predicated region
      $region25: #{pallas_forward.3} parent=11 // pred_check
        %p171 = pneg %p121
      $region26: #{pallas_forward.3} parent=11 // pred_check_branch
        %173 = sbr.rel (%p171) target = $region28
      $region27: #{pallas_forward.3} parent=11 // pred_region
        _
      $region28: #{pallas_forward.3} parent=11 // pred_fallthru
        _
    $region12: #{pallas_forward.3} parent=5 // pred_fallthru
      _
    %p174 = scmp.lt.s32.totalorder %s11, 2
    // Predicated region
    $region29: #{pallas_forward.3} parent=5 // pred_check
      %p175 = pneg %p174
    $region30: #{pallas_forward.3} parent=5 // pred_check_branch
      %177 = sbr.rel (%p175) target = $region32
    $region31: #{pallas_forward.3} parent=5 // pred_region
      // Predicated region
      $region33: #{pallas_forward.3} parent=31 // pred_check
        %p178 = pneg %p31
      $region34: #{pallas_forward.3} parent=31 // pred_check_branch
        %180 = sbr.rel (%p178) target = $region36
      $region35: #{pallas_forward.3} parent=31 // pred_region
        %p181 = scmp.lt.s32.totalorder %s11, 1
        %s182 = scalar_select %p181, %s11, 1
        %s183 = smul.addr %s182, 3
        %s184 = smul.addr %s183, 8
        %s185 = scalar_lea.vmem %s0, %s184
      $region36: #{pallas_forward.3} parent=31 // pred_fallthru
        _
    $region32: #{pallas_forward.3} parent=5 // pred_fallthru
      _
    %p186 = scmp.le.s32.totalorder 1, %s11
    %p187 = scmp.lt.s32.totalorder %s11, 3
    %p188 = pnand %p186, %p187
    %p189 = pneg %p188
    // Predicated region
    $region37: #{pallas_forward.3} parent=5 // pred_check
      _
    $region38: #{pallas_forward.3} parent=5 // pred_check_branch
      %191 = sbr.rel (%p188) target = $region40
    $region39: #{pallas_forward.3} parent=5 // pred_region
      %s192 = ssub.s32 %s11, 1
      %p193 = scmp.lt.s32.totalorder %s16, 1
      %s194 = scalar_select %p193, %s16, 1
      %s195 = smul.addr %s194, 3
      %s196 = smul.addr %s195, 8
      %s197 = scalar_lea.vmem %s0, %s196
      %p198 = pneg %p37
      %p199 = pneg %p34
      %p200 = pneg %p58
      %p201 = pneg %p55
      %p202 = pneg %p79
      %p203 = pneg %p76
      %p204 = pneg %p100
      %p205 = pneg %p97
      %p206 = pneg %p121
      %p207 = pneg %p118
      %p208 = pneg %p147
      %p209 = pneg %p144
      %p210 = scmp.lt.s32.totalorder %s16, 1
      %s211 = scalar_select %p210, %s16, 1
      %s212 = smul.addr %s211, 2
      %s213 = smul.addr %s212, 8
      %s214 = scalar_lea.vmem %s5, %s213
      %p215 = scmp.lt.s32.totalorder %s16, 1
      %s216 = scalar_select %p215, %s16, 1
      %s217 = smul.addr %s216, 3
      %s218 = smul.addr %s217, 8
      %s219 = scalar_lea.vmem %s0, %s218
      %p220 = scmp.lt.s32.totalorder %s16, 1
      %s221 = scalar_select %p220, %s16, 1
      %s222 = smul.addr %s221, 2
      %s223 = smul.addr %s222, 8
      %s224 = scalar_lea.vmem %s5, %s223
      %v226 = vld [vmem:[%s219] sm:$0xff]
      %v227 = vld [vmem:[%s219 + $0x8] sm:$0xff]
      %v228 = vld [vmem:[%s219 + $0x10] sm:$0xff]
      %v229 = vpack.c.bf16 %v226, %v226
      %v230 = vpack.c.bf16 %v227, %v227
      %v231 = vpack.c.bf16 %v228, %v228
      %v232 = vld [vmem:[%s1] sm:$0xf]
      %v233 = vld [vmem:[%s1 + $0x4] sm:$0xf]
      %v234 = vld [vmem:[%s1 + $0x8] sm:$0xf]
      %v235 = vld [vmem:[%s1 + $0xc] sm:$0xf]
      %v236 = vld [vmem:[%s1 + $0x10] sm:$0xf]
      %v237 = vld [vmem:[%s1 + $0x14] sm:$0xf]
      %v238 = vld [vmem:[%s1 + $0x18] sm:$0xf]
      %v239 = vld [vmem:[%s1 + $0x1c] sm:$0xf]
      %v240 = vld [vmem:[%s1 + $0x20] sm:$0xf]
      %v241 = vld [vmem:[%s1 + $0x24] sm:$0xf]
      %v242 = vld [vmem:[%s1 + $0x28] sm:$0xf]
      %v243 = vld [vmem:[%s1 + $0x2c] sm:$0xf]
      %v244 = vld [vmem:[%s1 + $0x30] sm:$0xf]
      %v245 = vld [vmem:[%s1 + $0x34] sm:$0xf]
      %v246 = vld [vmem:[%s1 + $0x38] sm:$0xf]
      %v247 = vld [vmem:[%s1 + $0x3c] sm:$0xf]
      %v248 = vld [vmem:[%s1 + $0x40] sm:$0xf]
      %v249 = vld [vmem:[%s1 + $0x44] sm:$0xf]
      %v250 = vld [vmem:[%s1 + $0x48] sm:$0xf]
      %v251 = vld [vmem:[%s1 + $0x4c] sm:$0xf]
      %v252 = vld [vmem:[%s1 + $0x50] sm:$0xf]
      %v253 = vld [vmem:[%s1 + $0x54] sm:$0xf]
      %v254 = vld [vmem:[%s1 + $0x58] sm:$0xf]
      %v255 = vld [vmem:[%s1 + $0x5c] sm:$0xf]
      %v256 = vld [vmem:[%s1 + $0x60] sm:$0xf]
      %v257 = vld [vmem:[%s1 + $0x64] sm:$0xf]
      %v258 = vld [vmem:[%s1 + $0x68] sm:$0xf]
      %v259 = vld [vmem:[%s1 + $0x6c] sm:$0xf]
      %v260 = vld [vmem:[%s1 + $0x70] sm:$0xf]
      %v261 = vld [vmem:[%s1 + $0x74] sm:$0xf]
      %v262 = vld [vmem:[%s1 + $0x78] sm:$0xf]
      %v263 = vld [vmem:[%s1 + $0x7c] sm:$0xf]
      %v264 = vld [vmem:[%s1 + $0x80] sm:$0xf]
      %v265 = vld [vmem:[%s1 + $0x84] sm:$0xf]
      %v266 = vld [vmem:[%s1 + $0x88] sm:$0xf]
      %v267 = vld [vmem:[%s1 + $0x8c] sm:$0xf]
      %v268 = vld [vmem:[%s1 + $0x90] sm:$0xf]
      %v269 = vld [vmem:[%s1 + $0x94] sm:$0xf]
      %v270 = vld [vmem:[%s1 + $0x98] sm:$0xf]
      %v271 = vld [vmem:[%s1 + $0x9c] sm:$0xf]
      %v272 = vld [vmem:[%s1 + $0xa0] sm:$0xf]
      %v273 = vld [vmem:[%s1 + $0xa4] sm:$0x1]
      %v274 = vld [vmem:[%s2] sm:$0x1]
      %v276 = vlaneseq
      %v277 = vshrl.u32 %v276, 7
      %v278 = vsub.s32 0, %v277
      %v279 = vrot.slane %v274, %v278
      %v323 = vunpack.c.l.b16 %v232
      %v324 = vunpack.c.l.b16 %v233
      %v325 = vunpack.c.l.b16 %v234
      %v326 = vunpack.c.l.b16 %v235
      %v327 = vunpack.c.l.b16 %v236
      %v328 = vunpack.c.l.b16 %v237
      %v329 = vunpack.c.l.b16 %v238
      %v330 = vunpack.c.l.b16 %v239
      %v331 = vunpack.c.l.b16 %v240
      %v332 = vunpack.c.l.b16 %v241
      %v333 = vunpack.c.l.b16 %v242
      %v334 = vunpack.c.l.b16 %v243
      %v335 = vunpack.c.l.b16 %v244
      %v336 = vunpack.c.l.b16 %v245
      %v337 = vunpack.c.l.b16 %v246
      %v338 = vunpack.c.l.b16 %v247
      %v339 = vunpack.c.l.b16 %v248
      %v340 = vunpack.c.l.b16 %v249
      %v341 = vunpack.c.l.b16 %v250
      %v342 = vunpack.c.l.b16 %v251
      %v343 = vunpack.c.l.b16 %v252
      %v344 = vunpack.c.l.b16 %v253
      %v345 = vunpack.c.l.b16 %v254
      %v346 = vunpack.c.l.b16 %v255
      %v347 = vunpack.c.l.b16 %v256
      %v348 = vunpack.c.l.b16 %v257
      %v349 = vunpack.c.l.b16 %v258
      %v350 = vunpack.c.l.b16 %v259
      %v351 = vunpack.c.l.b16 %v260
      %v352 = vunpack.c.l.b16 %v261
      %v353 = vunpack.c.l.b16 %v262
      %v354 = vunpack.c.l.b16 %v263
      %v355 = vunpack.c.l.b16 %v264
      %v356 = vunpack.c.l.b16 %v265
      %v357 = vunpack.c.l.b16 %v266
      %v358 = vunpack.c.l.b16 %v267
      %v359 = vunpack.c.l.b16 %v268
      %v360 = vunpack.c.l.b16 %v269
      %v361 = vunpack.c.l.b16 %v270
      %v362 = vunpack.c.l.b16 %v271
      %v363 = vunpack.c.l.b16 %v272
      %v364 = vunpack.c.l.b16 %v273
      %v365 = vpack.c.b16 %v324, %v323
      %v366 = vpack.c.b16 %v326, %v325
      %v367 = vpack.c.b16 %v328, %v327
      %v368 = vpack.c.b16 %v330, %v329
      %v369 = vpack.c.b16 %v332, %v331
      %v370 = vpack.c.b16 %v334, %v333
      %v371 = vpack.c.b16 %v336, %v335
      %v372 = vpack.c.b16 %v338, %v337
      %v373 = vpack.c.b16 %v340, %v339
      %v374 = vpack.c.b16 %v342, %v341
      %v375 = vpack.c.b16 %v344, %v343
      %v376 = vpack.c.b16 %v346, %v345
      %v377 = vpack.c.b16 %v348, %v347
      %v378 = vpack.c.b16 %v350, %v349
      %v379 = vpack.c.b16 %v352, %v351
      %v380 = vpack.c.b16 %v354, %v353
      %v381 = vpack.c.b16 %v356, %v355
      %v382 = vpack.c.b16 %v358, %v357
      %v383 = vpack.c.b16 %v360, %v359
      %v384 = vpack.c.b16 %v362, %v361
      %v385 = vpack.c.b16 %v364, %v363
      %vm406 = vcmask 605184
      %v408 = vsel %vm406, %v231, 0
      %vm410 = vcmask 1044480
      %v412 = vsel %vm410, %v385, 0
      %414 = vmatprep.subr.bf16.mxu0 0
      %415 = vmatpush1.bf16.msra.mxu0 %v365
      %416 = vmatprep.subr.bf16.mxu0 0
      %417 = vmatpush1.bf16.msra.mxu0 %v366
      %418 = vmatprep.subr.bf16.mxu0 0
      %419 = vmatpush1.bf16.msra.mxu0 %v367
      %420 = vmatprep.subr.bf16.mxu0 0
      %421 = vmatpush1.bf16.msra.mxu0 %v368
      %422 = vmatprep.subr.bf16.mxu0 0
      %423 = vmatpush1.bf16.msra.mxu0 %v369
      %424 = vmatprep.subr.bf16.mxu0 0
      %425 = vmatpush1.bf16.msra.mxu0 %v370
      %426 = vmatprep.subr.bf16.mxu0 0
      %427 = vmatpush1.bf16.msra.mxu0 %v371
      %428 = vmatprep.subr.bf16.mxu0 0
      %429 = vmatpush1.bf16.msra.mxu0 %v372
      %430 = vmatprep.subr.bf16.mxu0 0
      %431 = vmatpush1.bf16.msra.mxu0 %v373
      %432 = vmatprep.subr.bf16.mxu0 0
      %433 = vmatpush1.bf16.msra.mxu0 %v374
      %434 = vmatprep.subr.bf16.mxu0 0
      %435 = vmatpush1.bf16.msra.mxu0 %v375
      %436 = vmatprep.subr.bf16.mxu0 0
      %437 = vmatpush1.bf16.msra.mxu0 %v376
      %438 = vmatprep.subr.bf16.mxu0 0
      %439 = vmatpush1.bf16.msra.mxu0 %v377
      %440 = vmatprep.subr.bf16.mxu0 0
      %441 = vmatpush1.bf16.msra.mxu0 %v378
      %442 = vmatprep.subr.bf16.mxu0 0
      %443 = vmatpush1.bf16.msra.mxu0 %v379
      %444 = vmatprep.subr.bf16.mxu0 0
      %445 = vmatpush1.bf16.msra.mxu0 %v380
      %446 = vmatprep.mubr.bf16.mxu0 %v230
      %447 = vmatmul.mubr.bf16.gmra.mrb[0].mxu0 %v229
      %v448 = vpop.f32.mrb[0].mxu0
      %v449 = vadd.f32 %v279, %v448
      %v450 = vpop.f32.mrb[0].mxu0
      %v451 = vpop.f32.mrb[0].mxu0
      %v452 = vpop.f32.mrb[0].mxu0
      %453 = vdwg.mxu0
      %454 = vmatprep.subr.bf16.mxu0 0
      %455 = vmatpush1.bf16.msra.mxu0 %v381
      %456 = vmatprep.subr.bf16.mxu0 0
      %457 = vmatpush1.bf16.msra.mxu0 %v382
      %458 = vmatprep.subr.bf16.mxu0 0
      %459 = vmatpush1.bf16.msra.mxu0 %v383
      %460 = vmatprep.subr.bf16.mxu0 0
      %461 = vmatpush1.bf16.msra.mxu0 %v384
      %462 = vmatprep.subr.bf16.mxu0 0
      %463 = vmatpush1.bf16.msra.mxu0 %v412
      %464 = vmatprep.subr.bf16.mxu0 0
      %465 = vmatpush1.bf16.msra.mxu0 0
      %466 = vmatprep.subr.bf16.mxu0 0
      %467 = vmatpush1.bf16.msra.mxu0 0
      %468 = vmatprep.subr.bf16.mxu0 0
      %469 = vmatpush1.bf16.msra.mxu0 0
      %470 = vmatprep.subr.bf16.mxu0 0
      %471 = vmatpush1.bf16.msra.mxu0 0
      %472 = vmatprep.subr.bf16.mxu0 0
      %473 = vmatpush1.bf16.msra.mxu0 0
      %474 = vmatprep.subr.bf16.mxu0 0
      %475 = vmatpush1.bf16.msra.mxu0 0
      %476 = vmatprep.subr.bf16.mxu0 0
      %477 = vmatpush1.bf16.msra.mxu0 0
      %478 = vmatprep.subr.bf16.mxu0 0
      %479 = vmatpush1.bf16.msra.mxu0 0
      %480 = vmatprep.subr.bf16.mxu0 0
      %481 = vmatpush1.bf16.msra.mxu0 0
      %482 = vmatprep.subr.bf16.mxu0 0
      %483 = vmatpush1.bf16.msra.mxu0 0
      %484 = vmatprep.subr.bf16.mxu0 0
      %485 = vmatpush1.bf16.msra.mxu0 0
      %486 = vmatprep.mubr.bf16.mxu0 0
      %487 = vmatmul.mubr.bf16.gmra.mrb[0].mxu0 %v408
      %v488 = vpop.f32.mrb[0].mxu0
      %v489 = vadd.f32 %v449, %v488
      %v490 = vpop.f32.mrb[0].mxu0
      %v491 = vpop.f32.mrb[0].mxu0
      %v492 = vpop.f32.mrb[0].mxu0
      %493 = vdwg.mxu0
      %v494 = vld [vmem:[%s3] sm:$0x1]
      %v495 = vld [vmem:[%s4] sm:$0x1]
      %v496 = vadd.f32 %v494, %v495
      %vm497 = vcmask 253952
      %498 = vst.msk [vmem:[%s224] sm:$0x1] %vm497, %v496
      %v499 = vld [vmem:[%s4 + $0x1] sm:$0xff]
      %v500 = vadd.f32 %v489, %v499
      %vm501 = vcmask 261120
      %502 = vst.msk [vmem:[%s224 + $0x1] sm:$0xff] %vm501, %v500
      %p503 = scmp.lt.s32.totalorder %s16, 1
      %s504 = scalar_select %p503, %s16, 1
      %s505 = smul.addr %s504, 2
      %s506 = smul.addr %s505, 8
      %s507 = scalar_lea.vmem %s5, %s506
      // Predicated region
      $region41: #{pallas_forward.3} parent=39 // pred_check
        %p508 = pneg %p144
      $region42: #{pallas_forward.3} parent=39 // pred_check_branch
        %510 = sbr.rel (%p508) target = $region44
      $region43: #{pallas_forward.3} parent=39 // pred_region
        _
      $region44: #{pallas_forward.3} parent=39 // pred_fallthru
        _
    $region40: #{pallas_forward.3} parent=5 // pred_fallthru
      _
    %p511 = scmp.le.s32.totalorder 2, %s11
    // Predicated region
    $region45: #{pallas_forward.3} parent=5 // pred_check
      %p512 = pneg %p511
    $region46: #{pallas_forward.3} parent=5 // pred_check_branch
      %514 = sbr.rel (%p512) target = $region48
    $region47: #{pallas_forward.3} parent=5 // pred_region
      %s515 = ssub.s32 %s11, 2
      // Predicated region
      $region49: #{pallas_forward.3} parent=47 // pred_check
        %p516 = pneg %p150
      $region50: #{pallas_forward.3} parent=47 // pred_check_branch
        %518 = sbr.rel (%p516) target = $region52
      $region51: #{pallas_forward.3} parent=47 // pred_region
        %p519 = scmp.lt.s32.totalorder %s17, 1
        %s520 = scalar_select %p519, %s17, 1
        %s521 = smul.addr %s520, 2
        %s522 = smul.addr %s521, 8
        %s523 = scalar_lea.vmem %s5, %s522
      $region52: #{pallas_forward.3} parent=47 // pred_fallthru
        _
    $region48: #{pallas_forward.3} parent=5 // pred_fallthru
      _
  $region6: #{pallas_forward.3} parent=0 // loop_footer
    %s15 = sadd.s32 1, %s11
  $region7: #{pallas_forward.3} parent=0 // loop_footer_branch
    %10 = sbr.rel target = $region3
  $region8: #{pallas_forward.3} parent=0 // loop_exit
    _

// kernel: pallas_forward.5
$region0: #{pallas_forward.5}
  #allocation0 [shape = 'u32[]', space=smem, size = 0x4, offset = 0x4, fixed_abs, tag = 'smem constant byte address 0x4 - core index']
  #allocation1 [shape = 'u32[144,128]{1,0:T(1,128)}', space=vmem, size = 0x12000, scoped, tag = 'internal scratch']
  %s0 = inlined_call_operand.vmem [shape: f32[2,9,32], index: 0, kind: input, shape index: {}]
  %s1 = inlined_call_operand.vmem [shape: bf16[32,96], index: 1, kind: input, shape index: {}]
  %s2 = inlined_call_operand.vmem [shape: f32[1,96], index: 2, kind: input, shape index: {}]
  %s3 = inlined_call_operand.vmem [shape: bf16[32,32], index: 3, kind: input, shape index: {}]
  %s4 = inlined_call_operand.vmem [shape: f32[1,32], index: 4, kind: input, shape index: {}]
  %s5 = inlined_call_operand.vmem [shape: bf16[32,64], index: 5, kind: input, shape index: {}]
  %s6 = inlined_call_operand.vmem [shape: f32[1,64], index: 6, kind: input, shape index: {}]
  %s7 = inlined_call_operand.vmem [shape: bf16[64,32], index: 7, kind: input, shape index: {}]
  %s8 = inlined_call_operand.vmem [shape: f32[1,32], index: 8, kind: input, shape index: {}]
  %s9 = inlined_call_operand.vmem [shape: f32[1,32], index: 9, kind: input, shape index: {}]
  %s10 = inlined_call_operand.vmem [shape: f32[1,32], index: 10, kind: input, shape index: {}]
  %s11 = inlined_call_operand.vmem [shape: f32[1,32], index: 11, kind: input, shape index: {}]
  %s12 = inlined_call_operand.vmem [shape: f32[1,32], index: 12, kind: input, shape index: {}]
  %s13 = inlined_call_operand.vmem [shape: bf16[32,32], index: 13, kind: input, shape index: {}]
  %s14 = inlined_call_operand.vmem [shape: f32[1,32], index: 14, kind: input, shape index: {}]
  %s15 = inlined_call_operand.hbm [shape: f32[2,1,32], index: 15, kind: output, shape index: {}]
  %s16 = sld [smem:[#allocation0]]
  $region93: #{pallas_forward.5} parent=0
    _
  %s18 = ssub.s32 1, %s16
  %s19 = scalar_select 0, %s18, %s16
  $region1: #{pallas_forward.5} parent=0
    #allocation2 [shape = 'u8[1024]{0}', space=vmem, size = 0x400, scoped, tag = 'output window, operand 0']
    #allocation3 [shape = 's32[2]{0}', space=sflag, size = 0x8, scoped, tag = 'scoped memory for pallas_forward.5']
    %20 = vsyncpa [#allocation3], 0
    %s21 = scalar_lea.sflag [#allocation3], 1
    %22 = vsyncpa %s21, 0
    loop: start=0, step=1, limit=4
    $region2: #{pallas_forward.5} parent=1 // loop_pre_header
      _
    $region3: #{pallas_forward.5} parent=1 // loop_header
      %s24 = sphi 0, %s28
      %p25 = scmp.ge.s32.totalorder %s24, 4
      %s34 = sphi 0, %s36
      %s37 = sphi 0, %s34
      %s38 = sphi 0, %s37
      %s54 = sphi 0, %s38
      %s58 = sphi 0, %s58
      %s60 = sphi 0, %s58
      %s61 = sphi 0, %s60
      %s75 = sphi 0, %s61
      %s79 = sphi 0, %s79
      %s81 = sphi 0, %s79
      %s82 = sphi 0, %s81
      %s96 = sphi 0, %s82
      %s100 = sphi 0, %s100
      %s102 = sphi 0, %s100
      %s103 = sphi 0, %s102
      %s117 = sphi 0, %s103
      %s121 = sphi 0, %s121
      %s123 = sphi 0, %s121
      %s124 = sphi 0, %s123
      %s138 = sphi 0, %s124
      %s142 = sphi 0, %s142
      %s144 = sphi 0, %s142
      %s145 = sphi 0, %s144
      %s159 = sphi 0, %s145
      %s163 = sphi 0, %s163
      %s165 = sphi 0, %s163
      %s166 = sphi 0, %s165
      %s180 = sphi 0, %s166
      %s184 = sphi 0, %s184
      %s186 = sphi 0, %s184
      %s187 = sphi 0, %s186
      %s201 = sphi 0, %s187
      %s205 = sphi 0, %s205
      %s207 = sphi 0, %s205
      %s208 = sphi 0, %s207
      %s222 = sphi 0, %s208
      %s226 = sphi 0, %s226
      %s228 = sphi 0, %s226
      %s229 = sphi 0, %s228
      %s243 = sphi 0, %s229
      %s247 = sphi 0, %s247
      %s249 = sphi 0, %s247
      %s250 = sphi 0, %s249
      %s264 = sphi 0, %s250
      %s268 = sphi 0, %s268
      %s270 = sphi 0, %s268
      %s271 = sphi 0, %s270
      %s285 = sphi 0, %s271
      %s289 = sphi 0, %s289
      %s291 = sphi 0, %s289
      %s292 = sphi 0, %s291
      %s306 = sphi 0, %s292
      %s310 = sphi 0, %s310
      %s312 = sphi 0, %s310
      %s313 = sphi 0, %s312
      %s327 = sphi 0, %s313
      %s331 = sphi 0, %s331
      %s333 = sphi 0, %s331
      %s334 = sphi 0, %s333
      %s348 = sphi 0, %s334
      %s354 = sphi 0, %s356
      %s357 = sphi 0, %s354
      %s358 = sphi 0, %s357
      %s374 = sphi 0, %s358
    $region4: #{pallas_forward.5} parent=1 // loop_header_branch
      %27 = sbr.rel (%p25) target = $region8
    $region5: #{pallas_forward.5} parent=1 // loop_body
      %s29 = ssub.s32 %s24, 1
      %s30 = ssub.s32 %s24, 2
      %s31 = sadd.s32 %s24, 1
      %s32 = ssub.s32 %s24, %s31
      %p33 = scmp.eq.s32.totalorder %s32, 0
      %s35 = sadd.s32 %s34, 1
      %s36 = scalar_select %p33, %s34, %s35
      %p39 = pneg %p33
      %p40 = scmp.eq.s32.totalorder %s24, 1
      %p41 = por %p39, %p40
      %p42 = scmp.ne.s32.totalorder %s34, %s37
      %p43 = scmp.eq.s32.totalorder %s24, 0
      %p44 = por %p42, %p43
      %p45 = scmp.ne.s32.totalorder %s34, %s37
      %p46 = scmp.eq.s32.totalorder %s29, 1
      %p47 = por %p45, %p46
      %p48 = scmp.ne.s32.totalorder %s37, %s38
      %p49 = scmp.eq.s32.totalorder %s29, 0
      %p50 = por %p48, %p49
      %p51 = scmp.ne.s32.totalorder %s37, %s38
      %p52 = scmp.eq.s32.totalorder %s30, 1
      %p53 = por %p51, %p52
      %p55 = scmp.ne.s32.totalorder %s38, %s54
      %p56 = scmp.eq.s32.totalorder %s30, 0
      %p57 = por %p55, %p56
      %s59 = sadd.s32 %s58, 1
      %p62 = scmp.eq.s32.totalorder %s24, 1
      %p63 = scmp.ne.s32.totalorder %s58, %s60
      %p64 = scmp.eq.s32.totalorder %s24, 0
      %p65 = por %p63, %p64
      %p66 = scmp.ne.s32.totalorder %s58, %s60
      %p67 = scmp.eq.s32.totalorder %s29, 1
      %p68 = por %p66, %p67
      %p69 = scmp.ne.s32.totalorder %s60, %s61
      %p70 = scmp.eq.s32.totalorder %s29, 0
      %p71 = por %p69, %p70
      %p72 = scmp.ne.s32.totalorder %s60, %s61
      %p73 = scmp.eq.s32.totalorder %s30, 1
      %p74 = por %p72, %p73
      %p76 = scmp.ne.s32.totalorder %s61, %s75
      %p77 = scmp.eq.s32.totalorder %s30, 0
      %p78 = por %p76, %p77
      %s80 = sadd.s32 %s79, 1
      %p83 = scmp.eq.s32.totalorder %s24, 1
      %p84 = scmp.ne.s32.totalorder %s79, %s81
      %p85 = scmp.eq.s32.totalorder %s24, 0
      %p86 = por %p84, %p85
      %p87 = scmp.ne.s32.totalorder %s79, %s81
      %p88 = scmp.eq.s32.totalorder %s29, 1
      %p89 = por %p87, %p88
      %p90 = scmp.ne.s32.totalorder %s81, %s82
      %p91 = scmp.eq.s32.totalorder %s29, 0
      %p92 = por %p90, %p91
      %p93 = scmp.ne.s32.totalorder %s81, %s82
      %p94 = scmp.eq.s32.totalorder %s30, 1
      %p95 = por %p93, %p94
      %p97 = scmp.ne.s32.totalorder %s82, %s96
      %p98 = scmp.eq.s32.totalorder %s30, 0
      %p99 = por %p97, %p98
      %s101 = sadd.s32 %s100, 1
      %p104 = scmp.eq.s32.totalorder %s24, 1
      %p105 = scmp.ne.s32.totalorder %s100, %s102
      %p106 = scmp.eq.s32.totalorder %s24, 0
      %p107 = por %p105, %p106
      %p108 = scmp.ne.s32.totalorder %s100, %s102
      %p109 = scmp.eq.s32.totalorder %s29, 1
      %p110 = por %p108, %p109
      %p111 = scmp.ne.s32.totalorder %s102, %s103
      %p112 = scmp.eq.s32.totalorder %s29, 0
      %p113 = por %p111, %p112
      %p114 = scmp.ne.s32.totalorder %s102, %s103
      %p115 = scmp.eq.s32.totalorder %s30, 1
      %p116 = por %p114, %p115
      %p118 = scmp.ne.s32.totalorder %s103, %s117
      %p119 = scmp.eq.s32.totalorder %s30, 0
      %p120 = por %p118, %p119
      %s122 = sadd.s32 %s121, 1
      %p125 = scmp.eq.s32.totalorder %s24, 1
      %p126 = scmp.ne.s32.totalorder %s121, %s123
      %p127 = scmp.eq.s32.totalorder %s24, 0
      %p128 = por %p126, %p127
      %p129 = scmp.ne.s32.totalorder %s121, %s123
      %p130 = scmp.eq.s32.totalorder %s29, 1
      %p131 = por %p129, %p130
      %p132 = scmp.ne.s32.totalorder %s123, %s124
      %p133 = scmp.eq.s32.totalorder %s29, 0
      %p134 = por %p132, %p133
      %p135 = scmp.ne.s32.totalorder %s123, %s124
      %p136 = scmp.eq.s32.totalorder %s30, 1
      %p137 = por %p135, %p136
      %p139 = scmp.ne.s32.totalorder %s124, %s138
      %p140 = scmp.eq.s32.totalorder %s30, 0
      %p141 = por %p139, %p140
      %s143 = sadd.s32 %s142, 1
      %p146 = scmp.eq.s32.totalorder %s24, 1
      %p147 = scmp.ne.s32.totalorder %s142, %s144
      %p148 = scmp.eq.s32.totalorder %s24, 0
      %p149 = por %p147, %p148
      %p150 = scmp.ne.s32.totalorder %s142, %s144
      %p151 = scmp.eq.s32.totalorder %s29, 1
      %p152 = por %p150, %p151
      %p153 = scmp.ne.s32.totalorder %s144, %s145
      %p154 = scmp.eq.s32.totalorder %s29, 0
      %p155 = por %p153, %p154
      %p156 = scmp.ne.s32.totalorder %s144, %s145
      %p157 = scmp.eq.s32.totalorder %s30, 1
      %p158 = por %p156, %p157
      %p160 = scmp.ne.s32.totalorder %s145, %s159
      %p161 = scmp.eq.s32.totalorder %s30, 0
      %p162 = por %p160, %p161
      %s164 = sadd.s32 %s163, 1
      %p167 = scmp.eq.s32.totalorder %s24, 1
      %p168 = scmp.ne.s32.totalorder %s163, %s165
      %p169 = scmp.eq.s32.totalorder %s24, 0
      %p170 = por %p168, %p169
      %p171 = scmp.ne.s32.totalorder %s163, %s165
      %p172 = scmp.eq.s32.totalorder %s29, 1
      %p173 = por %p171, %p172
      %p174 = scmp.ne.s32.totalorder %s165, %s166
      %p175 = scmp.eq.s32.totalorder %s29, 0
      %p176 = por %p174, %p175
      %p177 = scmp.ne.s32.totalorder %s165, %s166
      %p178 = scmp.eq.s32.totalorder %s30, 1
      %p179 = por %p177, %p178
      %p181 = scmp.ne.s32.totalorder %s166, %s180
      %p182 = scmp.eq.s32.totalorder %s30, 0
      %p183 = por %p181, %p182
      %s185 = sadd.s32 %s184, 1
      %p188 = scmp.eq.s32.totalorder %s24, 1
      %p189 = scmp.ne.s32.totalorder %s184, %s186
      %p190 = scmp.eq.s32.totalorder %s24, 0
      %p191 = por %p189, %p190
      %p192 = scmp.ne.s32.totalorder %s184, %s186
      %p193 = scmp.eq.s32.totalorder %s29, 1
      %p194 = por %p192, %p193
      %p195 = scmp.ne.s32.totalorder %s186, %s187
      %p196 = scmp.eq.s32.totalorder %s29, 0
      %p197 = por %p195, %p196
      %p198 = scmp.ne.s32.totalorder %s186, %s187
      %p199 = scmp.eq.s32.totalorder %s30, 1
      %p200 = por %p198, %p199
      %p202 = scmp.ne.s32.totalorder %s187, %s201
      %p203 = scmp.eq.s32.totalorder %s30, 0
      %p204 = por %p202, %p203
      %s206 = sadd.s32 %s205, 1
      %p209 = scmp.eq.s32.totalorder %s24, 1
      %p210 = scmp.ne.s32.totalorder %s205, %s207
      %p211 = scmp.eq.s32.totalorder %s24, 0
      %p212 = por %p210, %p211
      %p213 = scmp.ne.s32.totalorder %s205, %s207
      %p214 = scmp.eq.s32.totalorder %s29, 1
      %p215 = por %p213, %p214
      %p216 = scmp.ne.s32.totalorder %s207, %s208
      %p217 = scmp.eq.s32.totalorder %s29, 0
      %p218 = por %p216, %p217
      %p219 = scmp.ne.s32.totalorder %s207, %s208
      %p220 = scmp.eq.s32.totalorder %s30, 1
      %p221 = por %p219, %p220
      %p223 = scmp.ne.s32.totalorder %s208, %s222
      %p224 = scmp.eq.s32.totalorder %s30, 0
      %p225 = por %p223, %p224
      %s227 = sadd.s32 %s226, 1
      %p230 = scmp.eq.s32.totalorder %s24, 1
      %p231 = scmp.ne.s32.totalorder %s226, %s228
      %p232 = scmp.eq.s32.totalorder %s24, 0
      %p233 = por %p231, %p232
      %p234 = scmp.ne.s32.totalorder %s226, %s228
      %p235 = scmp.eq.s32.totalorder %s29, 1
      %p236 = por %p234, %p235
      %p237 = scmp.ne.s32.totalorder %s228, %s229
      %p238 = scmp.eq.s32.totalorder %s29, 0
      %p239 = por %p237, %p238
      %p240 = scmp.ne.s32.totalorder %s228, %s229
      %p241 = scmp.eq.s32.totalorder %s30, 1
      %p242 = por %p240, %p241
      %p244 = scmp.ne.s32.totalorder %s229, %s243
      %p245 = scmp.eq.s32.totalorder %s30, 0
      %p246 = por %p244, %p245
      %s248 = sadd.s32 %s247, 1
      %p251 = scmp.eq.s32.totalorder %s24, 1
      %p252 = scmp.ne.s32.totalorder %s247, %s249
      %p253 = scmp.eq.s32.totalorder %s24, 0
      %p254 = por %p252, %p253
      %p255 = scmp.ne.s32.totalorder %s247, %s249
      %p256 = scmp.eq.s32.totalorder %s29, 1
      %p257 = por %p255, %p256
      %p258 = scmp.ne.s32.totalorder %s249, %s250
      %p259 = scmp.eq.s32.totalorder %s29, 0
      %p260 = por %p258, %p259
      %p261 = scmp.ne.s32.totalorder %s249, %s250
      %p262 = scmp.eq.s32.totalorder %s30, 1
      %p263 = por %p261, %p262
      %p265 = scmp.ne.s32.totalorder %s250, %s264
      %p266 = scmp.eq.s32.totalorder %s30, 0
      %p267 = por %p265, %p266
      %s269 = sadd.s32 %s268, 1
      %p272 = scmp.eq.s32.totalorder %s24, 1
      %p273 = scmp.ne.s32.totalorder %s268, %s270
      %p274 = scmp.eq.s32.totalorder %s24, 0
      %p275 = por %p273, %p274
      %p276 = scmp.ne.s32.totalorder %s268, %s270
      %p277 = scmp.eq.s32.totalorder %s29, 1
      %p278 = por %p276, %p277
      %p279 = scmp.ne.s32.totalorder %s270, %s271
      %p280 = scmp.eq.s32.totalorder %s29, 0
      %p281 = por %p279, %p280
      %p282 = scmp.ne.s32.totalorder %s270, %s271
      %p283 = scmp.eq.s32.totalorder %s30, 1
      %p284 = por %p282, %p283
      %p286 = scmp.ne.s32.totalorder %s271, %s285
      %p287 = scmp.eq.s32.totalorder %s30, 0
      %p288 = por %p286, %p287
      %s290 = sadd.s32 %s289, 1
      %p293 = scmp.eq.s32.totalorder %s24, 1
      %p294 = scmp.ne.s32.totalorder %s289, %s291
      %p295 = scmp.eq.s32.totalorder %s24, 0
      %p296 = por %p294, %p295
      %p297 = scmp.ne.s32.totalorder %s289, %s291
      %p298 = scmp.eq.s32.totalorder %s29, 1
      %p299 = por %p297, %p298
      %p300 = scmp.ne.s32.totalorder %s291, %s292
      %p301 = scmp.eq.s32.totalorder %s29, 0
      %p302 = por %p300, %p301
      %p303 = scmp.ne.s32.totalorder %s291, %s292
      %p304 = scmp.eq.s32.totalorder %s30, 1
      %p305 = por %p303, %p304
      %p307 = scmp.ne.s32.totalorder %s292, %s306
      %p308 = scmp.eq.s32.totalorder %s30, 0
      %p309 = por %p307, %p308
      %s311 = sadd.s32 %s310, 1
      %p314 = scmp.eq.s32.totalorder %s24, 1
      %p315 = scmp.ne.s32.totalorder %s310, %s312
      %p316 = scmp.eq.s32.totalorder %s24, 0
      %p317 = por %p315, %p316
      %p318 = scmp.ne.s32.totalorder %s310, %s312
      %p319 = scmp.eq.s32.totalorder %s29, 1
      %p320 = por %p318, %p319
      %p321 = scmp.ne.s32.totalorder %s312, %s313
      %p322 = scmp.eq.s32.totalorder %s29, 0
      %p323 = por %p321, %p322
      %p324 = scmp.ne.s32.totalorder %s312, %s313
      %p325 = scmp.eq.s32.totalorder %s30, 1
      %p326 = por %p324, %p325
      %p328 = scmp.ne.s32.totalorder %s313, %s327
      %p329 = scmp.eq.s32.totalorder %s30, 0
      %p330 = por %p328, %p329
      %s332 = sadd.s32 %s331, 1
      %p335 = scmp.eq.s32.totalorder %s24, 1
      %p336 = scmp.ne.s32.totalorder %s331, %s333
      %p337 = scmp.eq.s32.totalorder %s24, 0
      %p338 = por %p336, %p337
      %p339 = scmp.ne.s32.totalorder %s331, %s333
      %p340 = scmp.eq.s32.totalorder %s29, 1
      %p341 = por %p339, %p340
      %p342 = scmp.ne.s32.totalorder %s333, %s334
      %p343 = scmp.eq.s32.totalorder %s29, 0
      %p344 = por %p342, %p343
      %p345 = scmp.ne.s32.totalorder %s333, %s334
      %p346 = scmp.eq.s32.totalorder %s30, 1
      %p347 = por %p345, %p346
      %p349 = scmp.ne.s32.totalorder %s334, %s348
      %p350 = scmp.eq.s32.totalorder %s30, 0
      %p351 = por %p349, %p350
      %s352 = ssub.s32 %s24, %s31
      %p353 = scmp.eq.s32.totalorder %s352, 0
      %s355 = sadd.s32 %s354, 1
      %s356 = scalar_select %p353, %s354, %s355
      %p359 = pneg %p353
      %p360 = scmp.eq.s32.totalorder %s24, 1
      %p361 = por %p359, %p360
      %p362 = scmp.ne.s32.totalorder %s354, %s357
      %p363 = scmp.eq.s32.totalorder %s24, 0
      %p364 = por %p362, %p363
      %p365 = scmp.ne.s32.totalorder %s354, %s357
      %p366 = scmp.eq.s32.totalorder %s29, 1
      %p367 = por %p365, %p366
      %p368 = scmp.ne.s32.totalorder %s357, %s358
      %p369 = scmp.eq.s32.totalorder %s29, 0
      %p370 = por %p368, %p369
      %p371 = scmp.ne.s32.totalorder %s357, %s358
      %p372 = scmp.eq.s32.totalorder %s30, 1
      %p373 = por %p371, %p372
      %p375 = scmp.ne.s32.totalorder %s358, %s374
      %p376 = scmp.eq.s32.totalorder %s30, 0
      %p377 = por %p375, %p376
      %p378 = scmp.le.s32.totalorder 1, %s24
      %p379 = scmp.lt.s32.totalorder %s24, 3
      %p380 = pnand %p378, %p379
      %p381 = pneg %p380
      // Predicated region
      $region9: #{pallas_forward.5} parent=5 // pred_check
        _
      $region10: #{pallas_forward.5} parent=5 // pred_check_branch
        %383 = sbr.rel (%p380) target = $region12
      $region11: #{pallas_forward.5} parent=5 // pred_region
        %s384 = ssub.s32 %s24, 1
        // Predicated region
        $region13: #{pallas_forward.5} parent=11 // pred_check
          %p385 = pneg %p71
        $region14: #{pallas_forward.5} parent=11 // pred_check_branch
          %387 = sbr.rel (%p385) target = $region16
        $region15: #{pallas_forward.5} parent=11 // pred_region
          _
        $region16: #{pallas_forward.5} parent=11 // pred_fallthru
          _
        // Predicated region
        $region17: #{pallas_forward.5} parent=11 // pred_check
          %p388 = pneg %p92
        $region18: #{pallas_forward.5} parent=11 // pred_check_branch
          %390 = sbr.rel (%p388) target = $region20
        $region19: #{pallas_forward.5} parent=11 // pred_region
          _
        $region20: #{pallas_forward.5} parent=11 // pred_fallthru
          _
        // Predicated region
        $region21: #{pallas_forward.5} parent=11 // pred_check
          %p391 = pneg %p113
        $region22: #{pallas_forward.5} parent=11 // pred_check_branch
          %393 = sbr.rel (%p391) target = $region24
        $region23: #{pallas_forward.5} parent=11 // pred_region
          _
        $region24: #{pallas_forward.5} parent=11 // pred_fallthru
          _
        // Predicated region
        $region25: #{pallas_forward.5} parent=11 // pred_check
          %p394 = pneg %p134
        $region26: #{pallas_forward.5} parent=11 // pred_check_branch
          %396 = sbr.rel (%p394) target = $region28
        $region27: #{pallas_forward.5} parent=11 // pred_region
          _
        $region28: #{pallas_forward.5} parent=11 // pred_fallthru
          _
        // Predicated region
        $region29: #{pallas_forward.5} parent=11 // pred_check
          %p397 = pneg %p155
        $region30: #{pallas_forward.5} parent=11 // pred_check_branch
          %399 = sbr.rel (%p397) target = $region32
        $region31: #{pallas_forward.5} parent=11 // pred_region
          _
        $region32: #{pallas_forward.5} parent=11 // pred_fallthru
          _
        // Predicated region
        $region33: #{pallas_forward.5} parent=11 // pred_check
          %p400 = pneg %p176
        $region34: #{pallas_forward.5} parent=11 // pred_check_branch
          %402 = sbr.rel (%p400) target = $region36
        $region35: #{pallas_forward.5} parent=11 // pred_region
          _
        $region36: #{pallas_forward.5} parent=11 // pred_fallthru
          _
        // Predicated region
        $region37: #{pallas_forward.5} parent=11 // pred_check
          %p403 = pneg %p197
        $region38: #{pallas_forward.5} parent=11 // pred_check_branch
          %405 = sbr.rel (%p403) target = $region40
        $region39: #{pallas_forward.5} parent=11 // pred_region
          _
        $region40: #{pallas_forward.5} parent=11 // pred_fallthru
          _
        // Predicated region
        $region41: #{pallas_forward.5} parent=11 // pred_check
          %p406 = pneg %p218
        $region42: #{pallas_forward.5} parent=11 // pred_check_branch
          %408 = sbr.rel (%p406) target = $region44
        $region43: #{pallas_forward.5} parent=11 // pred_region
          _
        $region44: #{pallas_forward.5} parent=11 // pred_fallthru
          _
        // Predicated region
        $region45: #{pallas_forward.5} parent=11 // pred_check
          %p409 = pneg %p239
        $region46: #{pallas_forward.5} parent=11 // pred_check_branch
          %411 = sbr.rel (%p409) target = $region48
        $region47: #{pallas_forward.5} parent=11 // pred_region
          _
        $region48: #{pallas_forward.5} parent=11 // pred_fallthru
          _
        // Predicated region
        $region49: #{pallas_forward.5} parent=11 // pred_check
          %p412 = pneg %p260
        $region50: #{pallas_forward.5} parent=11 // pred_check_branch
          %414 = sbr.rel (%p412) target = $region52
        $region51: #{pallas_forward.5} parent=11 // pred_region
          _
        $region52: #{pallas_forward.5} parent=11 // pred_fallthru
          _
        // Predicated region
        $region53: #{pallas_forward.5} parent=11 // pred_check
          %p415 = pneg %p281
        $region54: #{pallas_forward.5} parent=11 // pred_check_branch
          %417 = sbr.rel (%p415) target = $region56
        $region55: #{pallas_forward.5} parent=11 // pred_region
          _
        $region56: #{pallas_forward.5} parent=11 // pred_fallthru
          _
        // Predicated region
        $region57: #{pallas_forward.5} parent=11 // pred_check
          %p418 = pneg %p302
        $region58: #{pallas_forward.5} parent=11 // pred_check_branch
          %420 = sbr.rel (%p418) target = $region60
        $region59: #{pallas_forward.5} parent=11 // pred_region
          _
        $region60: #{pallas_forward.5} parent=11 // pred_fallthru
          _
        // Predicated region
        $region61: #{pallas_forward.5} parent=11 // pred_check
          %p421 = pneg %p323
        $region62: #{pallas_forward.5} parent=11 // pred_check_branch
          %423 = sbr.rel (%p421) target = $region64
        $region63: #{pallas_forward.5} parent=11 // pred_region
          _
        $region64: #{pallas_forward.5} parent=11 // pred_fallthru
          _
        // Predicated region
        $region65: #{pallas_forward.5} parent=11 // pred_check
          %p424 = pneg %p344
        $region66: #{pallas_forward.5} parent=11 // pred_check_branch
          %426 = sbr.rel (%p424) target = $region68
        $region67: #{pallas_forward.5} parent=11 // pred_region
          _
        $region68: #{pallas_forward.5} parent=11 // pred_fallthru
          _
      $region12: #{pallas_forward.5} parent=5 // pred_fallthru
        _
      %p427 = scmp.lt.s32.totalorder %s24, 2
      // Predicated region
      $region69: #{pallas_forward.5} parent=5 // pred_check
        %p428 = pneg %p427
      $region70: #{pallas_forward.5} parent=5 // pred_check_branch
        %430 = sbr.rel (%p428) target = $region72
      $region71: #{pallas_forward.5} parent=5 // pred_region
        // Predicated region
        $region73: #{pallas_forward.5} parent=71 // pred_check
          %p431 = pneg %p44
        $region74: #{pallas_forward.5} parent=71 // pred_check_branch
          %433 = sbr.rel (%p431) target = $region76
        $region75: #{pallas_forward.5} parent=71 // pred_region
          %p434 = scmp.lt.s32.totalorder %s24, 1
          %s435 = scalar_select %p434, %s24, 1
          %s436 = smul.addr %s435, 2
          %s437 = smul.addr %s436, 8
          %s438 = scalar_lea.vmem %s0, %s437
        $region76: #{pallas_forward.5} parent=71 // pred_fallthru
          _
      $region72: #{pallas_forward.5} parent=5 // pred_fallthru
        _
      %p439 = scmp.le.s32.totalorder 1, %s24
      %p440 = scmp.lt.s32.totalorder %s24, 3
      %p441 = pnand %p439, %p440
      %p442 = pneg %p441
      // Predicated region
      $region77: #{pallas_forward.5} parent=5 // pred_check
        _
      $region78: #{pallas_forward.5} parent=5 // pred_check_branch
        %444 = sbr.rel (%p441) target = $region80
      $region79: #{pallas_forward.5} parent=5 // pred_region
        %s445 = ssub.s32 %s24, 1
        %p446 = scmp.lt.s32.totalorder %s29, 1
        %s447 = scalar_select %p446, %s29, 1
        %s448 = smul.addr %s447, 2
        %s449 = smul.addr %s448, 8
        %s450 = scalar_lea.vmem %s0, %s449
        %p451 = pneg %p50
        %p452 = pneg %p47
        %p453 = pneg %p71
        %p454 = pneg %p68
        %p455 = pneg %p92
        %p456 = pneg %p89
        %p457 = pneg %p113
        %p458 = pneg %p110
        %p459 = pneg %p134
        %p460 = pneg %p131
        %p461 = pneg %p155
        %p462 = pneg %p152
        %p463 = pneg %p176
        %p464 = pneg %p173
        %p465 = pneg %p197
        %p466 = pneg %p194
        %p467 = pneg %p218
        %p468 = pneg %p215
        %p469 = pneg %p239
        %p470 = pneg %p236
        %p471 = pneg %p260
        %p472 = pneg %p257
        %p473 = pneg %p281
        %p474 = pneg %p278
        %p475 = pneg %p302
        %p476 = pneg %p299
        %p477 = pneg %p323
        %p478 = pneg %p320
        %p479 = pneg %p344
        %p480 = pneg %p341
        %p481 = pneg %p370
        %p482 = pneg %p367
        %s483 = sand.u32 %s357, 1
        %s484 = scalar_lea.sflag [#allocation3], %s483
        %s485 = sand.u32 %s357, 1
        %s486 = scalar_lea.vmem [#allocation2], %s485
        %p487 = scmp.lt.s32.totalorder %s29, 1
        %s488 = scalar_select %p487, %s29, 1
        %s489 = smul.addr %s488, 2
        %s490 = smul.addr %s489, 8
        %s491 = scalar_lea.vmem %s0, %s490
        %v493 = vld [vmem:[%s491] sm:$0xff]
        %v494 = vld [vmem:[%s491 + $0x8] sm:$0x1]
        %v495 = vld [vmem:[%s1] sm:$0xf]
        %v496 = vld [vmem:[%s1 + $0x4] sm:$0xf]
        %v497 = vld [vmem:[%s1 + $0x8] sm:$0xf]
        %v498 = vld [vmem:[%s1 + $0xc] sm:$0xf]
        %v499 = vld [vmem:[%s2] sm:$0x1]
        %v500 = vld [vmem:[%s3] sm:$0xf]
        %v501 = vld [vmem:[%s3 + $0x4] sm:$0xf]
        %v502 = vld [vmem:[%s3 + $0x8] sm:$0xf]
        %v503 = vld [vmem:[%s3 + $0xc] sm:$0xf]
        %v504 = vld [vmem:[%s4] sm:$0x1]
        %v505 = vld [vmem:[%s5] sm:$0xf]
        %v506 = vld [vmem:[%s5 + $0x4] sm:$0xf]
        %v507 = vld [vmem:[%s5 + $0x8] sm:$0xf]
        %v508 = vld [vmem:[%s5 + $0xc] sm:$0xf]
        %v509 = vld [vmem:[%s6] sm:$0x1]
        %v510 = vld [vmem:[%s7] sm:$0xf]
        %v511 = vld [vmem:[%s7 + $0x4] sm:$0xf]
        %v512 = vld [vmem:[%s7 + $0x8] sm:$0xf]
        %v513 = vld [vmem:[%s7 + $0xc] sm:$0xf]
        %v514 = vld [vmem:[%s7 + $0x10] sm:$0xf]
        %v515 = vld [vmem:[%s7 + $0x14] sm:$0xf]
        %v516 = vld [vmem:[%s7 + $0x18] sm:$0xf]
        %v517 = vld [vmem:[%s7 + $0x1c] sm:$0xf]
        %v518 = vld [vmem:[%s8] sm:$0x1]
        %v519 = vld [vmem:[%s9] sm:$0x1]
        %v520 = vld [vmem:[%s10] sm:$0x1]
        %v521 = vld [vmem:[%s11] sm:$0x1]
        %v522 = vld [vmem:[%s12] sm:$0x1]
        %v523 = vpack.c.bf16 %v494, %v493
        %v525 = vlaneseq
        %v526 = vshrl.u32 %v525, 7
        %v527 = vsub.s32 0, %v526
        %v528 = vrot.slane %v499, %v527
        %v534 = vunpack.c.l.b16 %v495
        %v535 = vunpack.c.l.b16 %v496
        %v536 = vunpack.c.l.b16 %v497
        %v537 = vunpack.c.l.b16 %v498
        %v538 = vpack.c.b16 %v535, %v534
        %v539 = vpack.c.b16 %v537, %v536
        %vm542 = vcmask 261120
        %v544 = vsel %vm542, %v523, 0
        %546 = vmatprep.subr.bf16.mxu0 0
        %547 = vmatpush1.bf16.msra.mxu0 %v538
        %548 = vmatprep.subr.bf16.mxu0 0
        %549 = vmatpush1.bf16.msra.mxu0 %v539
        %550 = vmatprep.subr.bf16.mxu0 0
        %551 = vmatpush1.bf16.msra.mxu0 0
        %552 = vmatprep.subr.bf16.mxu0 0
        %553 = vmatpush1.bf16.msra.mxu0 0
        %554 = vmatprep.subr.bf16.mxu0 0
        %555 = vmatpush1.bf16.msra.mxu0 0
        %556 = vmatprep.subr.bf16.mxu0 0
        %557 = vmatpush1.bf16.msra.mxu0 0
        %558 = vmatprep.subr.bf16.mxu0 0
        %559 = vmatpush1.bf16.msra.mxu0 0
        %560 = vmatprep.subr.bf16.mxu0 0
        %561 = vmatpush1.bf16.msra.mxu0 0
        %562 = vmatprep.subr.bf16.mxu0 0
        %563 = vmatpush1.bf16.msra.mxu0 0
        %564 = vmatprep.subr.bf16.mxu0 0
        %565 = vmatpush1.bf16.msra.mxu0 0
        %566 = vmatprep.subr.bf16.mxu0 0
        %567 = vmatpush1.bf16.msra.mxu0 0
        %568 = vmatprep.subr.bf16.mxu0 0
        %569 = vmatpush1.bf16.msra.mxu0 0
        %570 = vmatprep.subr.bf16.mxu0 0
        %571 = vmatpush1.bf16.msra.mxu0 0
        %572 = vmatprep.subr.bf16.mxu0 0
        %573 = vmatpush1.bf16.msra.mxu0 0
        %574 = vmatprep.subr.bf16.mxu0 0
        %575 = vmatpush1.bf16.msra.mxu0 0
        %576 = vmatprep.subr.bf16.mxu0 0
        %577 = vmatpush1.bf16.msra.mxu0 0
        %578 = vmatprep.mubr.bf16.mxu0 0
        %579 = vmatmul.mubr.bf16.gmra.mrb[0].mxu0 %v544
        %v580 = vpop.f32.mrb[0].mxu0
        %v581 = vadd.f32 %v528, %v580
        %v582 = vpop.f32.mrb[0].mxu0
        %v583 = vpop.f32.mrb[0].mxu0
        %v584 = vadd.f32 %v528, %v583
        %v585 = vpop.f32.mrb[0].mxu0
        %586 = vdwg.mxu0
        %589 = vrot.lane.b32.xlu0 %v581, 120
        %v590 = vpop.permute.xlu0 %589
        %591 = vrot.lane.b32.xlu0 %v584, 120
        %v592 = vpop.permute.xlu0 %591
        %594 = vrot.lane.b32.xlu0 %v581, 112
        %v595 = vpop.permute.xlu0 %594
        %596 = vrot.lane.b32.xlu0 %v584, 112
        %v597 = vpop.permute.xlu0 %596
        %599 = vrot.lane.b32.xlu0 %v581, 104
        %v600 = vpop.permute.xlu0 %599
        %601 = vrot.lane.b32.xlu0 %v584, 104
        %v602 = vpop.permute.xlu0 %601
        %v604 = vcombine.low %v581, %v595
        %v605 = vcombine.high %v581, %v595
        %v607 = vunpack.c.l.s4 1983009808
        %v608 = vunpack.c.0.s8 %v607
        %v609 = vlaneseq
        %v610 = vshrl.u32 %v609, 7
        %v611 = vsub.s32 %v608, %v610
        %v612 = vrot.slane %v604, %v611
        %v614 = vunpack.c.l.s4 1983009808
        %v615 = vunpack.c.0.s8 %v614
        %v616 = vlaneseq
        %v617 = vshrl.u32 %v616, 7
        %v618 = vsub.s32 %v615, %v617
        %v619 = vrot.slane %v605, %v618
        %v620 = vcombine.low %v590, %v600
        %v621 = vcombine.high %v590, %v600
        %v623 = vunpack.c.l.s4 1983009808
        %v624 = vunpack.c.0.s8 %v623
        %v625 = vlaneseq
        %v626 = vshrl.u32 %v625, 7
        %v627 = vsub.s32 %v624, %v626
        %v628 = vrot.slane %v620, %v627
        %v630 = vunpack.c.l.s4 1983009808
        %v631 = vunpack.c.0.s8 %v630
        %v632 = vlaneseq
        %v633 = vshrl.u32 %v632, 7
        %v634 = vsub.s32 %v631, %v633
        %v635 = vrot.slane %v621, %v634
        %v636 = vcombine.low %v612, %v628
        %v637 = vcombine.high %v612, %v628
        %v639 = vunpack.c.l.s4 1934713408
        %v640 = vunpack.c.0.s8 %v639
        %v641 = vlaneseq
        %v642 = vshrl.u32 %v641, 7
        %v643 = vsub.s32 %v640, %v642
        %v644 = vrot.slane %v636, %v643
        %v646 = vunpack.c.l.s4 1934713408
        %v647 = vunpack.c.0.s8 %v646
        %v648 = vlaneseq
        %v649 = vshrl.u32 %v648, 7
        %v650 = vsub.s32 %v647, %v649
        %v651 = vrot.slane %v637, %v650
        %v652 = vcombine.low %v619, %v635
        %v653 = vcombine.high %v619, %v635
        %v655 = vunpack.c.l.s4 1934713408
        %v656 = vunpack.c.0.s8 %v655
        %v657 = vlaneseq
        %v658 = vshrl.u32 %v657, 7
        %v659 = vsub.s32 %v656, %v658
        %v660 = vrot.slane %v652, %v659
        %v662 = vunpack.c.l.s4 1934713408
        %v663 = vunpack.c.0.s8 %v662
        %v664 = vlaneseq
        %v665 = vshrl.u32 %v664, 7
        %v666 = vsub.s32 %v663, %v665
        %v667 = vrot.slane %v653, %v666
        %v668 = vcombine.high %v644, 0.0
        %v669 = vcombine.high %v651, 0.0
        %v670 = vcombine.high %v660, 0.0
        %v671 = vcombine.high %v667, 0.0
        %672 = vrot.lane.b32.xlu0 %v581, 96
        %v673 = vpop.permute.xlu0 %672
        %674 = vrot.lane.b32.xlu0 %v584, 96
        %v675 = vpop.permute.xlu0 %674
        %676 = vrot.lane.b32.xlu0 %v590, 96
        %v677 = vpop.permute.xlu0 %676
        %678 = vrot.lane.b32.xlu0 %v592, 96
        %v679 = vpop.permute.xlu0 %678
        %680 = vrot.lane.b32.xlu0 %v595, 96
        %v681 = vpop.permute.xlu0 %680
        %682 = vrot.lane.b32.xlu0 %v597, 96
        %v683 = vpop.permute.xlu0 %682
        %684 = vrot.lane.b32.xlu0 %v600, 96
        %v685 = vpop.permute.xlu0 %684
        %686 = vrot.lane.b32.xlu0 %v602, 96
        %v687 = vpop.permute.xlu0 %686
        %v696 = vcombine.low %v673, %v681
        %v697 = vcombine.high %v673, %v681
        %v699 = vunpack.c.l.s4 1983009808
        %v700 = vunpack.c.0.s8 %v699
        %v701 = vlaneseq
        %v702 = vshrl.u32 %v701, 7
        %v703 = vsub.s32 %v700, %v702
        %v704 = vrot.slane %v696, %v703
        %v706 = vunpack.c.l.s4 1983009808
        %v707 = vunpack.c.0.s8 %v706
        %v708 = vlaneseq
        %v709 = vshrl.u32 %v708, 7
        %v710 = vsub.s32 %v707, %v709
        %v711 = vrot.slane %v697, %v710
        %v712 = vcombine.low %v677, %v685
        %v713 = vcombine.high %v677, %v685
        %v715 = vunpack.c.l.s4 1983009808
        %v716 = vunpack.c.0.s8 %v715
        %v717 = vlaneseq
        %v718 = vshrl.u32 %v717, 7
        %v719 = vsub.s32 %v716, %v718
        %v720 = vrot.slane %v712, %v719
        %v722 = vunpack.c.l.s4 1983009808
        %v723 = vunpack.c.0.s8 %v722
        %v724 = vlaneseq
        %v725 = vshrl.u32 %v724, 7
        %v726 = vsub.s32 %v723, %v725
        %v727 = vrot.slane %v713, %v726
        %v728 = vcombine.low %v704, %v720
        %v729 = vcombine.high %v704, %v720
        %v731 = vunpack.c.l.s4 1934713408
        %v732 = vunpack.c.0.s8 %v731
        %v733 = vlaneseq
        %v734 = vshrl.u32 %v733, 7
        %v735 = vsub.s32 %v732, %v734
        %v736 = vrot.slane %v728, %v735
        %v738 = vunpack.c.l.s4 1934713408
        %v739 = vunpack.c.0.s8 %v738
        %v740 = vlaneseq
        %v741 = vshrl.u32 %v740, 7
        %v742 = vsub.s32 %v739, %v741
        %v743 = vrot.slane %v729, %v742
        %v744 = vcombine.low %v711, %v727
        %v745 = vcombine.high %v711, %v727
        %v747 = vunpack.c.l.s4 1934713408
        %v748 = vunpack.c.0.s8 %v747
        %v749 = vlaneseq
        %v750 = vshrl.u32 %v749, 7
        %v751 = vsub.s32 %v748, %v750
        %v752 = vrot.slane %v744, %v751
        %v754 = vunpack.c.l.s4 1934713408
        %v755 = vunpack.c.0.s8 %v754
        %v756 = vlaneseq
        %v757 = vshrl.u32 %v756, 7
        %v758 = vsub.s32 %v755, %v757
        %v759 = vrot.slane %v745, %v758
        %v760 = vcombine.high %v736, 0.0
        %v761 = vcombine.high %v743, 0.0
        %v762 = vcombine.high %v752, 0.0
        %v763 = vcombine.high %v759, 0.0
        %v764 = vcombine.low %v675, %v683
        %v766 = vunpack.c.l.s4 1983009808
        %v767 = vunpack.c.0.s8 %v766
        %v768 = vlaneseq
        %v769 = vshrl.u32 %v768, 7
        %v770 = vsub.s32 %v767, %v769
        %v771 = vrot.slane %v764, %v770
        %v772 = vcombine.low %v679, %v687
        %v774 = vunpack.c.l.s4 1983009808
        %v775 = vunpack.c.0.s8 %v774
        %v776 = vlaneseq
        %v777 = vshrl.u32 %v776, 7
        %v778 = vsub.s32 %v775, %v777
        %v779 = vrot.slane %v772, %v778
        %v780 = vcombine.low %v771, %v779
        %781 = vrot.lane.b32.xlu0 %v581, 64
        %v782 = vpop.permute.xlu0 %781
        %783 = vrot.lane.b32.xlu0 %v584, 64
        %v784 = vpop.permute.xlu0 %783
        %785 = vrot.lane.b32.xlu0 %v590, 64
        %v786 = vpop.permute.xlu0 %785
        %787 = vrot.lane.b32.xlu0 %v592, 64
        %v788 = vpop.permute.xlu0 %787
        %789 = vrot.lane.b32.xlu0 %v595, 64
        %v790 = vpop.permute.xlu0 %789
        %791 = vrot.lane.b32.xlu0 %v597, 64
        %v792 = vpop.permute.xlu0 %791
        %793 = vrot.lane.b32.xlu0 %v600, 64
        %v794 = vpop.permute.xlu0 %793
        %795 = vrot.lane.b32.xlu0 %v602, 64
        %v796 = vpop.permute.xlu0 %795
        %v805 = vcombine.low %v782, %v790
        %v806 = vcombine.high %v782, %v790
        %v808 = vunpack.c.l.s4 1983009808
        %v809 = vunpack.c.0.s8 %v808
        %v810 = vlaneseq
        %v811 = vshrl.u32 %v810, 7
        %v812 = vsub.s32 %v809, %v811
        %v813 = vrot.slane %v805, %v812
        %v815 = vunpack.c.l.s4 1983009808
        %v816 = vunpack.c.0.s8 %v815
        %v817 = vlaneseq
        %v818 = vshrl.u32 %v817, 7
        %v819 = vsub.s32 %v816, %v818
        %v820 = vrot.slane %v806, %v819
        %v821 = vcombine.low %v786, %v794
        %v822 = vcombine.high %v786, %v794
        %v824 = vunpack.c.l.s4 1983009808
        %v825 = vunpack.c.0.s8 %v824
        %v826 = vlaneseq
        %v827 = vshrl.u32 %v826, 7
        %v828 = vsub.s32 %v825, %v827
        %v829 = vrot.slane %v821, %v828
        %v831 = vunpack.c.l.s4 1983009808
        %v832 = vunpack.c.0.s8 %v831
        %v833 = vlaneseq
        %v834 = vshrl.u32 %v833, 7
        %v835 = vsub.s32 %v832, %v834
        %v836 = vrot.slane %v822, %v835
        %v837 = vcombine.low %v813, %v829
        %v838 = vcombine.high %v813, %v829
        %v840 = vunpack.c.l.s4 1934713408
        %v841 = vunpack.c.0.s8 %v840
        %v842 = vlaneseq
        %v843 = vshrl.u32 %v842, 7
        %v844 = vsub.s32 %v841, %v843
        %v845 = vrot.slane %v837, %v844
        %v847 = vunpack.c.l.s4 1934713408
        %v848 = vunpack.c.0.s8 %v847
        %v849 = vlaneseq
        %v850 = vshrl.u32 %v849, 7
        %v851 = vsub.s32 %v848, %v850
        %v852 = vrot.slane %v838, %v851
        %v853 = vcombine.low %v820, %v836
        %v854 = vcombine.high %v820, %v836
        %v856 = vunpack.c.l.s4 1934713408
        %v857 = vunpack.c.0.s8 %v856
        %v858 = vlaneseq
        %v859 = vshrl.u32 %v858, 7
        %v860 = vsub.s32 %v857, %v859
        %v861 = vrot.slane %v853, %v860
        %v863 = vunpack.c.l.s4 1934713408
        %v864 = vunpack.c.0.s8 %v863
        %v865 = vlaneseq
        %v866 = vshrl.u32 %v865, 7
        %v867 = vsub.s32 %v864, %v866
        %v868 = vrot.slane %v854, %v867
        %v869 = vcombine.high %v845, 0.0
        %v870 = vcombine.high %v852, 0.0
        %v871 = vcombine.high %v861, 0.0
        %v872 = vcombine.high %v868, 0.0
        %v873 = vcombine.low %v784, %v792
        %v875 = vunpack.c.l.s4 1983009808
        %v876 = vunpack.c.0.s8 %v875
        %v877 = vlaneseq
        %v878 = vshrl.u32 %v877, 7
        %v879 = vsub.s32 %v876, %v878
        %v880 = vrot.slane %v873, %v879
        %v881 = vcombine.low %v788, %v796
        %v883 = vunpack.c.l.s4 1983009808
        %v884 = vunpack.c.0.s8 %v883
        %v885 = vlaneseq
        %v886 = vshrl.u32 %v885, 7
        %v887 = vsub.s32 %v884, %v886
        %v888 = vrot.slane %v881, %v887
        %v889 = vcombine.low %v880, %v888
        %v890 = vcombine.low %v644, %v651
        %v892 = vunpack.c.l.s4 1983009808
        %v893 = vunpack.c.0.s8 %v892
        %v894 = vlaneseq
        %v895 = vshrl.u32 %v894, 7
        %v896 = vsub.s32 %v893, %v895
        %v897 = vrot.slane %v890, %v896
        %v898 = vcombine.low %v668, %v669
        %v900 = vunpack.c.l.s4 1983009808
        %v901 = vunpack.c.0.s8 %v900
        %v902 = vlaneseq
        %v903 = vshrl.u32 %v902, 7
        %v904 = vsub.s32 %v901, %v903
        %v905 = vrot.slane %v898, %v904
        %v906 = vcombine.low %v660, %v667
        %v908 = vunpack.c.l.s4 1983009808
        %v909 = vunpack.c.0.s8 %v908
        %v910 = vlaneseq
        %v911 = vshrl.u32 %v910, 7
        %v912 = vsub.s32 %v909, %v911
        %v913 = vrot.slane %v906, %v912
        %v914 = vcombine.low %v670, %v671
        %v916 = vunpack.c.l.s4 1983009808
        %v917 = vunpack.c.0.s8 %v916
        %v918 = vlaneseq
        %v919 = vshrl.u32 %v918, 7
        %v920 = vsub.s32 %v917, %v919
        %v921 = vrot.slane %v914, %v920
        %v922 = vcombine.low %v897, %v905
        %v923 = vcombine.high %v897, %v905
        %v925 = vunpack.c.l.s4 1934713408
        %v926 = vunpack.c.0.s8 %v925
        %v927 = vlaneseq
        %v928 = vshrl.u32 %v927, 7
        %v929 = vsub.s32 %v926, %v928
        %v930 = vrot.slane %v922, %v929
        %v932 = vunpack.c.l.s4 1934713408
        %v933 = vunpack.c.0.s8 %v932
        %v934 = vlaneseq
        %v935 = vshrl.u32 %v934, 7
        %v936 = vsub.s32 %v933, %v935
        %v937 = vrot.slane %v923, %v936
        %v938 = vcombine.low %v913, %v921
        %v939 = vcombine.high %v913, %v921
        %v941 = vunpack.c.l.s4 1934713408
        %v942 = vunpack.c.0.s8 %v941
        %v943 = vlaneseq
        %v944 = vshrl.u32 %v943, 7
        %v945 = vsub.s32 %v942, %v944
        %v946 = vrot.slane %v938, %v945
        %v948 = vunpack.c.l.s4 1934713408
        %v949 = vunpack.c.0.s8 %v948
        %v950 = vlaneseq
        %v951 = vshrl.u32 %v950, 7
        %v952 = vsub.s32 %v949, %v951
        %v953 = vrot.slane %v939, %v952
        %v954 = vcombine.low %v930, %v946
        %v955 = vcombine.high %v930, %v946
        %v956 = vcombine.low %v937, %v953
        %v957 = vcombine.high %v937, %v953
        %v958 = vmul.f32 %v954, 0.35355338
        %v959 = vmul.f32 %v955, 0.35355338
        %v960 = vmul.f32 %v956, 0.35355338
        %v961 = vmul.f32 %v957, 0.35355338
        %v962 = vcombine.low %v736, %v743
        %v964 = vunpack.c.l.s4 1983009808
        %v965 = vunpack.c.0.s8 %v964
        %v966 = vlaneseq
        %v967 = vshrl.u32 %v966, 7
        %v968 = vsub.s32 %v965, %v967
        %v969 = vrot.slane %v962, %v968
        %v970 = vcombine.low %v760, %v761
        %v972 = vunpack.c.l.s4 1983009808
        %v973 = vunpack.c.0.s8 %v972
        %v974 = vlaneseq
        %v975 = vshrl.u32 %v974, 7
        %v976 = vsub.s32 %v973, %v975
        %v977 = vrot.slane %v970, %v976
        %v978 = vcombine.low %v752, %v759
        %v980 = vunpack.c.l.s4 1983009808
        %v981 = vunpack.c.0.s8 %v980
        %v982 = vlaneseq
        %v983 = vshrl.u32 %v982, 7
        %v984 = vsub.s32 %v981, %v983
        %v985 = vrot.slane %v978, %v984
        %v986 = vcombine.low %v762, %v763
        %v988 = vunpack.c.l.s4 1983009808
        %v989 = vunpack.c.0.s8 %v988
        %v990 = vlaneseq
        %v991 = vshrl.u32 %v990, 7
        %v992 = vsub.s32 %v989, %v991
        %v993 = vrot.slane %v986, %v992
        %v994 = vcombine.low %v969, %v977
        %v995 = vcombine.high %v969, %v977
        %v997 = vunpack.c.l.s4 1934713408
        %v998 = vunpack.c.0.s8 %v997
        %v999 = vlaneseq
        %v1000 = vshrl.u32 %v999, 7
        %v1001 = vsub.s32 %v998, %v1000
        %v1002 = vrot.slane %v994, %v1001
        %v1004 = vunpack.c.l.s4 1934713408
        %v1005 = vunpack.c.0.s8 %v1004
        %v1006 = vlaneseq
        %v1007 = vshrl.u32 %v1006, 7
        %v1008 = vsub.s32 %v1005, %v1007
        %v1009 = vrot.slane %v995, %v1008
        %v1010 = vcombine.low %v985, %v993
        %v1011 = vcombine.high %v985, %v993
        %v1013 = vunpack.c.l.s4 1934713408
        %v1014 = vunpack.c.0.s8 %v1013
        %v1015 = vlaneseq
        %v1016 = vshrl.u32 %v1015, 7
        %v1017 = vsub.s32 %v1014, %v1016
        %v1018 = vrot.slane %v1010, %v1017
        %v1020 = vunpack.c.l.s4 1934713408
        %v1021 = vunpack.c.0.s8 %v1020
        %v1022 = vlaneseq
        %v1023 = vshrl.u32 %v1022, 7
        %v1024 = vsub.s32 %v1021, %v1023
        %v1025 = vrot.slane %v1011, %v1024
        %v1026 = vcombine.low %v1002, %v1018
        %v1027 = vcombine.high %v1002, %v1018
        %v1028 = vcombine.low %v1009, %v1025
        %v1029 = vcombine.high %v1009, %v1025
        %v1031 = vunpack.c.l.s4 1934713408
        %v1032 = vunpack.c.0.s8 %v1031
        %v1033 = vlaneseq
        %v1034 = vshrl.u32 %v1033, 7
        %v1035 = vsub.s32 %v1032, %v1034
        %v1036 = vrot.slane %v780, %v1035
        %v1038 = vunpack.c.l.s4 1983009808
        %v1039 = vunpack.c.0.s8 %v1038
        %v1040 = vlaneseq
        %v1041 = vshrl.u32 %v1040, 7
        %v1042 = vsub.s32 %v1039, %v1041
        %v1043 = vrot.slane %v1036, %v1042
        %v1044 = vcombine.high %v1043, 0.0
        %v1046 = vunpack.c.l.s4 1934713408
        %v1047 = vunpack.c.0.s8 %v1046
        %v1048 = vlaneseq
        %v1049 = vshrl.u32 %v1048, 7
        %v1050 = vsub.s32 %v1047, %v1049
        %v1051 = vrot.slane %v1043, %v1050
        %v1053 = vunpack.c.l.s4 1934713408
        %v1054 = vunpack.c.0.s8 %v1053
        %v1055 = vlaneseq
        %v1056 = vshrl.u32 %v1055, 7
        %v1057 = vsub.s32 %v1054, %v1056
        %v1058 = vrot.slane %v1044, %v1057
        %v1059 = vcombine.high %v1051, 0.0
        %v1060 = vcombine.high %v1058, 0.0
        %v1061 = vcombine.low %v845, %v852
        %v1063 = vunpack.c.l.s4 1983009808
        %v1064 = vunpack.c.0.s8 %v1063
        %v1065 = vlaneseq
        %v1066 = vshrl.u32 %v1065, 7
        %v1067 = vsub.s32 %v1064, %v1066
        %v1068 = vrot.slane %v1061, %v1067
        %v1069 = vcombine.low %v869, %v870
        %v1071 = vunpack.c.l.s4 1983009808
        %v1072 = vunpack.c.0.s8 %v1071
        %v1073 = vlaneseq
        %v1074 = vshrl.u32 %v1073, 7
        %v1075 = vsub.s32 %v1072, %v1074
        %v1076 = vrot.slane %v1069, %v1075
        %v1077 = vcombine.low %v861, %v868
        %v1079 = vunpack.c.l.s4 1983009808
        %v1080 = vunpack.c.0.s8 %v1079
        %v1081 = vlaneseq
        %v1082 = vshrl.u32 %v1081, 7
        %v1083 = vsub.s32 %v1080, %v1082
        %v1084 = vrot.slane %v1077, %v1083
        %v1085 = vcombine.low %v871, %v872
        %v1087 = vunpack.c.l.s4 1983009808
        %v1088 = vunpack.c.0.s8 %v1087
        %v1089 = vlaneseq
        %v1090 = vshrl.u32 %v1089, 7
        %v1091 = vsub.s32 %v1088, %v1090
        %v1092 = vrot.slane %v1085, %v1091
        %v1093 = vcombine.low %v1068, %v1076
        %v1094 = vcombine.high %v1068, %v1076
        %v1096 = vunpack.c.l.s4 1934713408
        %v1097 = vunpack.c.0.s8 %v1096
        %v1098 = vlaneseq
        %v1099 = vshrl.u32 %v1098, 7
        %v1100 = vsub.s32 %v1097, %v1099
        %v1101 = vrot.slane %v1093, %v1100
        %v1103 = vunpack.c.l.s4 1934713408
        %v1104 = vunpack.c.0.s8 %v1103
        %v1105 = vlaneseq
        %v1106 = vshrl.u32 %v1105, 7
        %v1107 = vsub.s32 %v1104, %v1106
        %v1108 = vrot.slane %v1094, %v1107
        %v1109 = vcombine.low %v1084, %v1092
        %v1110 = vcombine.high %v1084, %v1092
        %v1112 = vunpack.c.l.s4 1934713408
        %v1113 = vunpack.c.0.s8 %v1112
        %v1114 = vlaneseq
        %v1115 = vshrl.u32 %v1114, 7
        %v1116 = vsub.s32 %v1113, %v1115
        %v1117 = vrot.slane %v1109, %v1116
        %v1119 = vunpack.c.l.s4 1934713408
        %v1120 = vunpack.c.0.s8 %v1119
        %v1121 = vlaneseq
        %v1122 = vshrl.u32 %v1121, 7
        %v1123 = vsub.s32 %v1120, %v1122
        %v1124 = vrot.slane %v1110, %v1123
        %v1125 = vcombine.low %v1101, %v1117
        %v1126 = vcombine.high %v1101, %v1117
        %v1127 = vcombine.low %v1108, %v1124
        %v1128 = vcombine.high %v1108, %v1124
        %v1130 = vunpack.c.l.s4 1934713408
        %v1131 = vunpack.c.0.s8 %v1130
        %v1132 = vlaneseq
        %v1133 = vshrl.u32 %v1132, 7
        %v1134 = vsub.s32 %v1131, %v1133
        %v1135 = vrot.slane %v889, %v1134
        %v1137 = vunpack.c.l.s4 1983009808
        %v1138 = vunpack.c.0.s8 %v1137
        %v1139 = vlaneseq
        %v1140 = vshrl.u32 %v1139, 7
        %v1141 = vsub.s32 %v1138, %v1140
        %v1142 = vrot.slane %v1135, %v1141
        %v1143 = vcombine.high %v1142, 0.0
        %v1145 = vunpack.c.l.s4 1934713408
        %v1146 = vunpack.c.0.s8 %v1145
        %v1147 = vlaneseq
        %v1148 = vshrl.u32 %v1147, 7
        %v1149 = vsub.s32 %v1146, %v1148
        %v1150 = vrot.slane %v1142, %v1149
        %v1152 = vunpack.c.l.s4 1934713408
        %v1153 = vunpack.c.0.s8 %v1152
        %v1154 = vlaneseq
        %v1155 = vshrl.u32 %v1154, 7
        %v1156 = vsub.s32 %v1153, %v1155
        %v1157 = vrot.slane %v1143, %v1156
        %v1158 = vcombine.high %v1150, 0.0
        %v1159 = vcombine.high %v1157, 0.0
        %v1160 = vpack.c.bf16 %v958, %v958
        %v1161 = vpack.c.bf16 %v959, %v959
        %v1162 = vpack.c.bf16 %v960, %v960
        %v1163 = vpack.c.bf16 %v961, %v961
        %v1164 = vpack.c.bf16 %v1051, %v1026
        %v1165 = vpack.c.bf16 %v1059, %v1027
        %v1166 = vpack.c.bf16 %v1058, %v1028
        %v1167 = vpack.c.bf16 %v1060, %v1029
        %vm1168 = vcmask 64512
        %v1170 = vsel %vm1168, %v1160, 0
        %v1173 = vsel %vm1168, %v1164, 0
        %1175 = vmatprep.subr.bf16.mxu0 0
        %1176 = vmatpush1.bf16.xpose.msra.mxu0 %v1173
        %1177 = vmatprep.subr.bf16.mxu0 0
        %1178 = vmatpush1.bf16.xpose.msra.mxu0 0
        %1179 = vmatprep.subr.bf16.mxu0 0
        %1180 = vmatpush1.bf16.xpose.msra.mxu0 0
        %1181 = vmatprep.subr.bf16.mxu0 0
        %1182 = vmatpush1.bf16.xpose.msra.mxu0 0
        %1183 = vmatprep.subr.bf16.mxu0 0
        %1184 = vmatpush1.bf16.xpose.msra.mxu0 0
        %1185 = vmatprep.subr.bf16.mxu0 0
        %1186 = vmatpush1.bf16.xpose.msra.mxu0 0
        %1187 = vmatprep.subr.bf16.mxu0 0
        %1188 = vmatpush1.bf16.xpose.msra.mxu0 0
        %1189 = vmatprep.subr.bf16.mxu0 0
        %1190 = vmatpush1.bf16.xpose.msra.mxu0 0
        %1191 = vmatprep.subr.bf16.mxu0 0
        %1192 = vmatpush1.bf16.xpose.msra.mxu0 0
        %1193 = vmatprep.subr.bf16.mxu0 0
        %1194 = vmatpush1.bf16.xpose.msra.mxu0 0
        %1195 = vmatprep.subr.bf16.mxu0 0
        %1196 = vmatpush1.bf16.xpose.msra.mxu0 0
        %1197 = vmatprep.subr.bf16.mxu0 0
        %1198 = vmatpush1.bf16.xpose.msra.mxu0 0
        %1199 = vmatprep.subr.bf16.mxu0 0
        %1200 = vmatpush1.bf16.xpose.msra.mxu0 0
        %1201 = vmatprep.subr.bf16.mxu0 0
        %1202 = vmatpush1.bf16.xpose.msra.mxu0 0
        %1203 = vmatprep.subr.bf16.mxu0 0
        %1204 = vmatpush1.bf16.xpose.msra.mxu0 0
        %1205 = vmatprep.subr.bf16.mxu0 0
        %1206 = vmatpush1.bf16.xpose.msra.mxu0 0
        %1207 = vmatprep.mubr.bf16.mxu0 0
        %1208 = vmatmul.mubr.bf16.gmra.mrb[0].mxu0 %v1170
        %v1209 = vpop.f32.mrb[0].mxu0
        %v1210 = vadd.f32 0.0, %v1209
        %v1211 = vpop.f32.mrb[0].mxu0
        %v1212 = vpop.f32.mrb[0].mxu0
        %v1213 = vpop.f32.mrb[0].mxu0
        %1214 = vdwg.mxu0
        %v1216 = vsel %vm1168, %v1161, 0
        %v1219 = vsel %vm1168, %v1165, 0
        %1221 = vmatprep.subr.bf16.mxu0 0
        %1222 = vmatpush1.bf16.xpose.msra.mxu0 %v1219
        %1223 = vmatprep.subr.bf16.mxu0 0
        %1224 = vmatpush1.bf16.xpose.msra.mxu0 0
        %1225 = vmatprep.subr.bf16.mxu0 0
        %1226 = vmatpush1.bf16.xpose.msra.mxu0 0
        %1227 = vmatprep.subr.bf16.mxu0 0
        %1228 = vmatpush1.bf16.xpose.msra.mxu0 0
        %1229 = vmatprep.subr.bf16.mxu0 0
        %1230 = vmatpush1.bf16.xpose.msra.mxu0 0
        %1231 = vmatprep.subr.bf16.mxu0 0
        %1232 = vmatpush1.bf16.xpose.msra.mxu0 0
        %1233 = vmatprep.subr.bf16.mxu0 0
        %1234 = vmatpush1.bf16.xpose.msra.mxu0 0
        %1235 = vmatprep.subr.bf16.mxu0 0
        %1236 = vmatpush1.bf16.xpose.msra.mxu0 0
        %1237 = vmatprep.subr.bf16.mxu0 0
        %1238 = vmatpush1.bf16.xpose.msra.mxu0 0
        %1239 = vmatprep.subr.bf16.mxu0 0
        %1240 = vmatpush1.bf16.xpose.msra.mxu0 0
        %1241 = vmatprep.subr.bf16.mxu0 0
        %1242 = vmatpush1.bf16.xpose.msra.mxu0 0
        %1243 = vmatprep.subr.bf16.mxu0 0
        %1244 = vmatpush1.bf16.xpose.msra.mxu0 0
        %1245 = vmatprep.subr.bf16.mxu0 0
        %1246 = vmatpush1.bf16.xpose.msra.mxu0 0
        %1247 = vmatprep.subr.bf16.mxu0 0
        %1248 = vmatpush1.bf16.xpose.msra.mxu0 0
        %1249 = vmatprep.subr.bf16.mxu0 0
        %1250 = vmatpush1.bf16.xpose.msra.mxu0 0
        %1251 = vmatprep.subr.bf16.mxu0 0
        %1252 = vmatpush1.bf16.xpose.msra.mxu0 0
        %1253 = vmatprep.mubr.bf16.mxu0 0
        %1254 = vmatmul.mubr.bf16.gmra.mrb[0].mxu0 %v1216
        %v1255 = vpop.f32.mrb[0].mxu0
        %v1256 = vadd.f32 0.0, %v1255
        %v1257 = vpop.f32.mrb[0].mxu0
        %v1258 = vpop.f32.mrb[0].mxu0
        %v1259 = vpop.f32.mrb[0].mxu0
        %1260 = vdwg.mxu0
        %v1262 = vsel %vm1168, %v1162, 0
        %v1265 = vsel %vm1168, %v1166, 0
        %1267 = vmatprep.subr.bf16.mxu0 0
        %1268 = vmatpush1.bf16.xpose.msra.mxu0 %v1265
        %1269 = vmatprep.subr.bf16.mxu0 0
        %1270 = vmatpush1.bf16.xpose.msra.mxu0 0
        %1271 = vmatprep.subr.bf16.mxu0 0
        %1272 = vmatpush1.bf16.xpose.msra.mxu0 0
        %1273 = vmatprep.subr.bf16.mxu0 0
        %1274 = vmatpush1.bf16.xpose.msra.mxu0 0
        %1275 = vmatprep.subr.bf16.mxu0 0
        %1276 = vmatpush1.bf16.xpose.msra.mxu0 0
        %1277 = vmatprep.subr.bf16.mxu0 0
        %1278 = vmatpush1.bf16.xpose.msra.mxu0 0
        %1279 = vmatprep.subr.bf16.mxu0 0
        %1280 = vmatpush1.bf16.xpose.msra.mxu0 0
        %1281 = vmatprep.subr.bf16.mxu0 0
        %1282 = vmatpush1.bf16.xpose.msra.mxu0 0
        %1283 = vmatprep.subr.bf16.mxu0 0
        %1284 = vmatpush1.bf16.xpose.msra.mxu0 0
        %1285 = vmatprep.subr.bf16.mxu0 0
        %1286 = vmatpush1.bf16.xpose.msra.mxu0 0
        %1287 = vmatprep.subr.bf16.mxu0 0
        %1288 = vmatpush1.bf16.xpose.msra.mxu0 0
        %1289 = vmatprep.subr.bf16.mxu0 0
        %1290 = vmatpush1.bf16.xpose.msra.mxu0 0
        %1291 = vmatprep.subr.bf16.mxu0 0
        %1292 = vmatpush1.bf16.xpose.msra.mxu0 0
        %1293 = vmatprep.subr.bf16.mxu0 0
        %1294 = vmatpush1.bf16.xpose.msra.mxu0 0
        %1295 = vmatprep.subr.bf16.mxu0 0
        %1296 = vmatpush1.bf16.xpose.msra.mxu0 0
        %1297 = vmatprep.subr.bf16.mxu0 0
        %1298 = vmatpush1.bf16.xpose.msra.mxu0 0
        %1299 = vmatprep.mubr.bf16.mxu0 0
        %1300 = vmatmul.mubr.bf16.gmra.mrb[0].mxu0 %v1262
        %v1301 = vpop.f32.mrb[0].mxu0
        %v1302 = vadd.f32 0.0, %v1301
        %v1303 = vpop.f32.mrb[0].mxu0
        %v1304 = vpop.f32.mrb[0].mxu0
        %v1305 = vpop.f32.mrb[0].mxu0
        %1306 = vdwg.mxu0
        %v1308 = vsel %vm1168, %v1163, 0
        %v1311 = vsel %vm1168, %v1167, 0
        %1313 = vmatprep.subr.bf16.mxu0 0
        %1314 = vmatpush1.bf16.xpose.msra.mxu0 %v1311
        %1315 = vmatprep.subr.bf16.mxu0 0
        %1316 = vmatpush1.bf16.xpose.msra.mxu0 0
        %1317 = vmatprep.subr.bf16.mxu0 0
        %1318 = vmatpush1.bf16.xpose.msra.mxu0 0
        %1319 = vmatprep.subr.bf16.mxu0 0
        %1320 = vmatpush1.bf16.xpose.msra.mxu0 0
        %1321 = vmatprep.subr.bf16.mxu0 0
        %1322 = vmatpush1.bf16.xpose.msra.mxu0 0
        %1323 = vmatprep.subr.bf16.mxu0 0
        %1324 = vmatpush1.bf16.xpose.msra.mxu0 0
        %1325 = vmatprep.subr.bf16.mxu0 0
        %1326 = vmatpush1.bf16.xpose.msra.mxu0 0
        %1327 = vmatprep.subr.bf16.mxu0 0
        %1328 = vmatpush1.bf16.xpose.msra.mxu0 0
        %1329 = vmatprep.subr.bf16.mxu0 0
        %1330 = vmatpush1.bf16.xpose.msra.mxu0 0
        %1331 = vmatprep.subr.bf16.mxu0 0
        %1332 = vmatpush1.bf16.xpose.msra.mxu0 0
        %1333 = vmatprep.subr.bf16.mxu0 0
        %1334 = vmatpush1.bf16.xpose.msra.mxu0 0
        %1335 = vmatprep.subr.bf16.mxu0 0
        %1336 = vmatpush1.bf16.xpose.msra.mxu0 0
        %1337 = vmatprep.subr.bf16.mxu0 0
        %1338 = vmatpush1.bf16.xpose.msra.mxu0 0
        %1339 = vmatprep.subr.bf16.mxu0 0
        %1340 = vmatpush1.bf16.xpose.msra.mxu0 0
        %1341 = vmatprep.subr.bf16.mxu0 0
        %1342 = vmatpush1.bf16.xpose.msra.mxu0 0
        %1343 = vmatprep.subr.bf16.mxu0 0
        %1344 = vmatpush1.bf16.xpose.msra.mxu0 0
        %1345 = vmatprep.mubr.bf16.mxu0 0
        %1346 = vmatmul.mubr.bf16.gmra.mrb[0].mxu0 %v1308
        %v1347 = vpop.f32.mrb[0].mxu0
        %v1348 = vadd.f32 0.0, %v1347
        %v1349 = vpop.f32.mrb[0].mxu0
        %v1350 = vpop.f32.mrb[0].mxu0
        %v1351 = vpop.f32.mrb[0].mxu0
        %1352 = vdwg.mxu0
        %vm1353 = vcmask 65536
        %v1354 = vsel %vm1353, %v1210, -inf
        %1355 = vmax.xlane.f32.xlu0 %v1354
        %v1356 = vpop.xlane.xlu0 %1355
        %v1357 = vsel %vm1353, %v1256, -inf
        %1358 = vmax.xlane.f32.xlu0 %v1357
        %v1359 = vpop.xlane.xlu0 %1358
        %v1360 = vsel %vm1353, %v1302, -inf
        %1361 = vmax.xlane.f32.xlu0 %v1360
        %v1362 = vpop.xlane.xlu0 %1361
        %v1363 = vsel %vm1353, %v1348, -inf
        %1364 = vmax.xlane.f32.xlu0 %v1363
        %v1365 = vpop.xlane.xlu0 %1364
        %v1366 = vsub.f32 %v1210, %v1356
        %v1367 = vsub.f32 %v1256, %v1359
        %v1368 = vsub.f32 %v1302, %v1362
        %v1369 = vsub.f32 %v1348, %v1365
        %v1370 = vmul.f32 %v1366, 1.442695
        %v1371 = vpow.pop %v1370
        %v1372 = vmul.f32 %v1367, 1.442695
        %v1373 = vpow.pop %v1372
        %v1374 = vmul.f32 %v1368, 1.442695
        %v1375 = vpow.pop %v1374
        %v1376 = vmul.f32 %v1369, 1.442695
        %v1377 = vpow.pop %v1376
        %v1378 = vsel %vm1353, %v1371, 0.0
        %1379 = vadd.xlane.f32.xlu0 %v1378
        %v1380 = vpop.xlane.xlu0 %1379
        %v1381 = vsel %vm1353, %v1373, 0.0
        %1382 = vadd.xlane.f32.xlu0 %v1381
        %v1383 = vpop.xlane.xlu0 %1382
        %v1384 = vsel %vm1353, %v1375, 0.0
        %1385 = vadd.xlane.f32.xlu0 %v1384
        %v1386 = vpop.xlane.xlu0 %1385
        %v1387 = vsel %vm1353, %v1377, 0.0
        %1388 = vadd.xlane.f32.xlu0 %v1387
        %v1389 = vpop.xlane.xlu0 %1388
        %v1390 = vpack.c.bf16 %v1371, %v1371
        %v1391 = vpack.c.bf16 %v1373, %v1373
        %v1392 = vpack.c.bf16 %v1375, %v1375
        %v1393 = vpack.c.bf16 %v1377, %v1377
        %v1394 = vpack.c.bf16 %v1150, %v1125
        %v1395 = vpack.c.bf16 %v1158, %v1126
        %v1396 = vpack.c.bf16 %v1157, %v1127
        %v1397 = vpack.c.bf16 %v1159, %v1128
        %vm1398 = vcmask 72704
        %v1400 = vsel %vm1398, %v1390, 0
        %vm1402 = vcmask 1043456
        %vm1403 = vcmask 1044480
        %v1404 = vsel %vm1402, 4294967295, 65535
        %v1405 = vsel %vm1403, %v1404, 0
        %v1407 = vand.u32 %v1394, %v1405
        %1409 = vmatprep.subr.bf16.mxu0 0
        %1410 = vmatpush1.bf16.msra.mxu0 %v1407
        %1411 = vmatprep.subr.bf16.mxu0 0
        %1412 = vmatpush1.bf16.msra.mxu0 0
        %1413 = vmatprep.subr.bf16.mxu0 0
        %1414 = vmatpush1.bf16.msra.mxu0 0
        %1415 = vmatprep.subr.bf16.mxu0 0
        %1416 = vmatpush1.bf16.msra.mxu0 0
        %1417 = vmatprep.subr.bf16.mxu0 0
        %1418 = vmatpush1.bf16.msra.mxu0 0
        %1419 = vmatprep.subr.bf16.mxu0 0
        %1420 = vmatpush1.bf16.msra.mxu0 0
        %1421 = vmatprep.subr.bf16.mxu0 0
        %1422 = vmatpush1.bf16.msra.mxu0 0
        %1423 = vmatprep.subr.bf16.mxu0 0
        %1424 = vmatpush1.bf16.msra.mxu0 0
        %1425 = vmatprep.subr.bf16.mxu0 0
        %1426 = vmatpush1.bf16.msra.mxu0 0
        %1427 = vmatprep.subr.bf16.mxu0 0
        %1428 = vmatpush1.bf16.msra.mxu0 0
        %1429 = vmatprep.subr.bf16.mxu0 0
        %1430 = vmatpush1.bf16.msra.mxu0 0
        %1431 = vmatprep.subr.bf16.mxu0 0
        %1432 = vmatpush1.bf16.msra.mxu0 0
        %1433 = vmatprep.subr.bf16.mxu0 0
        %1434 = vmatpush1.bf16.msra.mxu0 0
        %1435 = vmatprep.subr.bf16.mxu0 0
        %1436 = vmatpush1.bf16.msra.mxu0 0
        %1437 = vmatprep.subr.bf16.mxu0 0
        %1438 = vmatpush1.bf16.msra.mxu0 0
        %1439 = vmatprep.subr.bf16.mxu0 0
        %1440 = vmatpush1.bf16.msra.mxu0 0
        %1441 = vmatprep.mubr.bf16.mxu0 0
        %1442 = vmatmul.mubr.bf16.gmra.mrb[0].mxu0 %v1400
        %v1443 = vpop.f32.mrb[0].mxu0
        %v1444 = vadd.f32 0.0, %v1443
        %v1445 = vpop.f32.mrb[0].mxu0
        %v1446 = vpop.f32.mrb[0].mxu0
        %v1447 = vpop.f32.mrb[0].mxu0
        %1448 = vdwg.mxu0
        %v1450 = vsel %vm1398, %v1391, 0
        %v1453 = vand.u32 %v1395, %v1405
        %1455 = vmatprep.subr.bf16.mxu0 0
        %1456 = vmatpush1.bf16.msra.mxu0 %v1453
        %1457 = vmatprep.subr.bf16.mxu0 0
        %1458 = vmatpush1.bf16.msra.mxu0 0
        %1459 = vmatprep.subr.bf16.mxu0 0
        %1460 = vmatpush1.bf16.msra.mxu0 0
        %1461 = vmatprep.subr.bf16.mxu0 0
        %1462 = vmatpush1.bf16.msra.mxu0 0
        %1463 = vmatprep.subr.bf16.mxu0 0
        %1464 = vmatpush1.bf16.msra.mxu0 0
        %1465 = vmatprep.subr.bf16.mxu0 0
        %1466 = vmatpush1.bf16.msra.mxu0 0
        %1467 = vmatprep.subr.bf16.mxu0 0
        %1468 = vmatpush1.bf16.msra.mxu0 0
        %1469 = vmatprep.subr.bf16.mxu0 0
        %1470 = vmatpush1.bf16.msra.mxu0 0
        %1471 = vmatprep.subr.bf16.mxu0 0
        %1472 = vmatpush1.bf16.msra.mxu0 0
        %1473 = vmatprep.subr.bf16.mxu0 0
        %1474 = vmatpush1.bf16.msra.mxu0 0
        %1475 = vmatprep.subr.bf16.mxu0 0
        %1476 = vmatpush1.bf16.msra.mxu0 0
        %1477 = vmatprep.subr.bf16.mxu0 0
        %1478 = vmatpush1.bf16.msra.mxu0 0
        %1479 = vmatprep.subr.bf16.mxu0 0
        %1480 = vmatpush1.bf16.msra.mxu0 0
        %1481 = vmatprep.subr.bf16.mxu0 0
        %1482 = vmatpush1.bf16.msra.mxu0 0
        %1483 = vmatprep.subr.bf16.mxu0 0
        %1484 = vmatpush1.bf16.msra.mxu0 0
        %1485 = vmatprep.subr.bf16.mxu0 0
        %1486 = vmatpush1.bf16.msra.mxu0 0
        %1487 = vmatprep.mubr.bf16.mxu0 0
        %1488 = vmatmul.mubr.bf16.gmra.mrb[0].mxu0 %v1450
        %v1489 = vpop.f32.mrb[0].mxu0
        %v1490 = vadd.f32 0.0, %v1489
        %v1491 = vpop.f32.mrb[0].mxu0
        %v1492 = vpop.f32.mrb[0].mxu0
        %v1493 = vpop.f32.mrb[0].mxu0
        %1494 = vdwg.mxu0
        %v1496 = vsel %vm1398, %v1392, 0
        %v1499 = vand.u32 %v1396, %v1405
        %1501 = vmatprep.subr.bf16.mxu0 0
        %1502 = vmatpush1.bf16.msra.mxu0 %v1499
        %1503 = vmatprep.subr.bf16.mxu0 0
        %1504 = vmatpush1.bf16.msra.mxu0 0
        %1505 = vmatprep.subr.bf16.mxu0 0
        %1506 = vmatpush1.bf16.msra.mxu0 0
        %1507 = vmatprep.subr.bf16.mxu0 0
        %1508 = vmatpush1.bf16.msra.mxu0 0
        %1509 = vmatprep.subr.bf16.mxu0 0
        %1510 = vmatpush1.bf16.msra.mxu0 0
        %1511 = vmatprep.subr.bf16.mxu0 0
        %1512 = vmatpush1.bf16.msra.mxu0 0
        %1513 = vmatprep.subr.bf16.mxu0 0
        %1514 = vmatpush1.bf16.msra.mxu0 0
        %1515 = vmatprep.subr.bf16.mxu0 0
        %1516 = vmatpush1.bf16.msra.mxu0 0
        %1517 = vmatprep.subr.bf16.mxu0 0
        %1518 = vmatpush1.bf16.msra.mxu0 0
        %1519 = vmatprep.subr.bf16.mxu0 0
        %1520 = vmatpush1.bf16.msra.mxu0 0
        %1521 = vmatprep.subr.bf16.mxu0 0
        %1522 = vmatpush1.bf16.msra.mxu0 0
        %1523 = vmatprep.subr.bf16.mxu0 0
        %1524 = vmatpush1.bf16.msra.mxu0 0
        %1525 = vmatprep.subr.bf16.mxu0 0
        %1526 = vmatpush1.bf16.msra.mxu0 0
        %1527 = vmatprep.subr.bf16.mxu0 0
        %1528 = vmatpush1.bf16.msra.mxu0 0
        %1529 = vmatprep.subr.bf16.mxu0 0
        %1530 = vmatpush1.bf16.msra.mxu0 0
        %1531 = vmatprep.subr.bf16.mxu0 0
        %1532 = vmatpush1.bf16.msra.mxu0 0
        %1533 = vmatprep.mubr.bf16.mxu0 0
        %1534 = vmatmul.mubr.bf16.gmra.mrb[0].mxu0 %v1496
        %v1535 = vpop.f32.mrb[0].mxu0
        %v1536 = vadd.f32 0.0, %v1535
        %v1537 = vpop.f32.mrb[0].mxu0
        %v1538 = vpop.f32.mrb[0].mxu0
        %v1539 = vpop.f32.mrb[0].mxu0
        %1540 = vdwg.mxu0
        %v1542 = vsel %vm1398, %v1393, 0
        %v1545 = vand.u32 %v1397, %v1405
        %1547 = vmatprep.subr.bf16.mxu0 0
        %1548 = vmatpush1.bf16.msra.mxu0 %v1545
        %1549 = vmatprep.subr.bf16.mxu0 0
        %1550 = vmatpush1.bf16.msra.mxu0 0
        %1551 = vmatprep.subr.bf16.mxu0 0
        %1552 = vmatpush1.bf16.msra.mxu0 0
        %1553 = vmatprep.subr.bf16.mxu0 0
        %1554 = vmatpush1.bf16.msra.mxu0 0
        %1555 = vmatprep.subr.bf16.mxu0 0
        %1556 = vmatpush1.bf16.msra.mxu0 0
        %1557 = vmatprep.subr.bf16.mxu0 0
        %1558 = vmatpush1.bf16.msra.mxu0 0
        %1559 = vmatprep.subr.bf16.mxu0 0
        %1560 = vmatpush1.bf16.msra.mxu0 0
        %1561 = vmatprep.subr.bf16.mxu0 0
        %1562 = vmatpush1.bf16.msra.mxu0 0
        %1563 = vmatprep.subr.bf16.mxu0 0
        %1564 = vmatpush1.bf16.msra.mxu0 0
        %1565 = vmatprep.subr.bf16.mxu0 0
        %1566 = vmatpush1.bf16.msra.mxu0 0
        %1567 = vmatprep.subr.bf16.mxu0 0
        %1568 = vmatpush1.bf16.msra.mxu0 0
        %1569 = vmatprep.subr.bf16.mxu0 0
        %1570 = vmatpush1.bf16.msra.mxu0 0
        %1571 = vmatprep.subr.bf16.mxu0 0
        %1572 = vmatpush1.bf16.msra.mxu0 0
        %1573 = vmatprep.subr.bf16.mxu0 0
        %1574 = vmatpush1.bf16.msra.mxu0 0
        %1575 = vmatprep.subr.bf16.mxu0 0
        %1576 = vmatpush1.bf16.msra.mxu0 0
        %1577 = vmatprep.subr.bf16.mxu0 0
        %1578 = vmatpush1.bf16.msra.mxu0 0
        %1579 = vmatprep.mubr.bf16.mxu0 0
        %1580 = vmatmul.mubr.bf16.gmra.mrb[0].mxu0 %v1542
        %v1581 = vpop.f32.mrb[0].mxu0
        %v1582 = vadd.f32 0.0, %v1581
        %v1583 = vpop.f32.mrb[0].mxu0
        %v1584 = vpop.f32.mrb[0].mxu0
        %v1585 = vpop.f32.mrb[0].mxu0
        %1586 = vdwg.mxu0
        %v1587 = vrcp.pop %v1380
        %v1588 = vrcp.pop %v1383
        %v1589 = vrcp.pop %v1386
        %v1590 = vrcp.pop %v1389
        %v1591 = vmul.f32 %v1444, %v1587
        %v1592 = vmul.f32 %v1490, %v1588
        %v1593 = vmul.f32 %v1536, %v1589
        %v1594 = vmul.f32 %v1582, %v1590
        %v1595 = vcombine.low %v1591, %v1593
        %v1597 = vunpack.c.l.s4 1983009808
        %v1598 = vunpack.c.0.s8 %v1597
        %v1599 = vlaneseq
        %v1600 = vshrl.u32 %v1599, 7
        %v1601 = vsub.s32 %v1598, %v1600
        %v1602 = vrot.slane %v1595, %v1601
        %v1603 = vcombine.low %v1592, %v1594
        %v1605 = vunpack.c.l.s4 1983009808
        %v1606 = vunpack.c.0.s8 %v1605
        %v1607 = vlaneseq
        %v1608 = vshrl.u32 %v1607, 7
        %v1609 = vsub.s32 %v1606, %v1608
        %v1610 = vrot.slane %v1603, %v1609
        %v1611 = vcombine.low %v1602, %v1610
        %v1613 = vunpack.c.l.s4 1934713408
        %v1614 = vunpack.c.0.s8 %v1613
        %v1615 = vlaneseq
        %v1616 = vshrl.u32 %v1615, 7
        %v1617 = vsub.s32 %v1614, %v1616
        %v1618 = vrot.slane %v1611, %v1617
        %v1620 = vunpack.c.l.s4 1983009808
        %v1621 = vunpack.c.0.s8 %v1620
        %v1622 = vlaneseq
        %v1623 = vshrl.u32 %v1622, 7
        %v1624 = vsub.s32 %v1621, %v1623
        %v1625 = vrot.slane %v1618, %v1624
        %v1626 = vcombine.high %v1625, 0.0
        %v1628 = vunpack.c.l.s4 1934713408
        %v1629 = vunpack.c.0.s8 %v1628
        %v1630 = vlaneseq
        %v1631 = vshrl.u32 %v1630, 7
        %v1632 = vsub.s32 %v1629, %v1631
        %v1633 = vrot.slane %v1625, %v1632
        %v1635 = vunpack.c.l.s4 1934713408
        %v1636 = vunpack.c.0.s8 %v1635
        %v1637 = vlaneseq
        %v1638 = vshrl.u32 %v1637, 7
        %v1639 = vsub.s32 %v1636, %v1638
        %v1640 = vrot.slane %v1626, %v1639
        %v1641 = vcombine.high %v1633, 0.0
        %v1642 = vcombine.high %v1640, 0.0
        %1644 = vrot.lane.b32.xlu0 %v1641, 8
        %v1645 = vpop.permute.xlu0 %1644
        %1648 = vrot.lane.b32.xlu0 %v1640, 16
        %v1649 = vpop.permute.xlu0 %1648
        %1652 = vrot.lane.b32.xlu0 %v1642, 24
        %v1653 = vpop.permute.xlu0 %1652
        %v1655 = vsel %vm1168, %v1633, %v1645
        %vm1656 = vcmask 130048
        %v1657 = vsel %vm1656, %v1655, %v1649
        %vm1658 = vcmask 195584
        %v1659 = vsel %vm1658, %v1657, %v1653
        %v1660 = vpack.c.bf16 %v1659, %v1659
        %v1665 = vunpack.c.l.b16 %v500
        %v1666 = vunpack.c.l.b16 %v501
        %v1667 = vunpack.c.l.b16 %v502
        %v1668 = vunpack.c.l.b16 %v503
        %v1669 = vpack.c.b16 %v1666, %v1665
        %v1670 = vpack.c.b16 %v1668, %v1667
        %v1674 = vsel %vm542, %v1660, 0
        %1676 = vmatprep.subr.bf16.mxu0 0
        %1677 = vmatpush1.bf16.msra.mxu0 %v1669
        %1678 = vmatprep.subr.bf16.mxu0 0
        %1679 = vmatpush1.bf16.msra.mxu0 %v1670
        %1680 = vmatprep.subr.bf16.mxu0 0
        %1681 = vmatpush1.bf16.msra.mxu0 0
        %1682 = vmatprep.subr.bf16.mxu0 0
        %1683 = vmatpush1.bf16.msra.mxu0 0
        %1684 = vmatprep.subr.bf16.mxu0 0
        %1685 = vmatpush1.bf16.msra.mxu0 0
        %1686 = vmatprep.subr.bf16.mxu0 0
        %1687 = vmatpush1.bf16.msra.mxu0 0
        %1688 = vmatprep.subr.bf16.mxu0 0
        %1689 = vmatpush1.bf16.msra.mxu0 0
        %1690 = vmatprep.subr.bf16.mxu0 0
        %1691 = vmatpush1.bf16.msra.mxu0 0
        %1692 = vmatprep.subr.bf16.mxu0 0
        %1693 = vmatpush1.bf16.msra.mxu0 0
        %1694 = vmatprep.subr.bf16.mxu0 0
        %1695 = vmatpush1.bf16.msra.mxu0 0
        %1696 = vmatprep.subr.bf16.mxu0 0
        %1697 = vmatpush1.bf16.msra.mxu0 0
        %1698 = vmatprep.subr.bf16.mxu0 0
        %1699 = vmatpush1.bf16.msra.mxu0 0
        %1700 = vmatprep.subr.bf16.mxu0 0
        %1701 = vmatpush1.bf16.msra.mxu0 0
        %1702 = vmatprep.subr.bf16.mxu0 0
        %1703 = vmatpush1.bf16.msra.mxu0 0
        %1704 = vmatprep.subr.bf16.mxu0 0
        %1705 = vmatpush1.bf16.msra.mxu0 0
        %1706 = vmatprep.subr.bf16.mxu0 0
        %1707 = vmatpush1.bf16.msra.mxu0 0
        %1708 = vmatprep.mubr.bf16.mxu0 0
        %1709 = vmatmul.mubr.bf16.gmra.mrb[0].mxu0 %v1674
        %v1710 = vpop.f32.mrb[0].mxu0
        %v1711 = vadd.f32 %v504, %v1710
        %v1712 = vpop.f32.mrb[0].mxu0
        %v1713 = vpop.f32.mrb[0].mxu0
        %v1714 = vpop.f32.mrb[0].mxu0
        %1715 = vdwg.mxu0
        %v1716 = vadd.f32 %v493, %v1711
        %vm1717 = vcmask 253952
        %v1718 = vsel %vm1717, %v1716, 0.0
        %1719 = vadd.xlane.f32.xlu0 %v1718
        %v1720 = vpop.xlane.xlu0 %1719
        %v1721 = vrcp.pop 32.0
        %v1722 = vmul.f32 %v1720, %v1721
        %v1723 = vsub.f32 %v1716, %v1722
        %v1724 = vmul.f32 %v1723, %v1723
        %v1725 = vsel %vm1717, %v1724, 0.0
        %1726 = vadd.xlane.f32.xlu0 %v1725
        %v1727 = vpop.xlane.xlu0 %1726
        %v1728 = vmul.f32 %v1727, %v1721
        %v1729 = vadd.f32 %v1728, 1e-05
        %v1730 = vrsqrt.pop %v1729
        %v1731 = vmul.f32 %v1723, %v1730
        %v1732 = vmul.f32 %v1731, %v519
        %v1733 = vadd.f32 %v1732, %v520
        %v1734 = vpack.c.bf16 %v1733, %v1733
        %v1739 = vunpack.c.l.b16 %v505
        %v1740 = vunpack.c.l.b16 %v506
        %v1741 = vunpack.c.l.b16 %v507
        %v1742 = vunpack.c.l.b16 %v508
        %v1743 = vpack.c.b16 %v1740, %v1739
        %v1744 = vpack.c.b16 %v1742, %v1741
        %v1748 = vsel %vm542, %v1734, 0
        %1750 = vmatprep.subr.bf16.mxu0 0
        %1751 = vmatpush1.bf16.msra.mxu0 %v1743
        %1752 = vmatprep.subr.bf16.mxu0 0
        %1753 = vmatpush1.bf16.msra.mxu0 %v1744
        %1754 = vmatprep.subr.bf16.mxu0 0
        %1755 = vmatpush1.bf16.msra.mxu0 0
        %1756 = vmatprep.subr.bf16.mxu0 0
        %1757 = vmatpush1.bf16.msra.mxu0 0
        %1758 = vmatprep.subr.bf16.mxu0 0
        %1759 = vmatpush1.bf16.msra.mxu0 0
        %1760 = vmatprep.subr.bf16.mxu0 0
        %1761 = vmatpush1.bf16.msra.mxu0 0
        %1762 = vmatprep.subr.bf16.mxu0 0
        %1763 = vmatpush1.bf16.msra.mxu0 0
        %1764 = vmatprep.subr.bf16.mxu0 0
        %1765 = vmatpush1.bf16.msra.mxu0 0
        %1766 = vmatprep.subr.bf16.mxu0 0
        %1767 = vmatpush1.bf16.msra.mxu0 0
        %1768 = vmatprep.subr.bf16.mxu0 0
        %1769 = vmatpush1.bf16.msra.mxu0 0
        %1770 = vmatprep.subr.bf16.mxu0 0
        %1771 = vmatpush1.bf16.msra.mxu0 0
        %1772 = vmatprep.subr.bf16.mxu0 0
        %1773 = vmatpush1.bf16.msra.mxu0 0
        %1774 = vmatprep.subr.bf16.mxu0 0
        %1775 = vmatpush1.bf16.msra.mxu0 0
        %1776 = vmatprep.subr.bf16.mxu0 0
        %1777 = vmatpush1.bf16.msra.mxu0 0
        %1778 = vmatprep.subr.bf16.mxu0 0
        %1779 = vmatpush1.bf16.msra.mxu0 0
        %1780 = vmatprep.subr.bf16.mxu0 0
        %1781 = vmatpush1.bf16.msra.mxu0 0
        %1782 = vmatprep.mubr.bf16.mxu0 0
        %1783 = vmatmul.mubr.bf16.gmra.mrb[0].mxu0 %v1748
        %v1784 = vpop.f32.mrb[0].mxu0
        %v1785 = vadd.f32 %v509, %v1784
        %v1786 = vpop.f32.mrb[0].mxu0
        %v1787 = vpop.f32.mrb[0].mxu0
        %v1788 = vpop.f32.mrb[0].mxu0
        %1789 = vdwg.mxu0
        %v1790 = vmul.f32 %v1785, 0.5
        %v1791 = vmul.f32 %v1785, 0.70710677
        %v1792 = vand.u32 2147483647, %v1791
        %v1793 = vmul.f32 %v1792, 0.3275911
        %v1794 = vadd.f32 %v1793, 1.0
        %v1795 = vrcp.pop %v1794
        %v1796 = vmul.f32 1.0, %v1795
        %v1797 = vmul.f32 %v1796, 1.0614054
        %v1798 = vadd.f32 %v1797, -1.4531521
        %v1799 = vmul.f32 %v1798, %v1796
        %v1800 = vadd.f32 %v1799, 1.4214138
        %v1801 = vmul.f32 %v1800, %v1796
        %v1802 = vadd.f32 %v1801, -0.28449672
        %v1803 = vmul.f32 %v1802, %v1796
        %v1804 = vadd.f32 %v1803, 0.2548296
        %v1805 = vmul.f32 %v1804, %v1796
        %v1806 = vsub.f32 0.0, %v1792
        %v1807 = vmul.f32 %v1806, %v1792
        %v1808 = vmul.f32 %v1807, 1.442695
        %v1809 = vpow.pop %v1808
        %v1810 = vmul.f32 %v1805, %v1809
        %v1811 = vsub.f32 1.0, %v1810
        %vm1812 = vcmp.lt.f32.partialorder %v1791, 0.0
        %v1813 = vsub.f32 0.0, %v1811
        %v1814 = vsel %vm1812, %v1813, %v1811
        %v1815 = vadd.f32 %v1814, 1.0
        %v1816 = vmul.f32 %v1790, %v1815
        %v1817 = vpack.c.bf16 %v1816, %v1816
        %v1826 = vunpack.c.l.b16 %v510
        %v1827 = vunpack.c.l.b16 %v511
        %v1828 = vunpack.c.l.b16 %v512
        %v1829 = vunpack.c.l.b16 %v513
        %v1830 = vunpack.c.l.b16 %v514
        %v1831 = vunpack.c.l.b16 %v515
        %v1832 = vunpack.c.l.b16 %v516
        %v1833 = vunpack.c.l.b16 %v517
        %v1834 = vpack.c.b16 %v1827, %v1826
        %v1835 = vpack.c.b16 %v1829, %v1828
        %v1836 = vpack.c.b16 %v1831, %v1830
        %v1837 = vpack.c.b16 %v1833, %v1832
        %vm1842 = vcmask 523264
        %v1844 = vsel %vm1842, %v1817, 0
        %1846 = vmatprep.subr.bf16.mxu0 0
        %1847 = vmatpush1.bf16.msra.mxu0 %v1834
        %1848 = vmatprep.subr.bf16.mxu0 0
        %1849 = vmatpush1.bf16.msra.mxu0 %v1835
        %1850 = vmatprep.subr.bf16.mxu0 0
        %1851 = vmatpush1.bf16.msra.mxu0 %v1836
        %1852 = vmatprep.subr.bf16.mxu0 0
        %1853 = vmatpush1.bf16.msra.mxu0 %v1837
        %1854 = vmatprep.subr.bf16.mxu0 0
        %1855 = vmatpush1.bf16.msra.mxu0 0
        %1856 = vmatprep.subr.bf16.mxu0 0
        %1857 = vmatpush1.bf16.msra.mxu0 0
        %1858 = vmatprep.subr.bf16.mxu0 0
        %1859 = vmatpush1.bf16.msra.mxu0 0
        %1860 = vmatprep.subr.bf16.mxu0 0
        %1861 = vmatpush1.bf16.msra.mxu0 0
        %1862 = vmatprep.subr.bf16.mxu0 0
        %1863 = vmatpush1.bf16.msra.mxu0 0
        %1864 = vmatprep.subr.bf16.mxu0 0
        %1865 = vmatpush1.bf16.msra.mxu0 0
        %1866 = vmatprep.subr.bf16.mxu0 0
        %1867 = vmatpush1.bf16.msra.mxu0 0
        %1868 = vmatprep.subr.bf16.mxu0 0
        %1869 = vmatpush1.bf16.msra.mxu0 0
        %1870 = vmatprep.subr.bf16.mxu0 0
        %1871 = vmatpush1.bf16.msra.mxu0 0
        %1872 = vmatprep.subr.bf16.mxu0 0
        %1873 = vmatpush1.bf16.msra.mxu0 0
        %1874 = vmatprep.subr.bf16.mxu0 0
        %1875 = vmatpush1.bf16.msra.mxu0 0
        %1876 = vmatprep.subr.bf16.mxu0 0
        %1877 = vmatpush1.bf16.msra.mxu0 0
        %1878 = vmatprep.mubr.bf16.mxu0 0
        %1879 = vmatmul.mubr.bf16.gmra.mrb[0].mxu0 %v1844
        %v1880 = vpop.f32.mrb[0].mxu0
        %v1881 = vadd.f32 %v518, %v1880
        %v1882 = vpop.f32.mrb[0].mxu0
        %v1883 = vpop.f32.mrb[0].mxu0
        %v1884 = vpop.f32.mrb[0].mxu0
        %1885 = vdwg.mxu0
        %v1886 = vadd.f32 %v1733, %v1881
        %v1887 = vsel %vm1717, %v1886, 0.0
        %1888 = vadd.xlane.f32.xlu0 %v1887
        %v1889 = vpop.xlane.xlu0 %1888
        %v1890 = vmul.f32 %v1889, %v1721
        %v1891 = vsub.f32 %v1886, %v1890
        %v1892 = vmul.f32 %v1891, %v1891
        %v1893 = vsel %vm1717, %v1892, 0.0
        %1894 = vadd.xlane.f32.xlu0 %v1893
        %v1895 = vpop.xlane.xlu0 %1894
        %v1896 = vmul.f32 %v1895, %v1721
        %v1897 = vadd.f32 %v1896, 1e-05
        %v1898 = vrsqrt.pop %v1897
        %v1899 = vmul.f32 %v1891, %v1898
        %v1900 = vmul.f32 %v1899, %v521
        %v1901 = vadd.f32 %v1900, %v522
        %v1902 = vpack.c.bf16 %v1901, %v1901
        %v1903 = vld [vmem:[%s13] sm:$0xf]
        %v1904 = vld [vmem:[%s13 + $0x4] sm:$0xf]
        %v1905 = vld [vmem:[%s13 + $0x8] sm:$0xf]
        %v1906 = vld [vmem:[%s13 + $0xc] sm:$0xf]
        %v1907 = vld [vmem:[%s14] sm:$0x1]
        %v1912 = vunpack.c.l.b16 %v1903
        %v1913 = vunpack.c.l.b16 %v1904
        %v1914 = vunpack.c.l.b16 %v1905
        %v1915 = vunpack.c.l.b16 %v1906
        %v1916 = vpack.c.b16 %v1913, %v1912
        %v1917 = vpack.c.b16 %v1915, %v1914
        %v1921 = vsel %vm542, %v1902, 0
        %1923 = vmatprep.subr.bf16.mxu0 0
        %1924 = vmatpush1.bf16.msra.mxu0 %v1916
        %1925 = vmatprep.subr.bf16.mxu0 0
        %1926 = vmatpush1.bf16.msra.mxu0 %v1917
        %1927 = vmatprep.subr.bf16.mxu0 0
        %1928 = vmatpush1.bf16.msra.mxu0 0
        %1929 = vmatprep.subr.bf16.mxu0 0
        %1930 = vmatpush1.bf16.msra.mxu0 0
        %1931 = vmatprep.subr.bf16.mxu0 0
        %1932 = vmatpush1.bf16.msra.mxu0 0
        %1933 = vmatprep.subr.bf16.mxu0 0
        %1934 = vmatpush1.bf16.msra.mxu0 0
        %1935 = vmatprep.subr.bf16.mxu0 0
        %1936 = vmatpush1.bf16.msra.mxu0 0
        %1937 = vmatprep.subr.bf16.mxu0 0
        %1938 = vmatpush1.bf16.msra.mxu0 0
        %1939 = vmatprep.subr.bf16.mxu0 0
        %1940 = vmatpush1.bf16.msra.mxu0 0
        %1941 = vmatprep.subr.bf16.mxu0 0
        %1942 = vmatpush1.bf16.msra.mxu0 0
        %1943 = vmatprep.subr.bf16.mxu0 0
        %1944 = vmatpush1.bf16.msra.mxu0 0
        %1945 = vmatprep.subr.bf16.mxu0 0
        %1946 = vmatpush1.bf16.msra.mxu0 0
        %1947 = vmatprep.subr.bf16.mxu0 0
        %1948 = vmatpush1.bf16.msra.mxu0 0
        %1949 = vmatprep.subr.bf16.mxu0 0
        %1950 = vmatpush1.bf16.msra.mxu0 0
        %1951 = vmatprep.subr.bf16.mxu0 0
        %1952 = vmatpush1.bf16.msra.mxu0 0
        %1953 = vmatprep.subr.bf16.mxu0 0
        %1954 = vmatpush1.bf16.msra.mxu0 0
        %1955 = vmatprep.mubr.bf16.mxu0 0
        %1956 = vmatmul.mubr.bf16.gmra.mrb[0].mxu0 %v1921
        %v1957 = vpop.f32.mrb[0].mxu0
        %v1958 = vadd.f32 %v1907, %v1957
        %v1959 = vpop.f32.mrb[0].mxu0
        %v1960 = vpop.f32.mrb[0].mxu0
        %v1961 = vpop.f32.mrb[0].mxu0
        %1962 = vdwg.mxu0
        %1963 = vst.msk [vmem:[%s486] sm:$0x1] %vm1717, %v1958
        %s1964 = sand.u32 %s357, 1
        %s1965 = scalar_lea.sflag [#allocation3], %s1964
        %s1966 = sand.u32 %s357, 1
        %s1967 = scalar_lea.vmem [#allocation2], %s1966
        // Predicated region
        $region81: #{pallas_forward.5} parent=79 // pred_check
          %p1968 = pneg %p367
        $region82: #{pallas_forward.5} parent=79 // pred_check_branch
          %1970 = sbr.rel (%p1968) target = $region84
        $region83: #{pallas_forward.5} parent=79 // pred_region
          %s1972 = ssub.s32 16, 16
          %1973 = vsyncadd %s1965, %s1972
          %s1974 = smul.addr %s29, 16
          %s1975 = scalar_lea.hbm %s15, %s1974
          %s1977 = sshll.u32 %s1967, 4
          %s1978 = int_to_ptr.vmem [resolvable:$true] %s1977
          %1980 = dma.vmem_to_hbm [thread:$0]  %s1978, 16, %s1975, %s1965
        $region84: #{pallas_forward.5} parent=79 // pred_fallthru
          _
      $region80: #{pallas_forward.5} parent=5 // pred_fallthru
        _
      %p1981 = scmp.le.s32.totalorder 2, %s24
      // Predicated region
      $region85: #{pallas_forward.5} parent=5 // pred_check
        %p1982 = pneg %p1981
      $region86: #{pallas_forward.5} parent=5 // pred_check_branch
        %1984 = sbr.rel (%p1982) target = $region88
      $region87: #{pallas_forward.5} parent=5 // pred_region
        %s1985 = ssub.s32 %s24, 2
        // Predicated region
        $region89: #{pallas_forward.5} parent=87 // pred_check
          %p1986 = pneg %p373
        $region90: #{pallas_forward.5} parent=87 // pred_check_branch
          %1988 = sbr.rel (%p1986) target = $region92
        $region91: #{pallas_forward.5} parent=87 // pred_region
          %s1989 = sand.u32 %s358, 1
          %s1990 = scalar_lea.sflag [#allocation3], %s1989
          %s1991 = sand.u32 %s358, 1
          %s1992 = scalar_lea.vmem [#allocation2], %s1991
          %1993 = dma.done %s1990, 16
        $region92: #{pallas_forward.5} parent=87 // pred_fallthru
          _
      $region88: #{pallas_forward.5} parent=5 // pred_fallthru
        _
    $region6: #{pallas_forward.5} parent=1 // loop_footer
      %s28 = sadd.s32 1, %s24
    $region7: #{pallas_forward.5} parent=1 // loop_footer_branch
      %23 = sbr.rel target = $region3
    $region8: #{pallas_forward.5} parent=1 // loop_exit
      _
    %1994 = vsyncpa [#allocation3], 1
    %s1995 = scalar_lea.sflag [#allocation3], 1
    %1996 = vsyncpa %s1995, 1

// kernel: pallas_forward.4
$region0: #{pallas_forward.4}
  #allocation0 [shape = 'u32[]', space=smem, size = 0x4, offset = 0x4, fixed_abs, tag = 'smem constant byte address 0x4 - core index']
  #allocation1 [shape = 'u32[144,128]{1,0:T(1,128)}', space=vmem, size = 0x12000, scoped, tag = 'internal scratch']
  %s0 = inlined_call_operand.vmem [shape: f32[2,9,32], index: 0, kind: input, shape index: {}]
  %s1 = inlined_call_operand.vmem [shape: bf16[32,96], index: 1, kind: input, shape index: {}]
  %s2 = inlined_call_operand.vmem [shape: f32[1,96], index: 2, kind: input, shape index: {}]
  %s3 = inlined_call_operand.vmem [shape: bf16[32,32], index: 3, kind: input, shape index: {}]
  %s4 = inlined_call_operand.vmem [shape: f32[1,32], index: 4, kind: input, shape index: {}]
  %s5 = inlined_call_operand.vmem [shape: bf16[32,64], index: 5, kind: input, shape index: {}]
  %s6 = inlined_call_operand.vmem [shape: f32[1,64], index: 6, kind: input, shape index: {}]
  %s7 = inlined_call_operand.vmem [shape: bf16[64,32], index: 7, kind: input, shape index: {}]
  %s8 = inlined_call_operand.vmem [shape: f32[1,32], index: 8, kind: input, shape index: {}]
  %s9 = inlined_call_operand.vmem [shape: f32[1,32], index: 9, kind: input, shape index: {}]
  %s10 = inlined_call_operand.vmem [shape: f32[1,32], index: 10, kind: input, shape index: {}]
  %s11 = inlined_call_operand.vmem [shape: f32[1,32], index: 11, kind: input, shape index: {}]
  %s12 = inlined_call_operand.vmem [shape: f32[1,32], index: 12, kind: input, shape index: {}]
  %s13 = inlined_call_operand.vmem [shape: f32[2,9,32], index: 13, kind: output, shape index: {}]
  %s14 = sld [smem:[#allocation0]]
  $region85: #{pallas_forward.4} parent=0
    _
  %s16 = ssub.s32 1, %s14
  %s17 = scalar_select 0, %s16, %s14
  loop: start=0, step=1, limit=4
  $region2: #{pallas_forward.4} parent=0 // loop_pre_header
    _
  $region3: #{pallas_forward.4} parent=0 // loop_header
    %s19 = sphi 0, %s23
    %p20 = scmp.ge.s32.totalorder %s19, 4
    %s29 = sphi 0, %s31
    %s32 = sphi 0, %s29
    %s33 = sphi 0, %s32
    %s49 = sphi 0, %s33
    %s53 = sphi 0, %s53
    %s55 = sphi 0, %s53
    %s56 = sphi 0, %s55
    %s70 = sphi 0, %s56
    %s74 = sphi 0, %s74
    %s76 = sphi 0, %s74
    %s77 = sphi 0, %s76
    %s91 = sphi 0, %s77
    %s95 = sphi 0, %s95
    %s97 = sphi 0, %s95
    %s98 = sphi 0, %s97
    %s112 = sphi 0, %s98
    %s116 = sphi 0, %s116
    %s118 = sphi 0, %s116
    %s119 = sphi 0, %s118
    %s133 = sphi 0, %s119
    %s137 = sphi 0, %s137
    %s139 = sphi 0, %s137
    %s140 = sphi 0, %s139
    %s154 = sphi 0, %s140
    %s158 = sphi 0, %s158
    %s160 = sphi 0, %s158
    %s161 = sphi 0, %s160
    %s175 = sphi 0, %s161
    %s179 = sphi 0, %s179
    %s181 = sphi 0, %s179
    %s182 = sphi 0, %s181
    %s196 = sphi 0, %s182
    %s200 = sphi 0, %s200
    %s202 = sphi 0, %s200
    %s203 = sphi 0, %s202
    %s217 = sphi 0, %s203
    %s221 = sphi 0, %s221
    %s223 = sphi 0, %s221
    %s224 = sphi 0, %s223
    %s238 = sphi 0, %s224
    %s242 = sphi 0, %s242
    %s244 = sphi 0, %s242
    %s245 = sphi 0, %s244
    %s259 = sphi 0, %s245
    %s263 = sphi 0, %s263
    %s265 = sphi 0, %s263
    %s266 = sphi 0, %s265
    %s280 = sphi 0, %s266
    %s284 = sphi 0, %s284
    %s286 = sphi 0, %s284
    %s287 = sphi 0, %s286
    %s301 = sphi 0, %s287
    %s307 = sphi 0, %s309
    %s310 = sphi 0, %s307
    %s311 = sphi 0, %s310
    %s327 = sphi 0, %s311
  $region4: #{pallas_forward.4} parent=0 // loop_header_branch
    %22 = sbr.rel (%p20) target = $region8
  $region5: #{pallas_forward.4} parent=0 // loop_body
    %s24 = ssub.s32 %s19, 1
    %s25 = ssub.s32 %s19, 2
    %s26 = sadd.s32 %s19, 1
    %s27 = ssub.s32 %s19, %s26
    %p28 = scmp.eq.s32.totalorder %s27, 0
    %s30 = sadd.s32 %s29, 1
    %s31 = scalar_select %p28, %s29, %s30
    %p34 = pneg %p28
    %p35 = scmp.eq.s32.totalorder %s19, 1
    %p36 = por %p34, %p35
    %p37 = scmp.ne.s32.totalorder %s29, %s32
    %p38 = scmp.eq.s32.totalorder %s19, 0
    %p39 = por %p37, %p38
    %p40 = scmp.ne.s32.totalorder %s29, %s32
    %p41 = scmp.eq.s32.totalorder %s24, 1
    %p42 = por %p40, %p41
    %p43 = scmp.ne.s32.totalorder %s32, %s33
    %p44 = scmp.eq.s32.totalorder %s24, 0
    %p45 = por %p43, %p44
    %p46 = scmp.ne.s32.totalorder %s32, %s33
    %p47 = scmp.eq.s32.totalorder %s25, 1
    %p48 = por %p46, %p47
    %p50 = scmp.ne.s32.totalorder %s33, %s49
    %p51 = scmp.eq.s32.totalorder %s25, 0
    %p52 = por %p50, %p51
    %s54 = sadd.s32 %s53, 1
    %p57 = scmp.eq.s32.totalorder %s19, 1
    %p58 = scmp.ne.s32.totalorder %s53, %s55
    %p59 = scmp.eq.s32.totalorder %s19, 0
    %p60 = por %p58, %p59
    %p61 = scmp.ne.s32.totalorder %s53, %s55
    %p62 = scmp.eq.s32.totalorder %s24, 1
    %p63 = por %p61, %p62
    %p64 = scmp.ne.s32.totalorder %s55, %s56
    %p65 = scmp.eq.s32.totalorder %s24, 0
    %p66 = por %p64, %p65
    %p67 = scmp.ne.s32.totalorder %s55, %s56
    %p68 = scmp.eq.s32.totalorder %s25, 1
    %p69 = por %p67, %p68
    %p71 = scmp.ne.s32.totalorder %s56, %s70
    %p72 = scmp.eq.s32.totalorder %s25, 0
    %p73 = por %p71, %p72
    %s75 = sadd.s32 %s74, 1
    %p78 = scmp.eq.s32.totalorder %s19, 1
    %p79 = scmp.ne.s32.totalorder %s74, %s76
    %p80 = scmp.eq.s32.totalorder %s19, 0
    %p81 = por %p79, %p80
    %p82 = scmp.ne.s32.totalorder %s74, %s76
    %p83 = scmp.eq.s32.totalorder %s24, 1
    %p84 = por %p82, %p83
    %p85 = scmp.ne.s32.totalorder %s76, %s77
    %p86 = scmp.eq.s32.totalorder %s24, 0
    %p87 = por %p85, %p86
    %p88 = scmp.ne.s32.totalorder %s76, %s77
    %p89 = scmp.eq.s32.totalorder %s25, 1
    %p90 = por %p88, %p89
    %p92 = scmp.ne.s32.totalorder %s77, %s91
    %p93 = scmp.eq.s32.totalorder %s25, 0
    %p94 = por %p92, %p93
    %s96 = sadd.s32 %s95, 1
    %p99 = scmp.eq.s32.totalorder %s19, 1
    %p100 = scmp.ne.s32.totalorder %s95, %s97
    %p101 = scmp.eq.s32.totalorder %s19, 0
    %p102 = por %p100, %p101
    %p103 = scmp.ne.s32.totalorder %s95, %s97
    %p104 = scmp.eq.s32.totalorder %s24, 1
    %p105 = por %p103, %p104
    %p106 = scmp.ne.s32.totalorder %s97, %s98
    %p107 = scmp.eq.s32.totalorder %s24, 0
    %p108 = por %p106, %p107
    %p109 = scmp.ne.s32.totalorder %s97, %s98
    %p110 = scmp.eq.s32.totalorder %s25, 1
    %p111 = por %p109, %p110
    %p113 = scmp.ne.s32.totalorder %s98, %s112
    %p114 = scmp.eq.s32.totalorder %s25, 0
    %p115 = por %p113, %p114
    %s117 = sadd.s32 %s116, 1
    %p120 = scmp.eq.s32.totalorder %s19, 1
    %p121 = scmp.ne.s32.totalorder %s116, %s118
    %p122 = scmp.eq.s32.totalorder %s19, 0
    %p123 = por %p121, %p122
    %p124 = scmp.ne.s32.totalorder %s116, %s118
    %p125 = scmp.eq.s32.totalorder %s24, 1
    %p126 = por %p124, %p125
    %p127 = scmp.ne.s32.totalorder %s118, %s119
    %p128 = scmp.eq.s32.totalorder %s24, 0
    %p129 = por %p127, %p128
    %p130 = scmp.ne.s32.totalorder %s118, %s119
    %p131 = scmp.eq.s32.totalorder %s25, 1
    %p132 = por %p130, %p131
    %p134 = scmp.ne.s32.totalorder %s119, %s133
    %p135 = scmp.eq.s32.totalorder %s25, 0
    %p136 = por %p134, %p135
    %s138 = sadd.s32 %s137, 1
    %p141 = scmp.eq.s32.totalorder %s19, 1
    %p142 = scmp.ne.s32.totalorder %s137, %s139
    %p143 = scmp.eq.s32.totalorder %s19, 0
    %p144 = por %p142, %p143
    %p145 = scmp.ne.s32.totalorder %s137, %s139
    %p146 = scmp.eq.s32.totalorder %s24, 1
    %p147 = por %p145, %p146
    %p148 = scmp.ne.s32.totalorder %s139, %s140
    %p149 = scmp.eq.s32.totalorder %s24, 0
    %p150 = por %p148, %p149
    %p151 = scmp.ne.s32.totalorder %s139, %s140
    %p152 = scmp.eq.s32.totalorder %s25, 1
    %p153 = por %p151, %p152
    %p155 = scmp.ne.s32.totalorder %s140, %s154
    %p156 = scmp.eq.s32.totalorder %s25, 0
    %p157 = por %p155, %p156
    %s159 = sadd.s32 %s158, 1
    %p162 = scmp.eq.s32.totalorder %s19, 1
    %p163 = scmp.ne.s32.totalorder %s158, %s160
    %p164 = scmp.eq.s32.totalorder %s19, 0
    %p165 = por %p163, %p164
    %p166 = scmp.ne.s32.totalorder %s158, %s160
    %p167 = scmp.eq.s32.totalorder %s24, 1
    %p168 = por %p166, %p167
    %p169 = scmp.ne.s32.totalorder %s160, %s161
    %p170 = scmp.eq.s32.totalorder %s24, 0
    %p171 = por %p169, %p170
    %p172 = scmp.ne.s32.totalorder %s160, %s161
    %p173 = scmp.eq.s32.totalorder %s25, 1
    %p174 = por %p172, %p173
    %p176 = scmp.ne.s32.totalorder %s161, %s175
    %p177 = scmp.eq.s32.totalorder %s25, 0
    %p178 = por %p176, %p177
    %s180 = sadd.s32 %s179, 1
    %p183 = scmp.eq.s32.totalorder %s19, 1
    %p184 = scmp.ne.s32.totalorder %s179, %s181
    %p185 = scmp.eq.s32.totalorder %s19, 0
    %p186 = por %p184, %p185
    %p187 = scmp.ne.s32.totalorder %s179, %s181
    %p188 = scmp.eq.s32.totalorder %s24, 1
    %p189 = por %p187, %p188
    %p190 = scmp.ne.s32.totalorder %s181, %s182
    %p191 = scmp.eq.s32.totalorder %s24, 0
    %p192 = por %p190, %p191
    %p193 = scmp.ne.s32.totalorder %s181, %s182
    %p194 = scmp.eq.s32.totalorder %s25, 1
    %p195 = por %p193, %p194
    %p197 = scmp.ne.s32.totalorder %s182, %s196
    %p198 = scmp.eq.s32.totalorder %s25, 0
    %p199 = por %p197, %p198
    %s201 = sadd.s32 %s200, 1
    %p204 = scmp.eq.s32.totalorder %s19, 1
    %p205 = scmp.ne.s32.totalorder %s200, %s202
    %p206 = scmp.eq.s32.totalorder %s19, 0
    %p207 = por %p205, %p206
    %p208 = scmp.ne.s32.totalorder %s200, %s202
    %p209 = scmp.eq.s32.totalorder %s24, 1
    %p210 = por %p208, %p209
    %p211 = scmp.ne.s32.totalorder %s202, %s203
    %p212 = scmp.eq.s32.totalorder %s24, 0
    %p213 = por %p211, %p212
    %p214 = scmp.ne.s32.totalorder %s202, %s203
    %p215 = scmp.eq.s32.totalorder %s25, 1
    %p216 = por %p214, %p215
    %p218 = scmp.ne.s32.totalorder %s203, %s217
    %p219 = scmp.eq.s32.totalorder %s25, 0
    %p220 = por %p218, %p219
    %s222 = sadd.s32 %s221, 1
    %p225 = scmp.eq.s32.totalorder %s19, 1
    %p226 = scmp.ne.s32.totalorder %s221, %s223
    %p227 = scmp.eq.s32.totalorder %s19, 0
    %p228 = por %p226, %p227
    %p229 = scmp.ne.s32.totalorder %s221, %s223
    %p230 = scmp.eq.s32.totalorder %s24, 1
    %p231 = por %p229, %p230
    %p232 = scmp.ne.s32.totalorder %s223, %s224
    %p233 = scmp.eq.s32.totalorder %s24, 0
    %p234 = por %p232, %p233
    %p235 = scmp.ne.s32.totalorder %s223, %s224
    %p236 = scmp.eq.s32.totalorder %s25, 1
    %p237 = por %p235, %p236
    %p239 = scmp.ne.s32.totalorder %s224, %s238
    %p240 = scmp.eq.s32.totalorder %s25, 0
    %p241 = por %p239, %p240
    %s243 = sadd.s32 %s242, 1
    %p246 = scmp.eq.s32.totalorder %s19, 1
    %p247 = scmp.ne.s32.totalorder %s242, %s244
    %p248 = scmp.eq.s32.totalorder %s19, 0
    %p249 = por %p247, %p248
    %p250 = scmp.ne.s32.totalorder %s242, %s244
    %p251 = scmp.eq.s32.totalorder %s24, 1
    %p252 = por %p250, %p251
    %p253 = scmp.ne.s32.totalorder %s244, %s245
    %p254 = scmp.eq.s32.totalorder %s24, 0
    %p255 = por %p253, %p254
    %p256 = scmp.ne.s32.totalorder %s244, %s245
    %p257 = scmp.eq.s32.totalorder %s25, 1
    %p258 = por %p256, %p257
    %p260 = scmp.ne.s32.totalorder %s245, %s259
    %p261 = scmp.eq.s32.totalorder %s25, 0
    %p262 = por %p260, %p261
    %s264 = sadd.s32 %s263, 1
    %p267 = scmp.eq.s32.totalorder %s19, 1
    %p268 = scmp.ne.s32.totalorder %s263, %s265
    %p269 = scmp.eq.s32.totalorder %s19, 0
    %p270 = por %p268, %p269
    %p271 = scmp.ne.s32.totalorder %s263, %s265
    %p272 = scmp.eq.s32.totalorder %s24, 1
    %p273 = por %p271, %p272
    %p274 = scmp.ne.s32.totalorder %s265, %s266
    %p275 = scmp.eq.s32.totalorder %s24, 0
    %p276 = por %p274, %p275
    %p277 = scmp.ne.s32.totalorder %s265, %s266
    %p278 = scmp.eq.s32.totalorder %s25, 1
    %p279 = por %p277, %p278
    %p281 = scmp.ne.s32.totalorder %s266, %s280
    %p282 = scmp.eq.s32.totalorder %s25, 0
    %p283 = por %p281, %p282
    %s285 = sadd.s32 %s284, 1
    %p288 = scmp.eq.s32.totalorder %s19, 1
    %p289 = scmp.ne.s32.totalorder %s284, %s286
    %p290 = scmp.eq.s32.totalorder %s19, 0
    %p291 = por %p289, %p290
    %p292 = scmp.ne.s32.totalorder %s284, %s286
    %p293 = scmp.eq.s32.totalorder %s24, 1
    %p294 = por %p292, %p293
    %p295 = scmp.ne.s32.totalorder %s286, %s287
    %p296 = scmp.eq.s32.totalorder %s24, 0
    %p297 = por %p295, %p296
    %p298 = scmp.ne.s32.totalorder %s286, %s287
    %p299 = scmp.eq.s32.totalorder %s25, 1
    %p300 = por %p298, %p299
    %p302 = scmp.ne.s32.totalorder %s287, %s301
    %p303 = scmp.eq.s32.totalorder %s25, 0
    %p304 = por %p302, %p303
    %s305 = ssub.s32 %s19, %s26
    %p306 = scmp.eq.s32.totalorder %s305, 0
    %s308 = sadd.s32 %s307, 1
    %s309 = scalar_select %p306, %s307, %s308
    %p312 = pneg %p306
    %p313 = scmp.eq.s32.totalorder %s19, 1
    %p314 = por %p312, %p313
    %p315 = scmp.ne.s32.totalorder %s307, %s310
    %p316 = scmp.eq.s32.totalorder %s19, 0
    %p317 = por %p315, %p316
    %p318 = scmp.ne.s32.totalorder %s307, %s310
    %p319 = scmp.eq.s32.totalorder %s24, 1
    %p320 = por %p318, %p319
    %p321 = scmp.ne.s32.totalorder %s310, %s311
    %p322 = scmp.eq.s32.totalorder %s24, 0
    %p323 = por %p321, %p322
    %p324 = scmp.ne.s32.totalorder %s310, %s311
    %p325 = scmp.eq.s32.totalorder %s25, 1
    %p326 = por %p324, %p325
    %p328 = scmp.ne.s32.totalorder %s311, %s327
    %p329 = scmp.eq.s32.totalorder %s25, 0
    %p330 = por %p328, %p329
    %p331 = scmp.le.s32.totalorder 1, %s19
    %p332 = scmp.lt.s32.totalorder %s19, 3
    %p333 = pnand %p331, %p332
    %p334 = pneg %p333
    // Predicated region
    $region9: #{pallas_forward.4} parent=5 // pred_check
      _
    $region10: #{pallas_forward.4} parent=5 // pred_check_branch
      %336 = sbr.rel (%p333) target = $region12
    $region11: #{pallas_forward.4} parent=5 // pred_region
      %s337 = ssub.s32 %s19, 1
      // Predicated region
      $region13: #{pallas_forward.4} parent=11 // pred_check
        %p338 = pneg %p66
      $region14: #{pallas_forward.4} parent=11 // pred_check_branch
        %340 = sbr.rel (%p338) target = $region16
      $region15: #{pallas_forward.4} parent=11 // pred_region
        _
      $region16: #{pallas_forward.4} parent=11 // pred_fallthru
        _
      // Predicated region
      $region17: #{pallas_forward.4} parent=11 // pred_check
        %p341 = pneg %p87
      $region18: #{pallas_forward.4} parent=11 // pred_check_branch
        %343 = sbr.rel (%p341) target = $region20
      $region19: #{pallas_forward.4} parent=11 // pred_region
        _
      $region20: #{pallas_forward.4} parent=11 // pred_fallthru
        _
      // Predicated region
      $region21: #{pallas_forward.4} parent=11 // pred_check
        %p344 = pneg %p108
      $region22: #{pallas_forward.4} parent=11 // pred_check_branch
        %346 = sbr.rel (%p344) target = $region24
      $region23: #{pallas_forward.4} parent=11 // pred_region
        _
      $region24: #{pallas_forward.4} parent=11 // pred_fallthru
        _
      // Predicated region
      $region25: #{pallas_forward.4} parent=11 // pred_check
        %p347 = pneg %p129
      $region26: #{pallas_forward.4} parent=11 // pred_check_branch
        %349 = sbr.rel (%p347) target = $region28
      $region27: #{pallas_forward.4} parent=11 // pred_region
        _
      $region28: #{pallas_forward.4} parent=11 // pred_fallthru
        _
      // Predicated region
      $region29: #{pallas_forward.4} parent=11 // pred_check
        %p350 = pneg %p150
      $region30: #{pallas_forward.4} parent=11 // pred_check_branch
        %352 = sbr.rel (%p350) target = $region32
      $region31: #{pallas_forward.4} parent=11 // pred_region
        _
      $region32: #{pallas_forward.4} parent=11 // pred_fallthru
        _
      // Predicated region
      $region33: #{pallas_forward.4} parent=11 // pred_check
        %p353 = pneg %p171
      $region34: #{pallas_forward.4} parent=11 // pred_check_branch
        %355 = sbr.rel (%p353) target = $region36
      $region35: #{pallas_forward.4} parent=11 // pred_region
        _
      $region36: #{pallas_forward.4} parent=11 // pred_fallthru
        _
      // Predicated region
      $region37: #{pallas_forward.4} parent=11 // pred_check
        %p356 = pneg %p192
      $region38: #{pallas_forward.4} parent=11 // pred_check_branch
        %358 = sbr.rel (%p356) target = $region40
      $region39: #{pallas_forward.4} parent=11 // pred_region
        _
      $region40: #{pallas_forward.4} parent=11 // pred_fallthru
        _
      // Predicated region
      $region41: #{pallas_forward.4} parent=11 // pred_check
        %p359 = pneg %p213
      $region42: #{pallas_forward.4} parent=11 // pred_check_branch
        %361 = sbr.rel (%p359) target = $region44
      $region43: #{pallas_forward.4} parent=11 // pred_region
        _
      $region44: #{pallas_forward.4} parent=11 // pred_fallthru
        _
      // Predicated region
      $region45: #{pallas_forward.4} parent=11 // pred_check
        %p362 = pneg %p234
      $region46: #{pallas_forward.4} parent=11 // pred_check_branch
        %364 = sbr.rel (%p362) target = $region48
      $region47: #{pallas_forward.4} parent=11 // pred_region
        _
      $region48: #{pallas_forward.4} parent=11 // pred_fallthru
        _
      // Predicated region
      $region49: #{pallas_forward.4} parent=11 // pred_check
        %p365 = pneg %p255
      $region50: #{pallas_forward.4} parent=11 // pred_check_branch
        %367 = sbr.rel (%p365) target = $region52
      $region51: #{pallas_forward.4} parent=11 // pred_region
        _
      $region52: #{pallas_forward.4} parent=11 // pred_fallthru
        _
      // Predicated region
      $region53: #{pallas_forward.4} parent=11 // pred_check
        %p368 = pneg %p276
      $region54: #{pallas_forward.4} parent=11 // pred_check_branch
        %370 = sbr.rel (%p368) target = $region56
      $region55: #{pallas_forward.4} parent=11 // pred_region
        _
      $region56: #{pallas_forward.4} parent=11 // pred_fallthru
        _
      // Predicated region
      $region57: #{pallas_forward.4} parent=11 // pred_check
        %p371 = pneg %p297
      $region58: #{pallas_forward.4} parent=11 // pred_check_branch
        %373 = sbr.rel (%p371) target = $region60
      $region59: #{pallas_forward.4} parent=11 // pred_region
        _
      $region60: #{pallas_forward.4} parent=11 // pred_fallthru
        _
    $region12: #{pallas_forward.4} parent=5 // pred_fallthru
      _
    %p374 = scmp.lt.s32.totalorder %s19, 2
    // Predicated region
    $region61: #{pallas_forward.4} parent=5 // pred_check
      %p375 = pneg %p374
    $region62: #{pallas_forward.4} parent=5 // pred_check_branch
      %377 = sbr.rel (%p375) target = $region64
    $region63: #{pallas_forward.4} parent=5 // pred_region
      // Predicated region
      $region65: #{pallas_forward.4} parent=63 // pred_check
        %p378 = pneg %p39
      $region66: #{pallas_forward.4} parent=63 // pred_check_branch
        %380 = sbr.rel (%p378) target = $region68
      $region67: #{pallas_forward.4} parent=63 // pred_region
        %p381 = scmp.lt.s32.totalorder %s19, 1
        %s382 = scalar_select %p381, %s19, 1
        %s383 = smul.addr %s382, 2
        %s384 = smul.addr %s383, 8
        %s385 = scalar_lea.vmem %s0, %s384
      $region68: #{pallas_forward.4} parent=63 // pred_fallthru
        _
    $region64: #{pallas_forward.4} parent=5 // pred_fallthru
      _
    %p386 = scmp.le.s32.totalorder 1, %s19
    %p387 = scmp.lt.s32.totalorder %s19, 3
    %p388 = pnand %p386, %p387
    %p389 = pneg %p388
    // Predicated region
    $region69: #{pallas_forward.4} parent=5 // pred_check
      _
    $region70: #{pallas_forward.4} parent=5 // pred_check_branch
      %391 = sbr.rel (%p388) target = $region72
    $region71: #{pallas_forward.4} parent=5 // pred_region
      %s392 = ssub.s32 %s19, 1
      %p393 = scmp.lt.s32.totalorder %s24, 1
      %s394 = scalar_select %p393, %s24, 1
      %s395 = smul.addr %s394, 2
      %s396 = smul.addr %s395, 8
      %s397 = scalar_lea.vmem %s0, %s396
      %p398 = pneg %p45
      %p399 = pneg %p42
      %p400 = pneg %p66
      %p401 = pneg %p63
      %p402 = pneg %p87
      %p403 = pneg %p84
      %p404 = pneg %p108
      %p405 = pneg %p105
      %p406 = pneg %p129
      %p407 = pneg %p126
      %p408 = pneg %p150
      %p409 = pneg %p147
      %p410 = pneg %p171
      %p411 = pneg %p168
      %p412 = pneg %p192
      %p413 = pneg %p189
      %p414 = pneg %p213
      %p415 = pneg %p210
      %p416 = pneg %p234
      %p417 = pneg %p231
      %p418 = pneg %p255
      %p419 = pneg %p252
      %p420 = pneg %p276
      %p421 = pneg %p273
      %p422 = pneg %p297
      %p423 = pneg %p294
      %p424 = pneg %p323
      %p425 = pneg %p320
      %p426 = scmp.lt.s32.totalorder %s24, 1
      %s427 = scalar_select %p426, %s24, 1
      %s428 = smul.addr %s427, 2
      %s429 = smul.addr %s428, 8
      %s430 = scalar_lea.vmem %s13, %s429
      %p431 = scmp.lt.s32.totalorder %s24, 1
      %s432 = scalar_select %p431, %s24, 1
      %s433 = smul.addr %s432, 2
      %s434 = smul.addr %s433, 8
      %s435 = scalar_lea.vmem %s0, %s434
      %p436 = scmp.lt.s32.totalorder %s24, 1
      %s437 = scalar_select %p436, %s24, 1
      %s438 = smul.addr %s437, 2
      %s439 = smul.addr %s438, 8
      %s440 = scalar_lea.vmem %s13, %s439
      %v442 = vld [vmem:[%s435] sm:$0xff]
      %v443 = vld [vmem:[%s435 + $0x8] sm:$0x1]
      %v444 = vld [vmem:[%s1] sm:$0xf]
      %v445 = vld [vmem:[%s1 + $0x4] sm:$0xf]
      %v446 = vld [vmem:[%s1 + $0x8] sm:$0xf]
      %v447 = vld [vmem:[%s1 + $0xc] sm:$0xf]
      %v448 = vld [vmem:[%s2] sm:$0x1]
      %v449 = vld [vmem:[%s3] sm:$0xf]
      %v450 = vld [vmem:[%s3 + $0x4] sm:$0xf]
      %v451 = vld [vmem:[%s3 + $0x8] sm:$0xf]
      %v452 = vld [vmem:[%s3 + $0xc] sm:$0xf]
      %v453 = vld [vmem:[%s4] sm:$0x1]
      %v454 = vld [vmem:[%s5] sm:$0xf]
      %v455 = vld [vmem:[%s5 + $0x4] sm:$0xf]
      %v456 = vld [vmem:[%s5 + $0x8] sm:$0xf]
      %v457 = vld [vmem:[%s5 + $0xc] sm:$0xf]
      %v458 = vld [vmem:[%s6] sm:$0x1]
      %v459 = vld [vmem:[%s7] sm:$0xf]
      %v460 = vld [vmem:[%s7 + $0x4] sm:$0xf]
      %v461 = vld [vmem:[%s7 + $0x8] sm:$0xf]
      %v462 = vld [vmem:[%s7 + $0xc] sm:$0xf]
      %v463 = vld [vmem:[%s7 + $0x10] sm:$0xf]
      %v464 = vld [vmem:[%s7 + $0x14] sm:$0xf]
      %v465 = vld [vmem:[%s7 + $0x18] sm:$0xf]
      %v466 = vld [vmem:[%s7 + $0x1c] sm:$0xf]
      %v467 = vld [vmem:[%s8] sm:$0x1]
      %v468 = vld [vmem:[%s9] sm:$0x1]
      %v469 = vld [vmem:[%s10] sm:$0x1]
      %v470 = vld [vmem:[%s11] sm:$0x1]
      %v471 = vld [vmem:[%s12] sm:$0x1]
      %v472 = vpack.c.bf16 %v443, %v442
      %v474 = vlaneseq
      %v475 = vshrl.u32 %v474, 7
      %v476 = vsub.s32 0, %v475
      %v477 = vrot.slane %v448, %v476
      %v483 = vunpack.c.l.b16 %v444
      %v484 = vunpack.c.l.b16 %v445
      %v485 = vunpack.c.l.b16 %v446
      %v486 = vunpack.c.l.b16 %v447
      %v487 = vpack.c.b16 %v484, %v483
      %v488 = vpack.c.b16 %v486, %v485
      %vm491 = vcmask 261120
      %v493 = vsel %vm491, %v472, 0
      %495 = vmatprep.subr.bf16.mxu0 0
      %496 = vmatpush1.bf16.msra.mxu0 %v487
      %497 = vmatprep.subr.bf16.mxu0 0
      %498 = vmatpush1.bf16.msra.mxu0 %v488
      %499 = vmatprep.subr.bf16.mxu0 0
      %500 = vmatpush1.bf16.msra.mxu0 0
      %501 = vmatprep.subr.bf16.mxu0 0
      %502 = vmatpush1.bf16.msra.mxu0 0
      %503 = vmatprep.subr.bf16.mxu0 0
      %504 = vmatpush1.bf16.msra.mxu0 0
      %505 = vmatprep.subr.bf16.mxu0 0
      %506 = vmatpush1.bf16.msra.mxu0 0
      %507 = vmatprep.subr.bf16.mxu0 0
      %508 = vmatpush1.bf16.msra.mxu0 0
      %509 = vmatprep.subr.bf16.mxu0 0
      %510 = vmatpush1.bf16.msra.mxu0 0
      %511 = vmatprep.subr.bf16.mxu0 0
      %512 = vmatpush1.bf16.msra.mxu0 0
      %513 = vmatprep.subr.bf16.mxu0 0
      %514 = vmatpush1.bf16.msra.mxu0 0
      %515 = vmatprep.subr.bf16.mxu0 0
      %516 = vmatpush1.bf16.msra.mxu0 0
      %517 = vmatprep.subr.bf16.mxu0 0
      %518 = vmatpush1.bf16.msra.mxu0 0
      %519 = vmatprep.subr.bf16.mxu0 0
      %520 = vmatpush1.bf16.msra.mxu0 0
      %521 = vmatprep.subr.bf16.mxu0 0
      %522 = vmatpush1.bf16.msra.mxu0 0
      %523 = vmatprep.subr.bf16.mxu0 0
      %524 = vmatpush1.bf16.msra.mxu0 0
      %525 = vmatprep.subr.bf16.mxu0 0
      %526 = vmatpush1.bf16.msra.mxu0 0
      %527 = vmatprep.mubr.bf16.mxu0 0
      %528 = vmatmul.mubr.bf16.gmra.mrb[0].mxu0 %v493
      %v529 = vpop.f32.mrb[0].mxu0
      %v530 = vadd.f32 %v477, %v529
      %v531 = vpop.f32.mrb[0].mxu0
      %v532 = vpop.f32.mrb[0].mxu0
      %v533 = vadd.f32 %v477, %v532
      %v534 = vpop.f32.mrb[0].mxu0
      %535 = vdwg.mxu0
      %538 = vrot.lane.b32.xlu0 %v530, 120
      %v539 = vpop.permute.xlu0 %538
      %540 = vrot.lane.b32.xlu0 %v533, 120
      %v541 = vpop.permute.xlu0 %540
      %544 = vrot.lane.b32.xlu0 %v530, 112
      %v545 = vpop.permute.xlu0 %544
      %546 = vrot.lane.b32.xlu0 %v533, 112
      %v547 = vpop.permute.xlu0 %546
      %550 = vrot.lane.b32.xlu0 %v530, 104
      %v551 = vpop.permute.xlu0 %550
      %552 = vrot.lane.b32.xlu0 %v533, 104
      %v553 = vpop.permute.xlu0 %552
      %v556 = vcombine.low %v530, %v545
      %v557 = vcombine.high %v530, %v545
      %v559 = vunpack.c.l.s4 1983009808
      %v560 = vunpack.c.0.s8 %v559
      %v561 = vlaneseq
      %v562 = vshrl.u32 %v561, 7
      %v563 = vsub.s32 %v560, %v562
      %v564 = vrot.slane %v556, %v563
      %v566 = vunpack.c.l.s4 1983009808
      %v567 = vunpack.c.0.s8 %v566
      %v568 = vlaneseq
      %v569 = vshrl.u32 %v568, 7
      %v570 = vsub.s32 %v567, %v569
      %v571 = vrot.slane %v557, %v570
      %v572 = vcombine.low %v539, %v551
      %v573 = vcombine.high %v539, %v551
      %v575 = vunpack.c.l.s4 1983009808
      %v576 = vunpack.c.0.s8 %v575
      %v577 = vlaneseq
      %v578 = vshrl.u32 %v577, 7
      %v579 = vsub.s32 %v576, %v578
      %v580 = vrot.slane %v572, %v579
      %v582 = vunpack.c.l.s4 1983009808
      %v583 = vunpack.c.0.s8 %v582
      %v584 = vlaneseq
      %v585 = vshrl.u32 %v584, 7
      %v586 = vsub.s32 %v583, %v585
      %v587 = vrot.slane %v573, %v586
      %v588 = vcombine.low %v564, %v580
      %v589 = vcombine.high %v564, %v580
      %v591 = vunpack.c.l.s4 1934713408
      %v592 = vunpack.c.0.s8 %v591
      %v593 = vlaneseq
      %v594 = vshrl.u32 %v593, 7
      %v595 = vsub.s32 %v592, %v594
      %v596 = vrot.slane %v588, %v595
      %v598 = vunpack.c.l.s4 1934713408
      %v599 = vunpack.c.0.s8 %v598
      %v600 = vlaneseq
      %v601 = vshrl.u32 %v600, 7
      %v602 = vsub.s32 %v599, %v601
      %v603 = vrot.slane %v589, %v602
      %v604 = vcombine.low %v571, %v587
      %v605 = vcombine.high %v571, %v587
      %v607 = vunpack.c.l.s4 1934713408
      %v608 = vunpack.c.0.s8 %v607
      %v609 = vlaneseq
      %v610 = vshrl.u32 %v609, 7
      %v611 = vsub.s32 %v608, %v610
      %v612 = vrot.slane %v604, %v611
      %v614 = vunpack.c.l.s4 1934713408
      %v615 = vunpack.c.0.s8 %v614
      %v616 = vlaneseq
      %v617 = vshrl.u32 %v616, 7
      %v618 = vsub.s32 %v615, %v617
      %v619 = vrot.slane %v605, %v618
      %v620 = vcombine.high %v596, 0.0
      %v621 = vcombine.high %v603, 0.0
      %v622 = vcombine.high %v612, 0.0
      %v623 = vcombine.high %v619, 0.0
      %v624 = vcombine.low %v533, %v547
      %v626 = vunpack.c.l.s4 1983009808
      %v627 = vunpack.c.0.s8 %v626
      %v628 = vlaneseq
      %v629 = vshrl.u32 %v628, 7
      %v630 = vsub.s32 %v627, %v629
      %v631 = vrot.slane %v624, %v630
      %v632 = vcombine.low %v541, %v553
      %v634 = vunpack.c.l.s4 1983009808
      %v635 = vunpack.c.0.s8 %v634
      %v636 = vlaneseq
      %v637 = vshrl.u32 %v636, 7
      %v638 = vsub.s32 %v635, %v637
      %v639 = vrot.slane %v632, %v638
      %v640 = vcombine.low %v631, %v639
      %641 = vrot.lane.b32.xlu0 %v530, 96
      %v642 = vpop.permute.xlu0 %641
      %643 = vrot.lane.b32.xlu0 %v533, 96
      %v644 = vpop.permute.xlu0 %643
      %645 = vrot.lane.b32.xlu0 %v539, 96
      %v646 = vpop.permute.xlu0 %645
      %647 = vrot.lane.b32.xlu0 %v541, 96
      %v648 = vpop.permute.xlu0 %647
      %649 = vrot.lane.b32.xlu0 %v545, 96
      %v650 = vpop.permute.xlu0 %649
      %651 = vrot.lane.b32.xlu0 %v547, 96
      %v652 = vpop.permute.xlu0 %651
      %653 = vrot.lane.b32.xlu0 %v551, 96
      %v654 = vpop.permute.xlu0 %653
      %655 = vrot.lane.b32.xlu0 %v553, 96
      %v656 = vpop.permute.xlu0 %655
      %v665 = vcombine.low %v642, %v650
      %v666 = vcombine.high %v642, %v650
      %v668 = vunpack.c.l.s4 1983009808
      %v669 = vunpack.c.0.s8 %v668
      %v670 = vlaneseq
      %v671 = vshrl.u32 %v670, 7
      %v672 = vsub.s32 %v669, %v671
      %v673 = vrot.slane %v665, %v672
      %v675 = vunpack.c.l.s4 1983009808
      %v676 = vunpack.c.0.s8 %v675
      %v677 = vlaneseq
      %v678 = vshrl.u32 %v677, 7
      %v679 = vsub.s32 %v676, %v678
      %v680 = vrot.slane %v666, %v679
      %v681 = vcombine.low %v646, %v654
      %v682 = vcombine.high %v646, %v654
      %v684 = vunpack.c.l.s4 1983009808
      %v685 = vunpack.c.0.s8 %v684
      %v686 = vlaneseq
      %v687 = vshrl.u32 %v686, 7
      %v688 = vsub.s32 %v685, %v687
      %v689 = vrot.slane %v681, %v688
      %v691 = vunpack.c.l.s4 1983009808
      %v692 = vunpack.c.0.s8 %v691
      %v693 = vlaneseq
      %v694 = vshrl.u32 %v693, 7
      %v695 = vsub.s32 %v692, %v694
      %v696 = vrot.slane %v682, %v695
      %v697 = vcombine.low %v673, %v689
      %v698 = vcombine.high %v673, %v689
      %v700 = vunpack.c.l.s4 1934713408
      %v701 = vunpack.c.0.s8 %v700
      %v702 = vlaneseq
      %v703 = vshrl.u32 %v702, 7
      %v704 = vsub.s32 %v701, %v703
      %v705 = vrot.slane %v697, %v704
      %v707 = vunpack.c.l.s4 1934713408
      %v708 = vunpack.c.0.s8 %v707
      %v709 = vlaneseq
      %v710 = vshrl.u32 %v709, 7
      %v711 = vsub.s32 %v708, %v710
      %v712 = vrot.slane %v698, %v711
      %v713 = vcombine.low %v680, %v696
      %v714 = vcombine.high %v680, %v696
      %v716 = vunpack.c.l.s4 1934713408
      %v717 = vunpack.c.0.s8 %v716
      %v718 = vlaneseq
      %v719 = vshrl.u32 %v718, 7
      %v720 = vsub.s32 %v717, %v719
      %v721 = vrot.slane %v713, %v720
      %v723 = vunpack.c.l.s4 1934713408
      %v724 = vunpack.c.0.s8 %v723
      %v725 = vlaneseq
      %v726 = vshrl.u32 %v725, 7
      %v727 = vsub.s32 %v724, %v726
      %v728 = vrot.slane %v714, %v727
      %v729 = vcombine.high %v705, 0.0
      %v730 = vcombine.high %v712, 0.0
      %v731 = vcombine.high %v721, 0.0
      %v732 = vcombine.high %v728, 0.0
      %v733 = vcombine.low %v644, %v652
      %v735 = vunpack.c.l.s4 1983009808
      %v736 = vunpack.c.0.s8 %v735
      %v737 = vlaneseq
      %v738 = vshrl.u32 %v737, 7
      %v739 = vsub.s32 %v736, %v738
      %v740 = vrot.slane %v733, %v739
      %v741 = vcombine.low %v648, %v656
      %v743 = vunpack.c.l.s4 1983009808
      %v744 = vunpack.c.0.s8 %v743
      %v745 = vlaneseq
      %v746 = vshrl.u32 %v745, 7
      %v747 = vsub.s32 %v744, %v746
      %v748 = vrot.slane %v741, %v747
      %v749 = vcombine.low %v740, %v748
      %750 = vrot.lane.b32.xlu0 %v530, 64
      %v751 = vpop.permute.xlu0 %750
      %752 = vrot.lane.b32.xlu0 %v533, 64
      %v753 = vpop.permute.xlu0 %752
      %754 = vrot.lane.b32.xlu0 %v539, 64
      %v755 = vpop.permute.xlu0 %754
      %756 = vrot.lane.b32.xlu0 %v541, 64
      %v757 = vpop.permute.xlu0 %756
      %758 = vrot.lane.b32.xlu0 %v545, 64
      %v759 = vpop.permute.xlu0 %758
      %760 = vrot.lane.b32.xlu0 %v547, 64
      %v761 = vpop.permute.xlu0 %760
      %762 = vrot.lane.b32.xlu0 %v551, 64
      %v763 = vpop.permute.xlu0 %762
      %764 = vrot.lane.b32.xlu0 %v553, 64
      %v765 = vpop.permute.xlu0 %764
      %v774 = vcombine.low %v751, %v759
      %v775 = vcombine.high %v751, %v759
      %v777 = vunpack.c.l.s4 1983009808
      %v778 = vunpack.c.0.s8 %v777
      %v779 = vlaneseq
      %v780 = vshrl.u32 %v779, 7
      %v781 = vsub.s32 %v778, %v780
      %v782 = vrot.slane %v774, %v781
      %v784 = vunpack.c.l.s4 1983009808
      %v785 = vunpack.c.0.s8 %v784
      %v786 = vlaneseq
      %v787 = vshrl.u32 %v786, 7
      %v788 = vsub.s32 %v785, %v787
      %v789 = vrot.slane %v775, %v788
      %v790 = vcombine.low %v755, %v763
      %v791 = vcombine.high %v755, %v763
      %v793 = vunpack.c.l.s4 1983009808
      %v794 = vunpack.c.0.s8 %v793
      %v795 = vlaneseq
      %v796 = vshrl.u32 %v795, 7
      %v797 = vsub.s32 %v794, %v796
      %v798 = vrot.slane %v790, %v797
      %v800 = vunpack.c.l.s4 1983009808
      %v801 = vunpack.c.0.s8 %v800
      %v802 = vlaneseq
      %v803 = vshrl.u32 %v802, 7
      %v804 = vsub.s32 %v801, %v803
      %v805 = vrot.slane %v791, %v804
      %v806 = vcombine.low %v782, %v798
      %v807 = vcombine.high %v782, %v798
      %v809 = vunpack.c.l.s4 1934713408
      %v810 = vunpack.c.0.s8 %v809
      %v811 = vlaneseq
      %v812 = vshrl.u32 %v811, 7
      %v813 = vsub.s32 %v810, %v812
      %v814 = vrot.slane %v806, %v813
      %v816 = vunpack.c.l.s4 1934713408
      %v817 = vunpack.c.0.s8 %v816
      %v818 = vlaneseq
      %v819 = vshrl.u32 %v818, 7
      %v820 = vsub.s32 %v817, %v819
      %v821 = vrot.slane %v807, %v820
      %v822 = vcombine.low %v789, %v805
      %v823 = vcombine.high %v789, %v805
      %v825 = vunpack.c.l.s4 1934713408
      %v826 = vunpack.c.0.s8 %v825
      %v827 = vlaneseq
      %v828 = vshrl.u32 %v827, 7
      %v829 = vsub.s32 %v826, %v828
      %v830 = vrot.slane %v822, %v829
      %v832 = vunpack.c.l.s4 1934713408
      %v833 = vunpack.c.0.s8 %v832
      %v834 = vlaneseq
      %v835 = vshrl.u32 %v834, 7
      %v836 = vsub.s32 %v833, %v835
      %v837 = vrot.slane %v823, %v836
      %v838 = vcombine.high %v814, 0.0
      %v839 = vcombine.high %v821, 0.0
      %v840 = vcombine.high %v830, 0.0
      %v841 = vcombine.high %v837, 0.0
      %v842 = vcombine.low %v753, %v761
      %v844 = vunpack.c.l.s4 1983009808
      %v845 = vunpack.c.0.s8 %v844
      %v846 = vlaneseq
      %v847 = vshrl.u32 %v846, 7
      %v848 = vsub.s32 %v845, %v847
      %v849 = vrot.slane %v842, %v848
      %v850 = vcombine.low %v757, %v765
      %v852 = vunpack.c.l.s4 1983009808
      %v853 = vunpack.c.0.s8 %v852
      %v854 = vlaneseq
      %v855 = vshrl.u32 %v854, 7
      %v856 = vsub.s32 %v853, %v855
      %v857 = vrot.slane %v850, %v856
      %v858 = vcombine.low %v849, %v857
      %v859 = vcombine.low %v596, %v603
      %v861 = vunpack.c.l.s4 1983009808
      %v862 = vunpack.c.0.s8 %v861
      %v863 = vlaneseq
      %v864 = vshrl.u32 %v863, 7
      %v865 = vsub.s32 %v862, %v864
      %v866 = vrot.slane %v859, %v865
      %v867 = vcombine.low %v620, %v621
      %v869 = vunpack.c.l.s4 1983009808
      %v870 = vunpack.c.0.s8 %v869
      %v871 = vlaneseq
      %v872 = vshrl.u32 %v871, 7
      %v873 = vsub.s32 %v870, %v872
      %v874 = vrot.slane %v867, %v873
      %v875 = vcombine.low %v612, %v619
      %v877 = vunpack.c.l.s4 1983009808
      %v878 = vunpack.c.0.s8 %v877
      %v879 = vlaneseq
      %v880 = vshrl.u32 %v879, 7
      %v881 = vsub.s32 %v878, %v880
      %v882 = vrot.slane %v875, %v881
      %v883 = vcombine.low %v622, %v623
      %v885 = vunpack.c.l.s4 1983009808
      %v886 = vunpack.c.0.s8 %v885
      %v887 = vlaneseq
      %v888 = vshrl.u32 %v887, 7
      %v889 = vsub.s32 %v886, %v888
      %v890 = vrot.slane %v883, %v889
      %v891 = vcombine.low %v866, %v874
      %v892 = vcombine.high %v866, %v874
      %v894 = vunpack.c.l.s4 1934713408
      %v895 = vunpack.c.0.s8 %v894
      %v896 = vlaneseq
      %v897 = vshrl.u32 %v896, 7
      %v898 = vsub.s32 %v895, %v897
      %v899 = vrot.slane %v891, %v898
      %v901 = vunpack.c.l.s4 1934713408
      %v902 = vunpack.c.0.s8 %v901
      %v903 = vlaneseq
      %v904 = vshrl.u32 %v903, 7
      %v905 = vsub.s32 %v902, %v904
      %v906 = vrot.slane %v892, %v905
      %v907 = vcombine.low %v882, %v890
      %v908 = vcombine.high %v882, %v890
      %v910 = vunpack.c.l.s4 1934713408
      %v911 = vunpack.c.0.s8 %v910
      %v912 = vlaneseq
      %v913 = vshrl.u32 %v912, 7
      %v914 = vsub.s32 %v911, %v913
      %v915 = vrot.slane %v907, %v914
      %v917 = vunpack.c.l.s4 1934713408
      %v918 = vunpack.c.0.s8 %v917
      %v919 = vlaneseq
      %v920 = vshrl.u32 %v919, 7
      %v921 = vsub.s32 %v918, %v920
      %v922 = vrot.slane %v908, %v921
      %v923 = vcombine.low %v899, %v915
      %v924 = vcombine.high %v899, %v915
      %v925 = vcombine.low %v906, %v922
      %v926 = vcombine.high %v906, %v922
      %v928 = vunpack.c.l.s4 1934713408
      %v929 = vunpack.c.0.s8 %v928
      %v930 = vlaneseq
      %v931 = vshrl.u32 %v930, 7
      %v932 = vsub.s32 %v929, %v931
      %v933 = vrot.slane %v640, %v932
      %v935 = vunpack.c.l.s4 1983009808
      %v936 = vunpack.c.0.s8 %v935
      %v937 = vlaneseq
      %v938 = vshrl.u32 %v937, 7
      %v939 = vsub.s32 %v936, %v938
      %v940 = vrot.slane %v933, %v939
      %v941 = vcombine.high %v940, 0.0
      %v943 = vunpack.c.l.s4 1934713408
      %v944 = vunpack.c.0.s8 %v943
      %v945 = vlaneseq
      %v946 = vshrl.u32 %v945, 7
      %v947 = vsub.s32 %v944, %v946
      %v948 = vrot.slane %v940, %v947
      %v950 = vunpack.c.l.s4 1934713408
      %v951 = vunpack.c.0.s8 %v950
      %v952 = vlaneseq
      %v953 = vshrl.u32 %v952, 7
      %v954 = vsub.s32 %v951, %v953
      %v955 = vrot.slane %v941, %v954
      %v956 = vcombine.high %v948, 0.0
      %v957 = vcombine.high %v955, 0.0
      %v958 = vmul.f32 %v923, 0.35355338
      %v959 = vmul.f32 %v948, 0.35355338
      %v960 = vmul.f32 %v924, 0.35355338
      %v961 = vmul.f32 %v956, 0.35355338
      %v962 = vmul.f32 %v925, 0.35355338
      %v963 = vmul.f32 %v955, 0.35355338
      %v964 = vmul.f32 %v926, 0.35355338
      %v965 = vmul.f32 %v957, 0.35355338
      %v966 = vcombine.low %v705, %v712
      %v968 = vunpack.c.l.s4 1983009808
      %v969 = vunpack.c.0.s8 %v968
      %v970 = vlaneseq
      %v971 = vshrl.u32 %v970, 7
      %v972 = vsub.s32 %v969, %v971
      %v973 = vrot.slane %v966, %v972
      %v974 = vcombine.low %v729, %v730
      %v976 = vunpack.c.l.s4 1983009808
      %v977 = vunpack.c.0.s8 %v976
      %v978 = vlaneseq
      %v979 = vshrl.u32 %v978, 7
      %v980 = vsub.s32 %v977, %v979
      %v981 = vrot.slane %v974, %v980
      %v982 = vcombine.low %v721, %v728
      %v984 = vunpack.c.l.s4 1983009808
      %v985 = vunpack.c.0.s8 %v984
      %v986 = vlaneseq
      %v987 = vshrl.u32 %v986, 7
      %v988 = vsub.s32 %v985, %v987
      %v989 = vrot.slane %v982, %v988
      %v990 = vcombine.low %v731, %v732
      %v992 = vunpack.c.l.s4 1983009808
      %v993 = vunpack.c.0.s8 %v992
      %v994 = vlaneseq
      %v995 = vshrl.u32 %v994, 7
      %v996 = vsub.s32 %v993, %v995
      %v997 = vrot.slane %v990, %v996
      %v998 = vcombine.low %v973, %v981
      %v999 = vcombine.high %v973, %v981
      %v1001 = vunpack.c.l.s4 1934713408
      %v1002 = vunpack.c.0.s8 %v1001
      %v1003 = vlaneseq
      %v1004 = vshrl.u32 %v1003, 7
      %v1005 = vsub.s32 %v1002, %v1004
      %v1006 = vrot.slane %v998, %v1005
      %v1008 = vunpack.c.l.s4 1934713408
      %v1009 = vunpack.c.0.s8 %v1008
      %v1010 = vlaneseq
      %v1011 = vshrl.u32 %v1010, 7
      %v1012 = vsub.s32 %v1009, %v1011
      %v1013 = vrot.slane %v999, %v1012
      %v1014 = vcombine.low %v989, %v997
      %v1015 = vcombine.high %v989, %v997
      %v1017 = vunpack.c.l.s4 1934713408
      %v1018 = vunpack.c.0.s8 %v1017
      %v1019 = vlaneseq
      %v1020 = vshrl.u32 %v1019, 7
      %v1021 = vsub.s32 %v1018, %v1020
      %v1022 = vrot.slane %v1014, %v1021
      %v1024 = vunpack.c.l.s4 1934713408
      %v1025 = vunpack.c.0.s8 %v1024
      %v1026 = vlaneseq
      %v1027 = vshrl.u32 %v1026, 7
      %v1028 = vsub.s32 %v1025, %v1027
      %v1029 = vrot.slane %v1015, %v1028
      %v1030 = vcombine.low %v1006, %v1022
      %v1031 = vcombine.high %v1006, %v1022
      %v1032 = vcombine.low %v1013, %v1029
      %v1033 = vcombine.high %v1013, %v1029
      %v1035 = vunpack.c.l.s4 1934713408
      %v1036 = vunpack.c.0.s8 %v1035
      %v1037 = vlaneseq
      %v1038 = vshrl.u32 %v1037, 7
      %v1039 = vsub.s32 %v1036, %v1038
      %v1040 = vrot.slane %v749, %v1039
      %v1042 = vunpack.c.l.s4 1983009808
      %v1043 = vunpack.c.0.s8 %v1042
      %v1044 = vlaneseq
      %v1045 = vshrl.u32 %v1044, 7
      %v1046 = vsub.s32 %v1043, %v1045
      %v1047 = vrot.slane %v1040, %v1046
      %v1048 = vcombine.high %v1047, 0.0
      %v1050 = vunpack.c.l.s4 1934713408
      %v1051 = vunpack.c.0.s8 %v1050
      %v1052 = vlaneseq
      %v1053 = vshrl.u32 %v1052, 7
      %v1054 = vsub.s32 %v1051, %v1053
      %v1055 = vrot.slane %v1047, %v1054
      %v1057 = vunpack.c.l.s4 1934713408
      %v1058 = vunpack.c.0.s8 %v1057
      %v1059 = vlaneseq
      %v1060 = vshrl.u32 %v1059, 7
      %v1061 = vsub.s32 %v1058, %v1060
      %v1062 = vrot.slane %v1048, %v1061
      %v1063 = vcombine.high %v1055, 0.0
      %v1064 = vcombine.high %v1062, 0.0
      %v1065 = vcombine.low %v814, %v821
      %v1067 = vunpack.c.l.s4 1983009808
      %v1068 = vunpack.c.0.s8 %v1067
      %v1069 = vlaneseq
      %v1070 = vshrl.u32 %v1069, 7
      %v1071 = vsub.s32 %v1068, %v1070
      %v1072 = vrot.slane %v1065, %v1071
      %v1073 = vcombine.low %v838, %v839
      %v1075 = vunpack.c.l.s4 1983009808
      %v1076 = vunpack.c.0.s8 %v1075
      %v1077 = vlaneseq
      %v1078 = vshrl.u32 %v1077, 7
      %v1079 = vsub.s32 %v1076, %v1078
      %v1080 = vrot.slane %v1073, %v1079
      %v1081 = vcombine.low %v830, %v837
      %v1083 = vunpack.c.l.s4 1983009808
      %v1084 = vunpack.c.0.s8 %v1083
      %v1085 = vlaneseq
      %v1086 = vshrl.u32 %v1085, 7
      %v1087 = vsub.s32 %v1084, %v1086
      %v1088 = vrot.slane %v1081, %v1087
      %v1089 = vcombine.low %v840, %v841
      %v1091 = vunpack.c.l.s4 1983009808
      %v1092 = vunpack.c.0.s8 %v1091
      %v1093 = vlaneseq
      %v1094 = vshrl.u32 %v1093, 7
      %v1095 = vsub.s32 %v1092, %v1094
      %v1096 = vrot.slane %v1089, %v1095
      %v1097 = vcombine.low %v1072, %v1080
      %v1098 = vcombine.high %v1072, %v1080
      %v1100 = vunpack.c.l.s4 1934713408
      %v1101 = vunpack.c.0.s8 %v1100
      %v1102 = vlaneseq
      %v1103 = vshrl.u32 %v1102, 7
      %v1104 = vsub.s32 %v1101, %v1103
      %v1105 = vrot.slane %v1097, %v1104
      %v1107 = vunpack.c.l.s4 1934713408
      %v1108 = vunpack.c.0.s8 %v1107
      %v1109 = vlaneseq
      %v1110 = vshrl.u32 %v1109, 7
      %v1111 = vsub.s32 %v1108, %v1110
      %v1112 = vrot.slane %v1098, %v1111
      %v1113 = vcombine.low %v1088, %v1096
      %v1114 = vcombine.high %v1088, %v1096
      %v1116 = vunpack.c.l.s4 1934713408
      %v1117 = vunpack.c.0.s8 %v1116
      %v1118 = vlaneseq
      %v1119 = vshrl.u32 %v1118, 7
      %v1120 = vsub.s32 %v1117, %v1119
      %v1121 = vrot.slane %v1113, %v1120
      %v1123 = vunpack.c.l.s4 1934713408
      %v1124 = vunpack.c.0.s8 %v1123
      %v1125 = vlaneseq
      %v1126 = vshrl.u32 %v1125, 7
      %v1127 = vsub.s32 %v1124, %v1126
      %v1128 = vrot.slane %v1114, %v1127
      %v1129 = vcombine.low %v1105, %v1121
      %v1130 = vcombine.high %v1105, %v1121
      %v1131 = vcombine.low %v1112, %v1128
      %v1132 = vcombine.high %v1112, %v1128
      %v1134 = vunpack.c.l.s4 1934713408
      %v1135 = vunpack.c.0.s8 %v1134
      %v1136 = vlaneseq
      %v1137 = vshrl.u32 %v1136, 7
      %v1138 = vsub.s32 %v1135, %v1137
      %v1139 = vrot.slane %v858, %v1138
      %v1141 = vunpack.c.l.s4 1983009808
      %v1142 = vunpack.c.0.s8 %v1141
      %v1143 = vlaneseq
      %v1144 = vshrl.u32 %v1143, 7
      %v1145 = vsub.s32 %v1142, %v1144
      %v1146 = vrot.slane %v1139, %v1145
      %v1147 = vcombine.high %v1146, 0.0
      %v1149 = vunpack.c.l.s4 1934713408
      %v1150 = vunpack.c.0.s8 %v1149
      %v1151 = vlaneseq
      %v1152 = vshrl.u32 %v1151, 7
      %v1153 = vsub.s32 %v1150, %v1152
      %v1154 = vrot.slane %v1146, %v1153
      %v1156 = vunpack.c.l.s4 1934713408
      %v1157 = vunpack.c.0.s8 %v1156
      %v1158 = vlaneseq
      %v1159 = vshrl.u32 %v1158, 7
      %v1160 = vsub.s32 %v1157, %v1159
      %v1161 = vrot.slane %v1147, %v1160
      %v1162 = vcombine.high %v1154, 0.0
      %v1163 = vcombine.high %v1161, 0.0
      %v1164 = vpack.c.bf16 %v959, %v958
      %v1165 = vpack.c.bf16 %v961, %v960
      %v1166 = vpack.c.bf16 %v963, %v962
      %v1167 = vpack.c.bf16 %v965, %v964
      %v1168 = vpack.c.bf16 %v1055, %v1030
      %v1169 = vpack.c.bf16 %v1063, %v1031
      %v1170 = vpack.c.bf16 %v1062, %v1032
      %v1171 = vpack.c.bf16 %v1064, %v1033
      %vm1172 = vcmask 64512
      %v1174 = vsel %vm1172, %v1164, 0
      %v1177 = vsel %vm1172, %v1168, 0
      %1179 = vmatprep.subr.bf16.mxu0 0
      %1180 = vmatpush1.bf16.xpose.msra.mxu0 %v1177
      %1181 = vmatprep.subr.bf16.mxu0 0
      %1182 = vmatpush1.bf16.xpose.msra.mxu0 0
      %1183 = vmatprep.subr.bf16.mxu0 0
      %1184 = vmatpush1.bf16.xpose.msra.mxu0 0
      %1185 = vmatprep.subr.bf16.mxu0 0
      %1186 = vmatpush1.bf16.xpose.msra.mxu0 0
      %1187 = vmatprep.subr.bf16.mxu0 0
      %1188 = vmatpush1.bf16.xpose.msra.mxu0 0
      %1189 = vmatprep.subr.bf16.mxu0 0
      %1190 = vmatpush1.bf16.xpose.msra.mxu0 0
      %1191 = vmatprep.subr.bf16.mxu0 0
      %1192 = vmatpush1.bf16.xpose.msra.mxu0 0
      %1193 = vmatprep.subr.bf16.mxu0 0
      %1194 = vmatpush1.bf16.xpose.msra.mxu0 0
      %1195 = vmatprep.subr.bf16.mxu0 0
      %1196 = vmatpush1.bf16.xpose.msra.mxu0 0
      %1197 = vmatprep.subr.bf16.mxu0 0
      %1198 = vmatpush1.bf16.xpose.msra.mxu0 0
      %1199 = vmatprep.subr.bf16.mxu0 0
      %1200 = vmatpush1.bf16.xpose.msra.mxu0 0
      %1201 = vmatprep.subr.bf16.mxu0 0
      %1202 = vmatpush1.bf16.xpose.msra.mxu0 0
      %1203 = vmatprep.subr.bf16.mxu0 0
      %1204 = vmatpush1.bf16.xpose.msra.mxu0 0
      %1205 = vmatprep.subr.bf16.mxu0 0
      %1206 = vmatpush1.bf16.xpose.msra.mxu0 0
      %1207 = vmatprep.subr.bf16.mxu0 0
      %1208 = vmatpush1.bf16.xpose.msra.mxu0 0
      %1209 = vmatprep.subr.bf16.mxu0 0
      %1210 = vmatpush1.bf16.xpose.msra.mxu0 0
      %1211 = vmatprep.mubr.bf16.mxu0 0
      %1212 = vmatmul.mubr.bf16.gmra.mrb[0].mxu0 %v1174
      %v1213 = vpop.f32.mrb[0].mxu0
      %v1214 = vadd.f32 0.0, %v1213
      %v1215 = vpop.f32.mrb[0].mxu0
      %v1216 = vpop.f32.mrb[0].mxu0
      %v1217 = vadd.f32 0.0, %v1216
      %v1218 = vpop.f32.mrb[0].mxu0
      %1219 = vdwg.mxu0
      %v1221 = vsel %vm1172, %v1165, 0
      %v1224 = vsel %vm1172, %v1169, 0
      %1226 = vmatprep.subr.bf16.mxu0 0
      %1227 = vmatpush1.bf16.xpose.msra.mxu0 %v1224
      %1228 = vmatprep.subr.bf16.mxu0 0
      %1229 = vmatpush1.bf16.xpose.msra.mxu0 0
      %1230 = vmatprep.subr.bf16.mxu0 0
      %1231 = vmatpush1.bf16.xpose.msra.mxu0 0
      %1232 = vmatprep.subr.bf16.mxu0 0
      %1233 = vmatpush1.bf16.xpose.msra.mxu0 0
      %1234 = vmatprep.subr.bf16.mxu0 0
      %1235 = vmatpush1.bf16.xpose.msra.mxu0 0
      %1236 = vmatprep.subr.bf16.mxu0 0
      %1237 = vmatpush1.bf16.xpose.msra.mxu0 0
      %1238 = vmatprep.subr.bf16.mxu0 0
      %1239 = vmatpush1.bf16.xpose.msra.mxu0 0
      %1240 = vmatprep.subr.bf16.mxu0 0
      %1241 = vmatpush1.bf16.xpose.msra.mxu0 0
      %1242 = vmatprep.subr.bf16.mxu0 0
      %1243 = vmatpush1.bf16.xpose.msra.mxu0 0
      %1244 = vmatprep.subr.bf16.mxu0 0
      %1245 = vmatpush1.bf16.xpose.msra.mxu0 0
      %1246 = vmatprep.subr.bf16.mxu0 0
      %1247 = vmatpush1.bf16.xpose.msra.mxu0 0
      %1248 = vmatprep.subr.bf16.mxu0 0
      %1249 = vmatpush1.bf16.xpose.msra.mxu0 0
      %1250 = vmatprep.subr.bf16.mxu0 0
      %1251 = vmatpush1.bf16.xpose.msra.mxu0 0
      %1252 = vmatprep.subr.bf16.mxu0 0
      %1253 = vmatpush1.bf16.xpose.msra.mxu0 0
      %1254 = vmatprep.subr.bf16.mxu0 0
      %1255 = vmatpush1.bf16.xpose.msra.mxu0 0
      %1256 = vmatprep.subr.bf16.mxu0 0
      %1257 = vmatpush1.bf16.xpose.msra.mxu0 0
      %1258 = vmatprep.mubr.bf16.mxu0 0
      %1259 = vmatmul.mubr.bf16.gmra.mrb[0].mxu0 %v1221
      %v1260 = vpop.f32.mrb[0].mxu0
      %v1261 = vadd.f32 0.0, %v1260
      %v1262 = vpop.f32.mrb[0].mxu0
      %v1263 = vpop.f32.mrb[0].mxu0
      %v1264 = vadd.f32 0.0, %v1263
      %v1265 = vpop.f32.mrb[0].mxu0
      %1266 = vdwg.mxu0
      %v1268 = vsel %vm1172, %v1166, 0
      %v1271 = vsel %vm1172, %v1170, 0
      %1273 = vmatprep.subr.bf16.mxu0 0
      %1274 = vmatpush1.bf16.xpose.msra.mxu0 %v1271
      %1275 = vmatprep.subr.bf16.mxu0 0
      %1276 = vmatpush1.bf16.xpose.msra.mxu0 0
      %1277 = vmatprep.subr.bf16.mxu0 0
      %1278 = vmatpush1.bf16.xpose.msra.mxu0 0
      %1279 = vmatprep.subr.bf16.mxu0 0
      %1280 = vmatpush1.bf16.xpose.msra.mxu0 0
      %1281 = vmatprep.subr.bf16.mxu0 0
      %1282 = vmatpush1.bf16.xpose.msra.mxu0 0
      %1283 = vmatprep.subr.bf16.mxu0 0
      %1284 = vmatpush1.bf16.xpose.msra.mxu0 0
      %1285 = vmatprep.subr.bf16.mxu0 0
      %1286 = vmatpush1.bf16.xpose.msra.mxu0 0
      %1287 = vmatprep.subr.bf16.mxu0 0
      %1288 = vmatpush1.bf16.xpose.msra.mxu0 0
      %1289 = vmatprep.subr.bf16.mxu0 0
      %1290 = vmatpush1.bf16.xpose.msra.mxu0 0
      %1291 = vmatprep.subr.bf16.mxu0 0
      %1292 = vmatpush1.bf16.xpose.msra.mxu0 0
      %1293 = vmatprep.subr.bf16.mxu0 0
      %1294 = vmatpush1.bf16.xpose.msra.mxu0 0
      %1295 = vmatprep.subr.bf16.mxu0 0
      %1296 = vmatpush1.bf16.xpose.msra.mxu0 0
      %1297 = vmatprep.subr.bf16.mxu0 0
      %1298 = vmatpush1.bf16.xpose.msra.mxu0 0
      %1299 = vmatprep.subr.bf16.mxu0 0
      %1300 = vmatpush1.bf16.xpose.msra.mxu0 0
      %1301 = vmatprep.subr.bf16.mxu0 0
      %1302 = vmatpush1.bf16.xpose.msra.mxu0 0
      %1303 = vmatprep.subr.bf16.mxu0 0
      %1304 = vmatpush1.bf16.xpose.msra.mxu0 0
      %1305 = vmatprep.mubr.bf16.mxu0 0
      %1306 = vmatmul.mubr.bf16.gmra.mrb[0].mxu0 %v1268
      %v1307 = vpop.f32.mrb[0].mxu0
      %v1308 = vadd.f32 0.0, %v1307
      %v1309 = vpop.f32.mrb[0].mxu0
      %v1310 = vpop.f32.mrb[0].mxu0
      %v1311 = vadd.f32 0.0, %v1310
      %v1312 = vpop.f32.mrb[0].mxu0
      %1313 = vdwg.mxu0
      %v1315 = vsel %vm1172, %v1167, 0
      %v1318 = vsel %vm1172, %v1171, 0
      %1320 = vmatprep.subr.bf16.mxu0 0
      %1321 = vmatpush1.bf16.xpose.msra.mxu0 %v1318
      %1322 = vmatprep.subr.bf16.mxu0 0
      %1323 = vmatpush1.bf16.xpose.msra.mxu0 0
      %1324 = vmatprep.subr.bf16.mxu0 0
      %1325 = vmatpush1.bf16.xpose.msra.mxu0 0
      %1326 = vmatprep.subr.bf16.mxu0 0
      %1327 = vmatpush1.bf16.xpose.msra.mxu0 0
      %1328 = vmatprep.subr.bf16.mxu0 0
      %1329 = vmatpush1.bf16.xpose.msra.mxu0 0
      %1330 = vmatprep.subr.bf16.mxu0 0
      %1331 = vmatpush1.bf16.xpose.msra.mxu0 0
      %1332 = vmatprep.subr.bf16.mxu0 0
      %1333 = vmatpush1.bf16.xpose.msra.mxu0 0
      %1334 = vmatprep.subr.bf16.mxu0 0
      %1335 = vmatpush1.bf16.xpose.msra.mxu0 0
      %1336 = vmatprep.subr.bf16.mxu0 0
      %1337 = vmatpush1.bf16.xpose.msra.mxu0 0
      %1338 = vmatprep.subr.bf16.mxu0 0
      %1339 = vmatpush1.bf16.xpose.msra.mxu0 0
      %1340 = vmatprep.subr.bf16.mxu0 0
      %1341 = vmatpush1.bf16.xpose.msra.mxu0 0
      %1342 = vmatprep.subr.bf16.mxu0 0
      %1343 = vmatpush1.bf16.xpose.msra.mxu0 0
      %1344 = vmatprep.subr.bf16.mxu0 0
      %1345 = vmatpush1.bf16.xpose.msra.mxu0 0
      %1346 = vmatprep.subr.bf16.mxu0 0
      %1347 = vmatpush1.bf16.xpose.msra.mxu0 0
      %1348 = vmatprep.subr.bf16.mxu0 0
      %1349 = vmatpush1.bf16.xpose.msra.mxu0 0
      %1350 = vmatprep.subr.bf16.mxu0 0
      %1351 = vmatpush1.bf16.xpose.msra.mxu0 0
      %1352 = vmatprep.mubr.bf16.mxu0 0
      %1353 = vmatmul.mubr.bf16.gmra.mrb[0].mxu0 %v1315
      %v1354 = vpop.f32.mrb[0].mxu0
      %v1355 = vadd.f32 0.0, %v1354
      %v1356 = vpop.f32.mrb[0].mxu0
      %v1357 = vpop.f32.mrb[0].mxu0
      %v1358 = vadd.f32 0.0, %v1357
      %v1359 = vpop.f32.mrb[0].mxu0
      %1360 = vdwg.mxu0
      %vm1361 = vcmask 72704
      %v1362 = vsel %vm1361, %v1214, -inf
      %1363 = vmax.xlane.f32.xlu0 %v1362
      %v1364 = vpop.xlane.xlu0 %1363
      %vm1365 = vcmask 65536
      %v1366 = vsel %vm1365, %v1217, -inf
      %1367 = vmax.xlane.f32.xlu0 %v1366
      %v1368 = vpop.xlane.xlu0 %1367
      %v1369 = vsel %vm1361, %v1261, -inf
      %1370 = vmax.xlane.f32.xlu0 %v1369
      %v1371 = vpop.xlane.xlu0 %1370
      %v1372 = vsel %vm1365, %v1264, -inf
      %1373 = vmax.xlane.f32.xlu0 %v1372
      %v1374 = vpop.xlane.xlu0 %1373
      %v1375 = vsel %vm1361, %v1308, -inf
      %1376 = vmax.xlane.f32.xlu0 %v1375
      %v1377 = vpop.xlane.xlu0 %1376
      %v1378 = vsel %vm1365, %v1311, -inf
      %1379 = vmax.xlane.f32.xlu0 %v1378
      %v1380 = vpop.xlane.xlu0 %1379
      %v1381 = vsel %vm1361, %v1355, -inf
      %1382 = vmax.xlane.f32.xlu0 %v1381
      %v1383 = vpop.xlane.xlu0 %1382
      %v1384 = vsel %vm1365, %v1358, -inf
      %1385 = vmax.xlane.f32.xlu0 %v1384
      %v1386 = vpop.xlane.xlu0 %1385
      %v1387 = vsub.f32 %v1214, %v1364
      %v1388 = vsub.f32 %v1217, %v1368
      %v1389 = vsub.f32 %v1261, %v1371
      %v1390 = vsub.f32 %v1264, %v1374
      %v1391 = vsub.f32 %v1308, %v1377
      %v1392 = vsub.f32 %v1311, %v1380
      %v1393 = vsub.f32 %v1355, %v1383
      %v1394 = vsub.f32 %v1358, %v1386
      %v1395 = vmul.f32 %v1387, 1.442695
      %v1396 = vpow.pop %v1395
      %v1397 = vmul.f32 %v1388, 1.442695
      %v1398 = vpow.pop %v1397
      %v1399 = vmul.f32 %v1389, 1.442695
      %v1400 = vpow.pop %v1399
      %v1401 = vmul.f32 %v1390, 1.442695
      %v1402 = vpow.pop %v1401
      %v1403 = vmul.f32 %v1391, 1.442695
      %v1404 = vpow.pop %v1403
      %v1405 = vmul.f32 %v1392, 1.442695
      %v1406 = vpow.pop %v1405
      %v1407 = vmul.f32 %v1393, 1.442695
      %v1408 = vpow.pop %v1407
      %v1409 = vmul.f32 %v1394, 1.442695
      %v1410 = vpow.pop %v1409
      %v1411 = vsel %vm1361, %v1396, 0.0
      %1412 = vadd.xlane.f32.xlu0 %v1411
      %v1413 = vpop.xlane.xlu0 %1412
      %v1414 = vsel %vm1365, %v1398, 0.0
      %1415 = vadd.xlane.f32.xlu0 %v1414
      %v1416 = vpop.xlane.xlu0 %1415
      %v1417 = vsel %vm1361, %v1400, 0.0
      %1418 = vadd.xlane.f32.xlu0 %v1417
      %v1419 = vpop.xlane.xlu0 %1418
      %v1420 = vsel %vm1365, %v1402, 0.0
      %1421 = vadd.xlane.f32.xlu0 %v1420
      %v1422 = vpop.xlane.xlu0 %1421
      %v1423 = vsel %vm1361, %v1404, 0.0
      %1424 = vadd.xlane.f32.xlu0 %v1423
      %v1425 = vpop.xlane.xlu0 %1424
      %v1426 = vsel %vm1365, %v1406, 0.0
      %1427 = vadd.xlane.f32.xlu0 %v1426
      %v1428 = vpop.xlane.xlu0 %1427
      %v1429 = vsel %vm1361, %v1408, 0.0
      %1430 = vadd.xlane.f32.xlu0 %v1429
      %v1431 = vpop.xlane.xlu0 %1430
      %v1432 = vsel %vm1365, %v1410, 0.0
      %1433 = vadd.xlane.f32.xlu0 %v1432
      %v1434 = vpop.xlane.xlu0 %1433
      %v1435 = vpack.c.bf16 %v1398, %v1396
      %v1436 = vpack.c.bf16 %v1402, %v1400
      %v1437 = vpack.c.bf16 %v1406, %v1404
      %v1438 = vpack.c.bf16 %v1410, %v1408
      %v1439 = vpack.c.bf16 %v1154, %v1129
      %v1440 = vpack.c.bf16 %v1162, %v1130
      %v1441 = vpack.c.bf16 %v1161, %v1131
      %v1442 = vpack.c.bf16 %v1163, %v1132
      %v1444 = vsel %vm1361, %v1435, 0
      %vm1446 = vcmask 1043456
      %vm1447 = vcmask 1044480
      %v1448 = vsel %vm1446, 4294967295, 65535
      %v1449 = vsel %vm1447, %v1448, 0
      %v1451 = vand.u32 %v1439, %v1449
      %1453 = vmatprep.subr.bf16.mxu0 0
      %1454 = vmatpush1.bf16.msra.mxu0 %v1451
      %1455 = vmatprep.subr.bf16.mxu0 0
      %1456 = vmatpush1.bf16.msra.mxu0 0
      %1457 = vmatprep.subr.bf16.mxu0 0
      %1458 = vmatpush1.bf16.msra.mxu0 0
      %1459 = vmatprep.subr.bf16.mxu0 0
      %1460 = vmatpush1.bf16.msra.mxu0 0
      %1461 = vmatprep.subr.bf16.mxu0 0
      %1462 = vmatpush1.bf16.msra.mxu0 0
      %1463 = vmatprep.subr.bf16.mxu0 0
      %1464 = vmatpush1.bf16.msra.mxu0 0
      %1465 = vmatprep.subr.bf16.mxu0 0
      %1466 = vmatpush1.bf16.msra.mxu0 0
      %1467 = vmatprep.subr.bf16.mxu0 0
      %1468 = vmatpush1.bf16.msra.mxu0 0
      %1469 = vmatprep.subr.bf16.mxu0 0
      %1470 = vmatpush1.bf16.msra.mxu0 0
      %1471 = vmatprep.subr.bf16.mxu0 0
      %1472 = vmatpush1.bf16.msra.mxu0 0
      %1473 = vmatprep.subr.bf16.mxu0 0
      %1474 = vmatpush1.bf16.msra.mxu0 0
      %1475 = vmatprep.subr.bf16.mxu0 0
      %1476 = vmatpush1.bf16.msra.mxu0 0
      %1477 = vmatprep.subr.bf16.mxu0 0
      %1478 = vmatpush1.bf16.msra.mxu0 0
      %1479 = vmatprep.subr.bf16.mxu0 0
      %1480 = vmatpush1.bf16.msra.mxu0 0
      %1481 = vmatprep.subr.bf16.mxu0 0
      %1482 = vmatpush1.bf16.msra.mxu0 0
      %1483 = vmatprep.subr.bf16.mxu0 0
      %1484 = vmatpush1.bf16.msra.mxu0 0
      %1485 = vmatprep.mubr.bf16.mxu0 0
      %1486 = vmatmul.mubr.bf16.gmra.mrb[0].mxu0 %v1444
      %v1487 = vpop.f32.mrb[0].mxu0
      %v1488 = vadd.f32 0.0, %v1487
      %v1489 = vpop.f32.mrb[0].mxu0
      %v1490 = vpop.f32.mrb[0].mxu0
      %v1491 = vadd.f32 0.0, %v1490
      %v1492 = vpop.f32.mrb[0].mxu0
      %1493 = vdwg.mxu0
      %v1495 = vsel %vm1361, %v1436, 0
      %v1498 = vand.u32 %v1440, %v1449
      %1500 = vmatprep.subr.bf16.mxu0 0
      %1501 = vmatpush1.bf16.msra.mxu0 %v1498
      %1502 = vmatprep.subr.bf16.mxu0 0
      %1503 = vmatpush1.bf16.msra.mxu0 0
      %1504 = vmatprep.subr.bf16.mxu0 0
      %1505 = vmatpush1.bf16.msra.mxu0 0
      %1506 = vmatprep.subr.bf16.mxu0 0
      %1507 = vmatpush1.bf16.msra.mxu0 0
      %1508 = vmatprep.subr.bf16.mxu0 0
      %1509 = vmatpush1.bf16.msra.mxu0 0
      %1510 = vmatprep.subr.bf16.mxu0 0
      %1511 = vmatpush1.bf16.msra.mxu0 0
      %1512 = vmatprep.subr.bf16.mxu0 0
      %1513 = vmatpush1.bf16.msra.mxu0 0
      %1514 = vmatprep.subr.bf16.mxu0 0
      %1515 = vmatpush1.bf16.msra.mxu0 0
      %1516 = vmatprep.subr.bf16.mxu0 0
      %1517 = vmatpush1.bf16.msra.mxu0 0
      %1518 = vmatprep.subr.bf16.mxu0 0
      %1519 = vmatpush1.bf16.msra.mxu0 0
      %1520 = vmatprep.subr.bf16.mxu0 0
      %1521 = vmatpush1.bf16.msra.mxu0 0
      %1522 = vmatprep.subr.bf16.mxu0 0
      %1523 = vmatpush1.bf16.msra.mxu0 0
      %1524 = vmatprep.subr.bf16.mxu0 0
      %1525 = vmatpush1.bf16.msra.mxu0 0
      %1526 = vmatprep.subr.bf16.mxu0 0
      %1527 = vmatpush1.bf16.msra.mxu0 0
      %1528 = vmatprep.subr.bf16.mxu0 0
      %1529 = vmatpush1.bf16.msra.mxu0 0
      %1530 = vmatprep.subr.bf16.mxu0 0
      %1531 = vmatpush1.bf16.msra.mxu0 0
      %1532 = vmatprep.mubr.bf16.mxu0 0
      %1533 = vmatmul.mubr.bf16.gmra.mrb[0].mxu0 %v1495
      %v1534 = vpop.f32.mrb[0].mxu0
      %v1535 = vadd.f32 0.0, %v1534
      %v1536 = vpop.f32.mrb[0].mxu0
      %v1537 = vpop.f32.mrb[0].mxu0
      %v1538 = vadd.f32 0.0, %v1537
      %v1539 = vpop.f32.mrb[0].mxu0
      %1540 = vdwg.mxu0
      %v1542 = vsel %vm1361, %v1437, 0
      %v1545 = vand.u32 %v1441, %v1449
      %1547 = vmatprep.subr.bf16.mxu0 0
      %1548 = vmatpush1.bf16.msra.mxu0 %v1545
      %1549 = vmatprep.subr.bf16.mxu0 0
      %1550 = vmatpush1.bf16.msra.mxu0 0
      %1551 = vmatprep.subr.bf16.mxu0 0
      %1552 = vmatpush1.bf16.msra.mxu0 0
      %1553 = vmatprep.subr.bf16.mxu0 0
      %1554 = vmatpush1.bf16.msra.mxu0 0
      %1555 = vmatprep.subr.bf16.mxu0 0
      %1556 = vmatpush1.bf16.msra.mxu0 0
      %1557 = vmatprep.subr.bf16.mxu0 0
      %1558 = vmatpush1.bf16.msra.mxu0 0
      %1559 = vmatprep.subr.bf16.mxu0 0
      %1560 = vmatpush1.bf16.msra.mxu0 0
      %1561 = vmatprep.subr.bf16.mxu0 0
      %1562 = vmatpush1.bf16.msra.mxu0 0
      %1563 = vmatprep.subr.bf16.mxu0 0
      %1564 = vmatpush1.bf16.msra.mxu0 0
      %1565 = vmatprep.subr.bf16.mxu0 0
      %1566 = vmatpush1.bf16.msra.mxu0 0
      %1567 = vmatprep.subr.bf16.mxu0 0
      %1568 = vmatpush1.bf16.msra.mxu0 0
      %1569 = vmatprep.subr.bf16.mxu0 0
      %1570 = vmatpush1.bf16.msra.mxu0 0
      %1571 = vmatprep.subr.bf16.mxu0 0
      %1572 = vmatpush1.bf16.msra.mxu0 0
      %1573 = vmatprep.subr.bf16.mxu0 0
      %1574 = vmatpush1.bf16.msra.mxu0 0
      %1575 = vmatprep.subr.bf16.mxu0 0
      %1576 = vmatpush1.bf16.msra.mxu0 0
      %1577 = vmatprep.subr.bf16.mxu0 0
      %1578 = vmatpush1.bf16.msra.mxu0 0
      %1579 = vmatprep.mubr.bf16.mxu0 0
      %1580 = vmatmul.mubr.bf16.gmra.mrb[0].mxu0 %v1542
      %v1581 = vpop.f32.mrb[0].mxu0
      %v1582 = vadd.f32 0.0, %v1581
      %v1583 = vpop.f32.mrb[0].mxu0
      %v1584 = vpop.f32.mrb[0].mxu0
      %v1585 = vadd.f32 0.0, %v1584
      %v1586 = vpop.f32.mrb[0].mxu0
      %1587 = vdwg.mxu0
      %v1589 = vsel %vm1361, %v1438, 0
      %v1592 = vand.u32 %v1442, %v1449
      %1594 = vmatprep.subr.bf16.mxu0 0
      %1595 = vmatpush1.bf16.msra.mxu0 %v1592
      %1596 = vmatprep.subr.bf16.mxu0 0
      %1597 = vmatpush1.bf16.msra.mxu0 0
      %1598 = vmatprep.subr.bf16.mxu0 0
      %1599 = vmatpush1.bf16.msra.mxu0 0
      %1600 = vmatprep.subr.bf16.mxu0 0
      %1601 = vmatpush1.bf16.msra.mxu0 0
      %1602 = vmatprep.subr.bf16.mxu0 0
      %1603 = vmatpush1.bf16.msra.mxu0 0
      %1604 = vmatprep.subr.bf16.mxu0 0
      %1605 = vmatpush1.bf16.msra.mxu0 0
      %1606 = vmatprep.subr.bf16.mxu0 0
      %1607 = vmatpush1.bf16.msra.mxu0 0
      %1608 = vmatprep.subr.bf16.mxu0 0
      %1609 = vmatpush1.bf16.msra.mxu0 0
      %1610 = vmatprep.subr.bf16.mxu0 0
      %1611 = vmatpush1.bf16.msra.mxu0 0
      %1612 = vmatprep.subr.bf16.mxu0 0
      %1613 = vmatpush1.bf16.msra.mxu0 0
      %1614 = vmatprep.subr.bf16.mxu0 0
      %1615 = vmatpush1.bf16.msra.mxu0 0
      %1616 = vmatprep.subr.bf16.mxu0 0
      %1617 = vmatpush1.bf16.msra.mxu0 0
      %1618 = vmatprep.subr.bf16.mxu0 0
      %1619 = vmatpush1.bf16.msra.mxu0 0
      %1620 = vmatprep.subr.bf16.mxu0 0
      %1621 = vmatpush1.bf16.msra.mxu0 0
      %1622 = vmatprep.subr.bf16.mxu0 0
      %1623 = vmatpush1.bf16.msra.mxu0 0
      %1624 = vmatprep.subr.bf16.mxu0 0
      %1625 = vmatpush1.bf16.msra.mxu0 0
      %1626 = vmatprep.mubr.bf16.mxu0 0
      %1627 = vmatmul.mubr.bf16.gmra.mrb[0].mxu0 %v1589
      %v1628 = vpop.f32.mrb[0].mxu0
      %v1629 = vadd.f32 0.0, %v1628
      %v1630 = vpop.f32.mrb[0].mxu0
      %v1631 = vpop.f32.mrb[0].mxu0
      %v1632 = vadd.f32 0.0, %v1631
      %v1633 = vpop.f32.mrb[0].mxu0
      %1634 = vdwg.mxu0
      %v1635 = vrcp.pop %v1413
      %v1636 = vrcp.pop %v1416
      %v1637 = vrcp.pop %v1419
      %v1638 = vrcp.pop %v1422
      %v1639 = vrcp.pop %v1425
      %v1640 = vrcp.pop %v1428
      %v1641 = vrcp.pop %v1431
      %v1642 = vrcp.pop %v1434
      %v1643 = vmul.f32 %v1488, %v1635
      %v1644 = vmul.f32 %v1491, %v1636
      %v1645 = vmul.f32 %v1535, %v1637
      %v1646 = vmul.f32 %v1538, %v1638
      %v1647 = vmul.f32 %v1582, %v1639
      %v1648 = vmul.f32 %v1585, %v1640
      %v1649 = vmul.f32 %v1629, %v1641
      %v1650 = vmul.f32 %v1632, %v1642
      %v1651 = vcombine.low %v1643, %v1647
      %v1652 = vcombine.high %v1643, %v1647
      %v1654 = vunpack.c.l.s4 1983009808
      %v1655 = vunpack.c.0.s8 %v1654
      %v1656 = vlaneseq
      %v1657 = vshrl.u32 %v1656, 7
      %v1658 = vsub.s32 %v1655, %v1657
      %v1659 = vrot.slane %v1651, %v1658
      %v1661 = vunpack.c.l.s4 1983009808
      %v1662 = vunpack.c.0.s8 %v1661
      %v1663 = vlaneseq
      %v1664 = vshrl.u32 %v1663, 7
      %v1665 = vsub.s32 %v1662, %v1664
      %v1666 = vrot.slane %v1652, %v1665
      %v1667 = vcombine.low %v1645, %v1649
      %v1668 = vcombine.high %v1645, %v1649
      %v1670 = vunpack.c.l.s4 1983009808
      %v1671 = vunpack.c.0.s8 %v1670
      %v1672 = vlaneseq
      %v1673 = vshrl.u32 %v1672, 7
      %v1674 = vsub.s32 %v1671, %v1673
      %v1675 = vrot.slane %v1667, %v1674
      %v1677 = vunpack.c.l.s4 1983009808
      %v1678 = vunpack.c.0.s8 %v1677
      %v1679 = vlaneseq
      %v1680 = vshrl.u32 %v1679, 7
      %v1681 = vsub.s32 %v1678, %v1680
      %v1682 = vrot.slane %v1668, %v1681
      %v1683 = vcombine.low %v1659, %v1675
      %v1684 = vcombine.high %v1659, %v1675
      %v1686 = vunpack.c.l.s4 1934713408
      %v1687 = vunpack.c.0.s8 %v1686
      %v1688 = vlaneseq
      %v1689 = vshrl.u32 %v1688, 7
      %v1690 = vsub.s32 %v1687, %v1689
      %v1691 = vrot.slane %v1683, %v1690
      %v1693 = vunpack.c.l.s4 1934713408
      %v1694 = vunpack.c.0.s8 %v1693
      %v1695 = vlaneseq
      %v1696 = vshrl.u32 %v1695, 7
      %v1697 = vsub.s32 %v1694, %v1696
      %v1698 = vrot.slane %v1684, %v1697
      %v1699 = vcombine.low %v1666, %v1682
      %v1700 = vcombine.high %v1666, %v1682
      %v1702 = vunpack.c.l.s4 1934713408
      %v1703 = vunpack.c.0.s8 %v1702
      %v1704 = vlaneseq
      %v1705 = vshrl.u32 %v1704, 7
      %v1706 = vsub.s32 %v1703, %v1705
      %v1707 = vrot.slane %v1699, %v1706
      %v1709 = vunpack.c.l.s4 1934713408
      %v1710 = vunpack.c.0.s8 %v1709
      %v1711 = vlaneseq
      %v1712 = vshrl.u32 %v1711, 7
      %v1713 = vsub.s32 %v1710, %v1712
      %v1714 = vrot.slane %v1700, %v1713
      %v1715 = vcombine.high %v1691, 0.0
      %v1716 = vcombine.high %v1698, 0.0
      %v1717 = vcombine.high %v1707, 0.0
      %v1718 = vcombine.high %v1714, 0.0
      %v1719 = vcombine.low %v1644, %v1648
      %v1721 = vunpack.c.l.s4 1983009808
      %v1722 = vunpack.c.0.s8 %v1721
      %v1723 = vlaneseq
      %v1724 = vshrl.u32 %v1723, 7
      %v1725 = vsub.s32 %v1722, %v1724
      %v1726 = vrot.slane %v1719, %v1725
      %v1727 = vcombine.low %v1646, %v1650
      %v1729 = vunpack.c.l.s4 1983009808
      %v1730 = vunpack.c.0.s8 %v1729
      %v1731 = vlaneseq
      %v1732 = vshrl.u32 %v1731, 7
      %v1733 = vsub.s32 %v1730, %v1732
      %v1734 = vrot.slane %v1727, %v1733
      %v1735 = vcombine.low %v1726, %v1734
      %v1736 = vcombine.low %v1691, %v1698
      %v1738 = vunpack.c.l.s4 1983009808
      %v1739 = vunpack.c.0.s8 %v1738
      %v1740 = vlaneseq
      %v1741 = vshrl.u32 %v1740, 7
      %v1742 = vsub.s32 %v1739, %v1741
      %v1743 = vrot.slane %v1736, %v1742
      %v1744 = vcombine.low %v1715, %v1716
      %v1746 = vunpack.c.l.s4 1983009808
      %v1747 = vunpack.c.0.s8 %v1746
      %v1748 = vlaneseq
      %v1749 = vshrl.u32 %v1748, 7
      %v1750 = vsub.s32 %v1747, %v1749
      %v1751 = vrot.slane %v1744, %v1750
      %v1752 = vcombine.low %v1707, %v1714
      %v1754 = vunpack.c.l.s4 1983009808
      %v1755 = vunpack.c.0.s8 %v1754
      %v1756 = vlaneseq
      %v1757 = vshrl.u32 %v1756, 7
      %v1758 = vsub.s32 %v1755, %v1757
      %v1759 = vrot.slane %v1752, %v1758
      %v1760 = vcombine.low %v1717, %v1718
      %v1762 = vunpack.c.l.s4 1983009808
      %v1763 = vunpack.c.0.s8 %v1762
      %v1764 = vlaneseq
      %v1765 = vshrl.u32 %v1764, 7
      %v1766 = vsub.s32 %v1763, %v1765
      %v1767 = vrot.slane %v1760, %v1766
      %v1768 = vcombine.low %v1743, %v1751
      %v1769 = vcombine.high %v1743, %v1751
      %v1771 = vunpack.c.l.s4 1934713408
      %v1772 = vunpack.c.0.s8 %v1771
      %v1773 = vlaneseq
      %v1774 = vshrl.u32 %v1773, 7
      %v1775 = vsub.s32 %v1772, %v1774
      %v1776 = vrot.slane %v1768, %v1775
      %v1778 = vunpack.c.l.s4 1934713408
      %v1779 = vunpack.c.0.s8 %v1778
      %v1780 = vlaneseq
      %v1781 = vshrl.u32 %v1780, 7
      %v1782 = vsub.s32 %v1779, %v1781
      %v1783 = vrot.slane %v1769, %v1782
      %v1784 = vcombine.low %v1759, %v1767
      %v1785 = vcombine.high %v1759, %v1767
      %v1787 = vunpack.c.l.s4 1934713408
      %v1788 = vunpack.c.0.s8 %v1787
      %v1789 = vlaneseq
      %v1790 = vshrl.u32 %v1789, 7
      %v1791 = vsub.s32 %v1788, %v1790
      %v1792 = vrot.slane %v1784, %v1791
      %v1794 = vunpack.c.l.s4 1934713408
      %v1795 = vunpack.c.0.s8 %v1794
      %v1796 = vlaneseq
      %v1797 = vshrl.u32 %v1796, 7
      %v1798 = vsub.s32 %v1795, %v1797
      %v1799 = vrot.slane %v1785, %v1798
      %v1800 = vcombine.low %v1776, %v1792
      %v1801 = vcombine.high %v1776, %v1792
      %v1802 = vcombine.low %v1783, %v1799
      %v1803 = vcombine.high %v1783, %v1799
      %v1805 = vunpack.c.l.s4 1934713408
      %v1806 = vunpack.c.0.s8 %v1805
      %v1807 = vlaneseq
      %v1808 = vshrl.u32 %v1807, 7
      %v1809 = vsub.s32 %v1806, %v1808
      %v1810 = vrot.slane %v1735, %v1809
      %v1812 = vunpack.c.l.s4 1983009808
      %v1813 = vunpack.c.0.s8 %v1812
      %v1814 = vlaneseq
      %v1815 = vshrl.u32 %v1814, 7
      %v1816 = vsub.s32 %v1813, %v1815
      %v1817 = vrot.slane %v1810, %v1816
      %v1818 = vcombine.high %v1817, 0.0
      %v1820 = vunpack.c.l.s4 1934713408
      %v1821 = vunpack.c.0.s8 %v1820
      %v1822 = vlaneseq
      %v1823 = vshrl.u32 %v1822, 7
      %v1824 = vsub.s32 %v1821, %v1823
      %v1825 = vrot.slane %v1817, %v1824
      %v1827 = vunpack.c.l.s4 1934713408
      %v1828 = vunpack.c.0.s8 %v1827
      %v1829 = vlaneseq
      %v1830 = vshrl.u32 %v1829, 7
      %v1831 = vsub.s32 %v1828, %v1830
      %v1832 = vrot.slane %v1818, %v1831
      %v1833 = vcombine.high %v1825, 0.0
      %v1834 = vcombine.high %v1832, 0.0
      %1837 = vrot.lane.b32.xlu0 %v1801, 8
      %v1838 = vpop.permute.xlu0 %1837
      %1839 = vrot.lane.b32.xlu0 %v1833, 8
      %v1840 = vpop.permute.xlu0 %1839
      %1845 = vrot.lane.b32.xlu0 %v1802, 16
      %v1846 = vpop.permute.xlu0 %1845
      %1847 = vrot.lane.b32.xlu0 %v1832, 16
      %v1848 = vpop.permute.xlu0 %1847
      %1853 = vrot.lane.b32.xlu0 %v1803, 24
      %v1854 = vpop.permute.xlu0 %1853
      %1855 = vrot.lane.b32.xlu0 %v1834, 24
      %v1856 = vpop.permute.xlu0 %1855
      %v1859 = vsel %vm1172, %v1800, %v1838
      %v1860 = vsel %vm1172, %v1825, %v1840
      %vm1861 = vcmask 130048
      %v1862 = vsel %vm1861, %v1859, %v1846
      %v1863 = vsel %vm1861, %v1860, %v1848
      %vm1864 = vcmask 195584
      %v1865 = vsel %vm1864, %v1862, %v1854
      %v1866 = vsel %vm1864, %v1863, %v1856
      %v1867 = vpack.c.bf16 %v1866, %v1865
      %v1869 = vlaneseq
      %v1870 = vshrl.u32 %v1869, 7
      %v1871 = vsub.s32 0, %v1870
      %v1872 = vrot.slane %v453, %v1871
      %v1878 = vunpack.c.l.b16 %v449
      %v1879 = vunpack.c.l.b16 %v450
      %v1880 = vunpack.c.l.b16 %v451
      %v1881 = vunpack.c.l.b16 %v452
      %v1882 = vpack.c.b16 %v1879, %v1878
      %v1883 = vpack.c.b16 %v1881, %v1880
      %v1887 = vsel %vm491, %v1867, 0
      %1889 = vmatprep.subr.bf16.mxu0 0
      %1890 = vmatpush1.bf16.msra.mxu0 %v1882
      %1891 = vmatprep.subr.bf16.mxu0 0
      %1892 = vmatpush1.bf16.msra.mxu0 %v1883
      %1893 = vmatprep.subr.bf16.mxu0 0
      %1894 = vmatpush1.bf16.msra.mxu0 0
      %1895 = vmatprep.subr.bf16.mxu0 0
      %1896 = vmatpush1.bf16.msra.mxu0 0
      %1897 = vmatprep.subr.bf16.mxu0 0
      %1898 = vmatpush1.bf16.msra.mxu0 0
      %1899 = vmatprep.subr.bf16.mxu0 0
      %1900 = vmatpush1.bf16.msra.mxu0 0
      %1901 = vmatprep.subr.bf16.mxu0 0
      %1902 = vmatpush1.bf16.msra.mxu0 0
      %1903 = vmatprep.subr.bf16.mxu0 0
      %1904 = vmatpush1.bf16.msra.mxu0 0
      %1905 = vmatprep.subr.bf16.mxu0 0
      %1906 = vmatpush1.bf16.msra.mxu0 0
      %1907 = vmatprep.subr.bf16.mxu0 0
      %1908 = vmatpush1.bf16.msra.mxu0 0
      %1909 = vmatprep.subr.bf16.mxu0 0
      %1910 = vmatpush1.bf16.msra.mxu0 0
      %1911 = vmatprep.subr.bf16.mxu0 0
      %1912 = vmatpush1.bf16.msra.mxu0 0
      %1913 = vmatprep.subr.bf16.mxu0 0
      %1914 = vmatpush1.bf16.msra.mxu0 0
      %1915 = vmatprep.subr.bf16.mxu0 0
      %1916 = vmatpush1.bf16.msra.mxu0 0
      %1917 = vmatprep.subr.bf16.mxu0 0
      %1918 = vmatpush1.bf16.msra.mxu0 0
      %1919 = vmatprep.subr.bf16.mxu0 0
      %1920 = vmatpush1.bf16.msra.mxu0 0
      %1921 = vmatprep.mubr.bf16.mxu0 0
      %1922 = vmatmul.mubr.bf16.gmra.mrb[0].mxu0 %v1887
      %v1923 = vpop.f32.mrb[0].mxu0
      %v1924 = vadd.f32 %v1872, %v1923
      %v1925 = vpop.f32.mrb[0].mxu0
      %v1926 = vpop.f32.mrb[0].mxu0
      %v1927 = vadd.f32 %v1872, %v1926
      %v1928 = vpop.f32.mrb[0].mxu0
      %1929 = vdwg.mxu0
      %v1930 = vadd.f32 %v442, %v1924
      %v1931 = vadd.f32 %v443, %v1927
      %v1932 = vsel %vm491, %v1930, 0.0
      %1933 = vadd.xlane.f32.xlu0 %v1932
      %v1934 = vpop.xlane.xlu0 %1933
      %vm1935 = vcmask 253952
      %v1936 = vsel %vm1935, %v1931, 0.0
      %1937 = vadd.xlane.f32.xlu0 %v1936
      %v1938 = vpop.xlane.xlu0 %1937
      %v1939 = vrcp.pop 32.0
      %v1940 = vmul.f32 %v1934, %v1939
      %v1941 = vmul.f32 %v1938, %v1939
      %v1942 = vsub.f32 %v1930, %v1940
      %v1943 = vsub.f32 %v1931, %v1941
      %v1944 = vmul.f32 %v1942, %v1942
      %v1945 = vmul.f32 %v1943, %v1943
      %v1946 = vsel %vm491, %v1944, 0.0
      %1947 = vadd.xlane.f32.xlu0 %v1946
      %v1948 = vpop.xlane.xlu0 %1947
      %v1949 = vsel %vm1935, %v1945, 0.0
      %1950 = vadd.xlane.f32.xlu0 %v1949
      %v1951 = vpop.xlane.xlu0 %1950
      %v1952 = vmul.f32 %v1948, %v1939
      %v1953 = vmul.f32 %v1951, %v1939
      %v1954 = vadd.f32 %v1952, 1e-05
      %v1955 = vadd.f32 %v1953, 1e-05
      %v1956 = vrsqrt.pop %v1954
      %v1957 = vrsqrt.pop %v1955
      %v1958 = vmul.f32 %v1942, %v1956
      %v1959 = vmul.f32 %v1943, %v1957
      %v1961 = vlaneseq
      %v1962 = vshrl.u32 %v1961, 7
      %v1963 = vsub.s32 0, %v1962
      %v1964 = vrot.slane %v468, %v1963
      %v1966 = vmul.f32 %v1958, %v1964
      %v1967 = vmul.f32 %v1959, %v1964
      %v1969 = vlaneseq
      %v1970 = vshrl.u32 %v1969, 7
      %v1971 = vsub.s32 0, %v1970
      %v1972 = vrot.slane %v469, %v1971
      %v1974 = vadd.f32 %v1966, %v1972
      %v1975 = vadd.f32 %v1967, %v1972
      %v1976 = vpack.c.bf16 %v1975, %v1974
      %v1978 = vlaneseq
      %v1979 = vshrl.u32 %v1978, 7
      %v1980 = vsub.s32 0, %v1979
      %v1981 = vrot.slane %v458, %v1980
      %v1987 = vunpack.c.l.b16 %v454
      %v1988 = vunpack.c.l.b16 %v455
      %v1989 = vunpack.c.l.b16 %v456
      %v1990 = vunpack.c.l.b16 %v457
      %v1991 = vpack.c.b16 %v1988, %v1987
      %v1992 = vpack.c.b16 %v1990, %v1989
      %v1996 = vsel %vm491, %v1976, 0
      %1998 = vmatprep.subr.bf16.mxu0 0
      %1999 = vmatpush1.bf16.msra.mxu0 %v1991
      %2000 = vmatprep.subr.bf16.mxu0 0
      %2001 = vmatpush1.bf16.msra.mxu0 %v1992
      %2002 = vmatprep.subr.bf16.mxu0 0
      %2003 = vmatpush1.bf16.msra.mxu0 0
      %2004 = vmatprep.subr.bf16.mxu0 0
      %2005 = vmatpush1.bf16.msra.mxu0 0
      %2006 = vmatprep.subr.bf16.mxu0 0
      %2007 = vmatpush1.bf16.msra.mxu0 0
      %2008 = vmatprep.subr.bf16.mxu0 0
      %2009 = vmatpush1.bf16.msra.mxu0 0
      %2010 = vmatprep.subr.bf16.mxu0 0
      %2011 = vmatpush1.bf16.msra.mxu0 0
      %2012 = vmatprep.subr.bf16.mxu0 0
      %2013 = vmatpush1.bf16.msra.mxu0 0
      %2014 = vmatprep.subr.bf16.mxu0 0
      %2015 = vmatpush1.bf16.msra.mxu0 0
      %2016 = vmatprep.subr.bf16.mxu0 0
      %2017 = vmatpush1.bf16.msra.mxu0 0
      %2018 = vmatprep.subr.bf16.mxu0 0
      %2019 = vmatpush1.bf16.msra.mxu0 0
      %2020 = vmatprep.subr.bf16.mxu0 0
      %2021 = vmatpush1.bf16.msra.mxu0 0
      %2022 = vmatprep.subr.bf16.mxu0 0
      %2023 = vmatpush1.bf16.msra.mxu0 0
      %2024 = vmatprep.subr.bf16.mxu0 0
      %2025 = vmatpush1.bf16.msra.mxu0 0
      %2026 = vmatprep.subr.bf16.mxu0 0
      %2027 = vmatpush1.bf16.msra.mxu0 0
      %2028 = vmatprep.subr.bf16.mxu0 0
      %2029 = vmatpush1.bf16.msra.mxu0 0
      %2030 = vmatprep.mubr.bf16.mxu0 0
      %2031 = vmatmul.mubr.bf16.gmra.mrb[0].mxu0 %v1996
      %v2032 = vpop.f32.mrb[0].mxu0
      %v2033 = vadd.f32 %v1981, %v2032
      %v2034 = vpop.f32.mrb[0].mxu0
      %v2035 = vpop.f32.mrb[0].mxu0
      %v2036 = vadd.f32 %v1981, %v2035
      %v2037 = vpop.f32.mrb[0].mxu0
      %2038 = vdwg.mxu0
      %v2039 = vmul.f32 %v2033, 0.5
      %v2040 = vmul.f32 %v2036, 0.5
      %v2041 = vmul.f32 %v2033, 0.70710677
      %v2042 = vmul.f32 %v2036, 0.70710677
      %v2043 = vand.u32 2147483647, %v2041
      %v2044 = vand.u32 2147483647, %v2042
      %v2045 = vmul.f32 %v2043, 0.3275911
      %v2046 = vmul.f32 %v2044, 0.3275911
      %v2047 = vadd.f32 %v2045, 1.0
      %v2048 = vadd.f32 %v2046, 1.0
      %v2049 = vrcp.pop %v2047
      %v2050 = vmul.f32 1.0, %v2049
      %v2051 = vrcp.pop %v2048
      %v2052 = vmul.f32 1.0, %v2051
      %v2053 = vmul.f32 %v2050, 1.0614054
      %v2054 = vmul.f32 %v2052, 1.0614054
      %v2055 = vadd.f32 %v2053, -1.4531521
      %v2056 = vadd.f32 %v2054, -1.4531521
      %v2057 = vmul.f32 %v2055, %v2050
      %v2058 = vmul.f32 %v2056, %v2052
      %v2059 = vadd.f32 %v2057, 1.4214138
      %v2060 = vadd.f32 %v2058, 1.4214138
      %v2061 = vmul.f32 %v2059, %v2050
      %v2062 = vmul.f32 %v2060, %v2052
      %v2063 = vadd.f32 %v2061, -0.28449672
      %v2064 = vadd.f32 %v2062, -0.28449672
      %v2065 = vmul.f32 %v2063, %v2050
      %v2066 = vmul.f32 %v2064, %v2052
      %v2067 = vadd.f32 %v2065, 0.2548296
      %v2068 = vadd.f32 %v2066, 0.2548296
      %v2069 = vmul.f32 %v2067, %v2050
      %v2070 = vmul.f32 %v2068, %v2052
      %v2071 = vsub.f32 0.0, %v2043
      %v2072 = vsub.f32 0.0, %v2044
      %v2073 = vmul.f32 %v2071, %v2043
      %v2074 = vmul.f32 %v2072, %v2044
      %v2075 = vmul.f32 %v2073, 1.442695
      %v2076 = vpow.pop %v2075
      %v2077 = vmul.f32 %v2074, 1.442695
      %v2078 = vpow.pop %v2077
      %v2079 = vmul.f32 %v2069, %v2076
      %v2080 = vmul.f32 %v2070, %v2078
      %v2081 = vsub.f32 1.0, %v2079
      %v2082 = vsub.f32 1.0, %v2080
      %vm2083 = vcmp.lt.f32.partialorder %v2041, 0.0
      %vm2084 = vcmp.lt.f32.partialorder %v2042, 0.0
      %v2085 = vsub.f32 0.0, %v2081
      %v2086 = vsub.f32 0.0, %v2082
      %v2087 = vsel %vm2083, %v2085, %v2081
      %v2088 = vsel %vm2084, %v2086, %v2082
      %v2089 = vadd.f32 %v2087, 1.0
      %v2090 = vadd.f32 %v2088, 1.0
      %v2091 = vmul.f32 %v2039, %v2089
      %v2092 = vmul.f32 %v2040, %v2090
      %v2093 = vpack.c.bf16 %v2092, %v2091
      %v2095 = vlaneseq
      %v2096 = vshrl.u32 %v2095, 7
      %v2097 = vsub.s32 0, %v2096
      %v2098 = vrot.slane %v467, %v2097
      %v2108 = vunpack.c.l.b16 %v459
      %v2109 = vunpack.c.l.b16 %v460
      %v2110 = vunpack.c.l.b16 %v461
      %v2111 = vunpack.c.l.b16 %v462
      %v2112 = vunpack.c.l.b16 %v463
      %v2113 = vunpack.c.l.b16 %v464
      %v2114 = vunpack.c.l.b16 %v465
      %v2115 = vunpack.c.l.b16 %v466
      %v2116 = vpack.c.b16 %v2109, %v2108
      %v2117 = vpack.c.b16 %v2111, %v2110
      %v2118 = vpack.c.b16 %v2113, %v2112
      %v2119 = vpack.c.b16 %v2115, %v2114
      %vm2124 = vcmask 523264
      %v2126 = vsel %vm2124, %v2093, 0
      %2128 = vmatprep.subr.bf16.mxu0 0
      %2129 = vmatpush1.bf16.msra.mxu0 %v2116
      %2130 = vmatprep.subr.bf16.mxu0 0
      %2131 = vmatpush1.bf16.msra.mxu0 %v2117
      %2132 = vmatprep.subr.bf16.mxu0 0
      %2133 = vmatpush1.bf16.msra.mxu0 %v2118
      %2134 = vmatprep.subr.bf16.mxu0 0
      %2135 = vmatpush1.bf16.msra.mxu0 %v2119
      %2136 = vmatprep.subr.bf16.mxu0 0
      %2137 = vmatpush1.bf16.msra.mxu0 0
      %2138 = vmatprep.subr.bf16.mxu0 0
      %2139 = vmatpush1.bf16.msra.mxu0 0
      %2140 = vmatprep.subr.bf16.mxu0 0
      %2141 = vmatpush1.bf16.msra.mxu0 0
      %2142 = vmatprep.subr.bf16.mxu0 0
      %2143 = vmatpush1.bf16.msra.mxu0 0
      %2144 = vmatprep.subr.bf16.mxu0 0
      %2145 = vmatpush1.bf16.msra.mxu0 0
      %2146 = vmatprep.subr.bf16.mxu0 0
      %2147 = vmatpush1.bf16.msra.mxu0 0
      %2148 = vmatprep.subr.bf16.mxu0 0
      %2149 = vmatpush1.bf16.msra.mxu0 0
      %2150 = vmatprep.subr.bf16.mxu0 0
      %2151 = vmatpush1.bf16.msra.mxu0 0
      %2152 = vmatprep.subr.bf16.mxu0 0
      %2153 = vmatpush1.bf16.msra.mxu0 0
      %2154 = vmatprep.subr.bf16.mxu0 0
      %2155 = vmatpush1.bf16.msra.mxu0 0
      %2156 = vmatprep.subr.bf16.mxu0 0
      %2157 = vmatpush1.bf16.msra.mxu0 0
      %2158 = vmatprep.subr.bf16.mxu0 0
      %2159 = vmatpush1.bf16.msra.mxu0 0
      %2160 = vmatprep.mubr.bf16.mxu0 0
      %2161 = vmatmul.mubr.bf16.gmra.mrb[0].mxu0 %v2126
      %v2162 = vpop.f32.mrb[0].mxu0
      %v2163 = vadd.f32 %v2098, %v2162
      %v2164 = vpop.f32.mrb[0].mxu0
      %v2165 = vpop.f32.mrb[0].mxu0
      %v2166 = vadd.f32 %v2098, %v2165
      %v2167 = vpop.f32.mrb[0].mxu0
      %2168 = vdwg.mxu0
      %v2169 = vadd.f32 %v1974, %v2163
      %v2170 = vadd.f32 %v1975, %v2166
      %v2171 = vsel %vm491, %v2169, 0.0
      %2172 = vadd.xlane.f32.xlu0 %v2171
      %v2173 = vpop.xlane.xlu0 %2172
      %v2174 = vsel %vm1935, %v2170, 0.0
      %2175 = vadd.xlane.f32.xlu0 %v2174
      %v2176 = vpop.xlane.xlu0 %2175
      %v2177 = vmul.f32 %v2173, %v1939
      %v2178 = vmul.f32 %v2176, %v1939
      %v2179 = vsub.f32 %v2169, %v2177
      %v2180 = vsub.f32 %v2170, %v2178
      %v2181 = vmul.f32 %v2179, %v2179
      %v2182 = vmul.f32 %v2180, %v2180
      %v2183 = vsel %vm491, %v2181, 0.0
      %2184 = vadd.xlane.f32.xlu0 %v2183
      %v2185 = vpop.xlane.xlu0 %2184
      %v2186 = vsel %vm1935, %v2182, 0.0
      %2187 = vadd.xlane.f32.xlu0 %v2186
      %v2188 = vpop.xlane.xlu0 %2187
      %v2189 = vmul.f32 %v2185, %v1939
      %v2190 = vmul.f32 %v2188, %v1939
      %v2191 = vadd.f32 %v2189, 1e-05
      %v2192 = vadd.f32 %v2190, 1e-05
      %v2193 = vrsqrt.pop %v2191
      %v2194 = vrsqrt.pop %v2192
      %v2195 = vmul.f32 %v2179, %v2193
      %v2196 = vmul.f32 %v2180, %v2194
      %v2198 = vlaneseq
      %v2199 = vshrl.u32 %v2198, 7
      %v2200 = vsub.s32 0, %v2199
      %v2201 = vrot.slane %v470, %v2200
      %v2203 = vmul.f32 %v2195, %v2201
      %v2204 = vmul.f32 %v2196, %v2201
      %v2206 = vlaneseq
      %v2207 = vshrl.u32 %v2206, 7
      %v2208 = vsub.s32 0, %v2207
      %v2209 = vrot.slane %v471, %v2208
      %v2211 = vadd.f32 %v2203, %v2209
      %v2212 = vadd.f32 %v2204, %v2209
      %2213 = vst.msk [vmem:[%s440] sm:$0xff] %vm491, %v2211
      %2214 = vst.msk [vmem:[%s440 + $0x8] sm:$0x1] %vm1935, %v2212
      %p2215 = scmp.lt.s32.totalorder %s24, 1
      %s2216 = scalar_select %p2215, %s24, 1
      %s2217 = smul.addr %s2216, 2
      %s2218 = smul.addr %s2217, 8
      %s2219 = scalar_lea.vmem %s13, %s2218
      // Predicated region
      $region73: #{pallas_forward.4} parent=71 // pred_check
        %p2220 = pneg %p320
      $region74: #{pallas_forward.4} parent=71 // pred_check_branch
        %2222 = sbr.rel (%p2220) target = $region76
      $region75: #{pallas_forward.4} parent=71 // pred_region
        _
      $region76: #{pallas_forward.4} parent=71 // pred_fallthru
        _
    $region72: #{pallas_forward.4} parent=5 // pred_fallthru
      _
    %p2223 = scmp.le.s32.totalorder 2, %s19
    // Predicated region
    $region77: #{pallas_forward.4} parent=5 // pred_check
      %p2224 = pneg %p2223
    $region78: #{pallas_forward.4} parent=5 // pred_check_branch
      %2226 = sbr.rel (%p2224) target = $region80
    $region79: #{pallas_forward.4} parent=5 // pred_region
      %s2227 = ssub.s32 %s19, 2
      // Predicated region
      $region81: #{pallas_forward.4} parent=79 // pred_check
        %p2228 = pneg %p326
      $region82: #{pallas_forward.4} parent=79 // pred_check_branch
        %2230 = sbr.rel (%p2228) target = $region84
      $region83: #{pallas_forward.4} parent=79 // pred_region
        %p2231 = scmp.lt.s32.totalorder %s25, 1
        %s2232 = scalar_select %p2231, %s25, 1
        %s2233 = smul.addr %s2232, 2
        %s2234 = smul.addr %s2233, 8
        %s2235 = scalar_lea.vmem %s13, %s2234
      $region84: #{pallas_forward.4} parent=79 // pred_fallthru
        _
    $region80: #{pallas_forward.4} parent=5 // pred_fallthru
      _
  $region6: #{pallas_forward.4} parent=0 // loop_footer
    %s23 = sadd.s32 1, %s19
  $region7: #{pallas_forward.4} parent=0 // loop_footer_branch
    %18 = sbr.rel target = $region3
  $region8: #{pallas_forward.4} parent=0 // loop_exit
    _

</llo_original>
